<compile_context>
chip_gen: v6e
topology: v6e:2x2x1
jax: 0.10.0
libtpu: 0.0.40
codegen_flags: <defaults>
</compile_context>

<pallas_src>
import functools

import numpy as np
import jax
import jax.numpy as jnp
from jax.experimental import pallas as pl
from jax.experimental.pallas import tpu as pltpu


_COMPILER_PARAMS = pltpu.CompilerParams(
    dimension_semantics=("arbitrary",),
    vmem_limit_bytes=32 * 1024 * 1024,
)


# ----------------------------------------------------------------------------
# small helpers
# ----------------------------------------------------------------------------
def _spec(shape):
    """Full-array block at grid point 0 (every operand here is tiny)."""
    return pl.BlockSpec(shape, lambda i, n=len(shape): (0,) * n)


def _mxdot(a, b):
    """MXU matmul: bf16 operands, f32 accumulation."""
    return jnp.dot(a.astype(jnp.bfloat16), b.astype(jnp.bfloat16),
                   preferred_element_type=jnp.float32)


def _mxdot_nt(a, b):
    """a @ b.T (contract last dims), bf16 operands / f32 accumulation."""
    return jax.lax.dot_general(
        a.astype(jnp.bfloat16), b.astype(jnp.bfloat16),
        (((1,), (1,)), ((), ())), preferred_element_type=jnp.float32)


def _mlp_tail(h_pre, w1, b1, w2, b2):
    """Given h_pre = x@W0 + b0: ReLU -> Linear -> ReLU -> Linear (fused MLP)."""
    h0 = jnp.maximum(h_pre, 0.0)
    h1 = jnp.maximum(_mxdot(h0, w1) + b1, 0.0)
    return _mxdot(h1, w2) + b2


# ----------------------------------------------------------------------------
# Single fused kernel: GN block (is_undirected + residual, Gaussian smearing
# fused) -> Set2Set(nodes) + Set2Set(edges) -> dense head.
# ----------------------------------------------------------------------------
def _megnet_kernel(
        # graph tensors
        d2_ref, off_ref, xsrc_ref, xdst_ref, gedge_ref,
        node_ref, gnode_ref, glob_ref,
        dst_ref, ebat2_ref, nbat_ref,
        # GN-block MLP weights (edge / node / global)
        e_w0_ref, e_b0_ref, e_w1_ref, e_b1_ref, e_w2_ref, e_b2_ref,
        n_w0_ref, n_b0_ref, n_w1_ref, n_b1_ref, n_w2_ref, n_b2_ref,
        g_w0_ref, g_b0_ref, g_w1_ref, g_b1_ref, g_w2_ref, g_b2_ref,
        # Set2Set weights (nodes / edges)
        sn_wih_ref, sn_whh_ref, sn_b_ref,
        se_wih_ref, se_whh_ref, se_b_ref,
        # dense head: Linear(160,32) -> Linear(32,16) -> Linear(16,T)
        h_w0_ref, h_b0_ref, h_w1_ref, h_b1_ref, h_w2_ref, h_b2_ref,
        # output
        y_ref,
        *, coeff, n_edges, steps):
    node = node_ref[...]                                     # (N, Fn)
    glob = glob_ref[...]                                     # (B, Fg)
    fn = node.shape[1]
    n_nodes = node.shape[0]
    n_graphs = glob.shape[0]

    # --- Gaussian smearing fused into the edge update (EUP exp, free under MXU)
    diff = d2_ref[...] - off_ref[...]                        # (2E,1)-(1,G) -> (2E,G)
    ef = jnp.exp(coeff * diff * diff)                        # smeared edge features
    n_gauss = ef.shape[1]

    # --- edge update: concat-free sum of partial matmuls over sliced W0
    e_w0 = e_w0_ref[...]
    h = (_mxdot(xsrc_ref[...], e_w0[0:fn])
         + _mxdot(xdst_ref[...], e_w0[fn:2 * fn])
         + _mxdot(ef, e_w0[2 * fn:2 * fn + n_gauss])
         + _mxdot(gedge_ref[...], e_w0[2 * fn + n_gauss:])
         + e_b0_ref[...])
    ef_new = _mlp_tail(h, e_w1_ref[...], e_b1_ref[...],
                       e_w2_ref[...], e_b2_ref[...])         # (2E, H)
    hid = ef_new.shape[1]

    # --- in-kernel membership masks (no HBM one-hot)
    two_e = ef_new.shape[0]
    node_ids = jax.lax.broadcasted_iota(jnp.int32, (n_nodes, two_e), 0)
    m_dst = (node_ids == dst_ref[...]).astype(jnp.float32)           # (N, 2E)
    graph_ids_n = jax.lax.broadcasted_iota(jnp.int32, (n_graphs, n_nodes), 0)
    member_n = (graph_ids_n == nbat_ref[...])                        # (B, N) bool
    graph_ids_e = jax.lax.broadcasted_iota(jnp.int32, (n_graphs, two_e), 0)
    member_e2 = (graph_ids_e == ebat2_ref[...])                      # (B, 2E) bool

    def seg_mean(member_bool, values):
        msk = member_bool.astype(jnp.float32)
        cnt = jnp.maximum(jnp.sum(msk, axis=1, keepdims=True), 1.0)
        return _mxdot(msk, values) / cnt

    # --- node update: scatter-mean of updated edges onto destination nodes
    cnt_dst = jnp.maximum(jnp.sum(m_dst, axis=1, keepdims=True), 1.0)
    agg = _mxdot(m_dst, ef_new) / cnt_dst                    # (N, H)
    n_w0 = n_w0_ref[...]
    h = (_mxdot(node, n_w0[0:fn])
         + _mxdot(agg, n_w0[fn:fn + hid])
         + _mxdot(gnode_ref[...], n_w0[fn + hid:])
         + n_b0_ref[...])
    node_new = _mlp_tail(h, n_w1_ref[...], n_b1_ref[...],
                         n_w2_ref[...], n_b2_ref[...])       # (N, H)

    # --- global update (concat order: edge mean, node mean, global)
    edge_mean = seg_mean(member_e2, ef_new)                  # (B, H)
    node_mean = seg_mean(member_n, node_new)                 # (B, H)
    g_w0 = g_w0_ref[...]
    h = (_mxdot(edge_mean, g_w0[0:hid])
         + _mxdot(node_mean, g_w0[hid:2 * hid])
         + _mxdot(glob, g_w0[2 * hid:])
         + g_b0_ref[...])
    glob_new = _mlp_tail(h, g_w1_ref[...], g_b1_ref[...],
                         g_w2_ref[...], g_b2_ref[...])       # (B, H)

    # --- residuals; edges truncated back to the original E (single direction)
    xn = node_new + node                                     # (N, H)
    xe = ef_new[0:n_edges] + ef[0:n_edges]                   # (E, H)
    xg = glob_new + glob                                     # (B, H)
    member_e = member_e2[:, 0:n_edges]                       # (B, E)

    # --- Set2Set pooling: 3 x (LSTM cell + segment softmax attention)
    def set2set(x, member, w_ih, w_hh, bias):
        f = x.shape[1]
        h_ = jnp.zeros((n_graphs, f), jnp.float32)
        c_ = jnp.zeros((n_graphs, f), jnp.float32)
        q = jnp.zeros((n_graphs, f), jnp.float32)            # q_star = [q, r]
        r = jnp.zeros((n_graphs, f), jnp.float32)
        for _ in range(steps):                               # 3 steps, unrolled
            # LSTM cell: q_star @ W_ih == q @ W_ih[:F] + r @ W_ih[F:] (no concat)
            gates = (_mxdot(q, w_ih[0:f]) + _mxdot(r, w_ih[f:2 * f])
                     + _mxdot(h_, w_hh) + bias)              # (B, 4F)
            i_g = jax.nn.sigmoid(gates[:, 0:f])
            f_g = jax.nn.sigmoid(gates[:, f:2 * f])
            g_g = jnp.tanh(gates[:, 2 * f:3 * f])
            o_g = jax.nn.sigmoid(gates[:, 3 * f:4 * f])
            c_ = f_g * c_ + i_g * g_g
            h_ = o_g * jnp.tanh(c_)
            q = h_
            # segment softmax attention; empty segments give r = 0
            e = _mxdot_nt(q, x)                              # (B, M)
            masked = jnp.where(member, e, -1e30)
            seg_max = jnp.max(masked, axis=1, keepdims=True)
            p = jnp.where(member, jnp.exp(masked - seg_max), 0.0)
            denom = jnp.maximum(jnp.sum(p, axis=1, keepdims=True), 1e-20)
            a = p * pl.reciprocal(denom, approx=True)        # EUP reciprocal
            r = _mxdot(a, x)
        return q, r

    qn, rn = set2set(xn, member_n, sn_wih_ref[...], sn_whh_ref[...],
                     sn_b_ref[...])
    qe, re = set2set(xe, member_e, se_wih_ref[...], se_whh_ref[...],
                     se_b_ref[...])

    # --- dense head (nn.Sequential has no activation between the Linears)
    fqn = qn.shape[1]
    fqe = qe.shape[1]
    w0 = h_w0_ref[...]
    h0 = (_mxdot(qn, w0[0:fqn]) + _mxdot(rn, w0[fqn:2 * fqn])
          + _mxdot(qe, w0[2 * fqn:2 * fqn + fqe])
          + _mxdot(re, w0[2 * fqn + fqe:2 * fqn + 2 * fqe])
          + _mxdot(xg, w0[2 * fqn + 2 * fqe:]) + h_b0_ref[...])
    h1 = _mxdot(h0, h_w1_ref[...]) + h_b1_ref[...]
    y_ref[...] = _mxdot(h1, h_w2_ref[...]) + h_b2_ref[...]


# ----------------------------------------------------------------------------
# Forward pass (glue in plain JAX, compute via the single fused kernel)
# ----------------------------------------------------------------------------
def megnet_forward(params, positions, atomic_numbers, edge_index, batch,
                   global_features, offsets, coeff):
    src, dst = edge_index[0], edge_index[1]
    diff = positions[src] - positions[dst]
    distances = jnp.sqrt(jnp.sum(diff * diff, axis=-1))

    node = params["embedding"][atomic_numbers]

    n_edges = edge_index.shape[1]
    n_graphs = global_features.shape[0]
    n_gauss = offsets.shape[0]
    num_targets = params["out"]["w"].shape[1]

    # is_undirected=True: double the edges (both directions share a distance)
    ei2 = jnp.concatenate([edge_index, edge_index[::-1, :]], axis=1)
    src2, dst2 = ei2[0], ei2[1]
    ebat2 = batch[src2]
    d2 = jnp.concatenate([distances, distances], axis=0)
    d2 = d2.reshape(2 * n_edges, 1).astype(jnp.float32)

    inputs = [
        d2,
        offsets.reshape(1, n_gauss).astype(jnp.float32),
        node[src2], node[dst2], global_features[ebat2],   # gathers stay in XLA glue
        node, global_features[batch], global_features,
        dst2.reshape(1, -1).astype(jnp.int32),
        ebat2.reshape(1, -1).astype(jnp.int32),
        batch.reshape(1, -1).astype(jnp.int32),
    ]
    for blk in ("edge", "node", "global"):
        q = params["gn0"][blk]
        inputs += [q["w0"], q["b0"], q["w1"], q["b1"], q["w2"], q["b2"]]
    inputs += [
        params["s2s_nodes"]["w_ih"], params["s2s_nodes"]["w_hh"],
        params["s2s_nodes"]["b"],
        params["s2s_edges"]["w_ih"], params["s2s_edges"]["w_hh"],
        params["s2s_edges"]["b"],
        params["dense0"]["w"], params["dense0"]["b"],
        params["dense1"]["w"], params["dense1"]["b"],
        params["out"]["w"], params["out"]["b"],
    ]

    out_shape = jax.ShapeDtypeStruct((n_graphs, num_targets), jnp.float32)
    return pl.pallas_call(
        functools.partial(_megnet_kernel, coeff=float(coeff),
                          n_edges=n_edges, steps=3),
        grid=(1,),
        in_specs=[_spec(a.shape) for a in inputs],
        out_specs=_spec(out_shape.shape),
        out_shape=out_shape,
        compiler_params=_COMPILER_PARAMS,
    )(*inputs)


# ----------------------------------------------------------------------------
# Deterministic parameter initialization (shapes follow MEGNet.__init__ defaults).
# Weight matrices stored bf16 (MXU operands), biases stored (1, out) f32.
# ----------------------------------------------------------------------------
def init_params(key, n_node=32, n_edge=32, n_global=32, hidden=32,
                num_targets=1, max_z=100, wdtype=jnp.bfloat16):
    keys = iter(jax.random.split(key, 64))

    def lin(i, o):
        w = (0.1 * jax.random.normal(next(keys), (i, o), jnp.float32)).astype(wdtype)
        b = 0.1 * jax.random.normal(next(keys), (1, o), jnp.float32)
        return {"w": w, "b": b}

    def mlp(d_in):
        p = {}
        for idx, (i, o) in enumerate([(d_in, hidden), (hidden, hidden),
                                      (hidden, hidden)]):
            l = lin(i, o)
            p[f"w{idx}"], p[f"b{idx}"] = l["w"], l["b"]
        return p

    def s2s(f):
        return {
            "w_ih": (0.1 * jax.random.normal(next(keys), (2 * f, 4 * f),
                                             jnp.float32)).astype(wdtype),
            "w_hh": (0.1 * jax.random.normal(next(keys), (f, 4 * f),
                                             jnp.float32)).astype(wdtype),
            "b": 0.1 * jax.random.normal(next(keys), (1, 4 * f), jnp.float32),
        }

    return {
        "embedding": 0.1 * jax.random.normal(next(keys), (max_z, n_node),
                                             jnp.float32),
        "gn0": {
            "edge": mlp(2 * n_node + n_edge + n_global),     # 128 -> 32
            "node": mlp(n_node + n_edge + n_global),         # 96  -> 32
            "global": mlp(n_node + n_edge + n_global),       # 96  -> 32
        },
        "s2s_nodes": s2s(n_node),
        "s2s_edges": s2s(n_edge),
        "dense0": lin(2 * n_node + 2 * n_edge + n_global, 32),  # 160 -> 32
        "dense1": lin(32, 16),
        "out": lin(16, num_targets),
    }


# ----------------------------------------------------------------------------
if __name__ == "__main__":
    key = jax.random.PRNGKey(0)
    n_node_features = n_edge_features = n_global_features = 32
    n_graphs = 2
    atoms_per_graph = 8
    n_atoms = n_graphs * atoms_per_graph
    cutoff = 6.0
    num_targets = 1

    k_pos, k_z, k_g, k_params = jax.random.split(key, 4)
    positions = jax.random.uniform(k_pos, (n_atoms, 3), jnp.float32, 0.0, 4.0)
    atomic_numbers = jax.random.randint(k_z, (n_atoms,), 1, 20)
    global_features = jax.random.normal(k_g, (n_graphs, n_global_features),
                                        jnp.float32)
    batch = jnp.repeat(jnp.arange(n_graphs, dtype=jnp.int32), atoms_per_graph)

    # radius_graph (use_pbc=False branch), built on host so shapes are static.
    # TODO(synk): radius_graph_pbc / get_pbc_distances (periodic-image neighbor
    # construction) has no clean Pallas equivalent here; use_pbc=False path used.
    pos_np = np.asarray(positions)
    batch_np = np.asarray(batch)
    dmat = np.linalg.norm(pos_np[:, None, :] - pos_np[None, :, :], axis=-1)
    mask = ((dmat < cutoff)
            & (batch_np[:, None] == batch_np[None, :])
            & ~np.eye(n_atoms, dtype=bool))
    src_np, dst_np = np.nonzero(mask)
    edge_index = jnp.asarray(np.stack([src_np, dst_np]).astype(np.int32))

    params = init_params(k_params, n_node=n_node_features,
                         n_edge=n_edge_features, n_global=n_global_features,
                         num_targets=num_targets)

    offsets = jnp.linspace(0.0, cutoff, n_edge_features)
    coeff = -0.5 / float(offsets[1] - offsets[0]) ** 2

    forward = jax.jit(functools.partial(megnet_forward, coeff=coeff))
    y = forward(params, positions, atomic_numbers, edge_index, batch,
                global_features, offsets)
    out = {"energy": y}
    # TODO(synk): regress_forces (autograd of energy w.r.t. positions) omitted;
    # the Pallas kernel here does not define a custom VJP.

    jax.block_until_ready(out["energy"])
    assert out["energy"].shape == (n_graphs, num_targets)
    assert bool(jnp.all(jnp.isfinite(out["energy"])))
    print("KERNEL_OK")
</pallas_src>

<mosaic_0001>
module attributes {stable_mosaic.version = 11 : i64} {
  func.func @_megnet_kernel(%arg0: i32, %arg1: memref<224x1xf32, #tpu.memory_space<vmem>>, %arg2: memref<1x32xf32, #tpu.memory_space<vmem>>, %arg3: memref<224x32xf32, #tpu.memory_space<vmem>>, %arg4: memref<224x32xf32, #tpu.memory_space<vmem>>, %arg5: memref<224x32xf32, #tpu.memory_space<vmem>>, %arg6: memref<16x32xf32, #tpu.memory_space<vmem>>, %arg7: memref<16x32xf32, #tpu.memory_space<vmem>>, %arg8: memref<2x32xf32, #tpu.memory_space<vmem>>, %arg9: memref<1x224xi32, #tpu.memory_space<vmem>>, %arg10: memref<1x224xi32, #tpu.memory_space<vmem>>, %arg11: memref<1x16xi32, #tpu.memory_space<vmem>>, %arg12: memref<128x32xbf16, #tpu.memory_space<vmem>>, %arg13: memref<1x32xf32, #tpu.memory_space<vmem>>, %arg14: memref<32x32xbf16, #tpu.memory_space<vmem>>, %arg15: memref<1x32xf32, #tpu.memory_space<vmem>>, %arg16: memref<32x32xbf16, #tpu.memory_space<vmem>>, %arg17: memref<1x32xf32, #tpu.memory_space<vmem>>, %arg18: memref<96x32xbf16, #tpu.memory_space<vmem>>, %arg19: memref<1x32xf32, #tpu.memory_space<vmem>>, %arg20: memref<32x32xbf16, #tpu.memory_space<vmem>>, %arg21: memref<1x32xf32, #tpu.memory_space<vmem>>, %arg22: memref<32x32xbf16, #tpu.memory_space<vmem>>, %arg23: memref<1x32xf32, #tpu.memory_space<vmem>>, %arg24: memref<96x32xbf16, #tpu.memory_space<vmem>>, %arg25: memref<1x32xf32, #tpu.memory_space<vmem>>, %arg26: memref<32x32xbf16, #tpu.memory_space<vmem>>, %arg27: memref<1x32xf32, #tpu.memory_space<vmem>>, %arg28: memref<32x32xbf16, #tpu.memory_space<vmem>>, %arg29: memref<1x32xf32, #tpu.memory_space<vmem>>, %arg30: memref<64x128xbf16, #tpu.memory_space<vmem>>, %arg31: memref<32x128xbf16, #tpu.memory_space<vmem>>, %arg32: memref<1x128xf32, #tpu.memory_space<vmem>>, %arg33: memref<64x128xbf16, #tpu.memory_space<vmem>>, %arg34: memref<32x128xbf16, #tpu.memory_space<vmem>>, %arg35: memref<1x128xf32, #tpu.memory_space<vmem>>, %arg36: memref<160x32xbf16, #tpu.memory_space<vmem>>, %arg37: memref<1x32xf32, #tpu.memory_space<vmem>>, %arg38: memref<32x16xbf16, #tpu.memory_space<vmem>>, %arg39: memref<1x16xf32, #tpu.memory_space<vmem>>, %arg40: memref<16x1xbf16, #tpu.memory_space<vmem>>, %arg41: memref<1x1xf32, #tpu.memory_space<vmem>>, %arg42: memref<2x1xf32, #tpu.memory_space<vmem>>) attributes {dimension_semantics = [#tpu.dimension_semantics<arbitrary>], iteration_bounds = array<i64: 1>, scalar_prefetch = 0 : i64, scratch_operands = 0 : i64, tpu.core_type = #tpu.core_type<tc>, window_params = [{pipeline_mode = #tpu.pipeline_mode<synchronous>, transform_indices = @transform_0, window_bounds = array<i64: 224, 1>}, {pipeline_mode = #tpu.pipeline_mode<synchronous>, transform_indices = @transform_1, window_bounds = array<i64: 1, 32>}, {pipeline_mode = #tpu.pipeline_mode<synchronous>, transform_indices = @transform_2, window_bounds = array<i64: 224, 32>}, {pipeline_mode = #tpu.pipeline_mode<synchronous>, transform_indices = @transform_3, window_bounds = array<i64: 224, 32>}, {pipeline_mode = #tpu.pipeline_mode<synchronous>, transform_indices = @transform_4, window_bounds = array<i64: 224, 32>}, {pipeline_mode = #tpu.pipeline_mode<synchronous>, transform_indices = @transform_5, window_bounds = array<i64: 16, 32>}, {pipeline_mode = #tpu.pipeline_mode<synchronous>, transform_indices = @transform_6, window_bounds = array<i64: 16, 32>}, {pipeline_mode = #tpu.pipeline_mode<synchronous>, transform_indices = @transform_7, window_bounds = array<i64: 2, 32>}, {pipeline_mode = #tpu.pipeline_mode<synchronous>, transform_indices = @transform_8, window_bounds = array<i64: 1, 224>}, {pipeline_mode = #tpu.pipeline_mode<synchronous>, transform_indices = @transform_9, window_bounds = array<i64: 1, 224>}, {pipeline_mode = #tpu.pipeline_mode<synchronous>, transform_indices = @transform_10, window_bounds = array<i64: 1, 16>}, {pipeline_mode = #tpu.pipeline_mode<synchronous>, transform_indices = @transform_11, window_bounds = array<i64: 128, 32>}, {pipeline_mode = #tpu.pipeline_mode<synchronous>, transform_indices = @transform_12, window_bounds = array<i64: 1, 32>}, {pipeline_mode = #tpu.pipeline_mode<synchronous>, transform_indices = @transform_13, window_bounds = array<i64: 32, 32>}, {pipeline_mode = #tpu.pipeline_mode<synchronous>, transform_indices = @transform_14, window_bounds = array<i64: 1, 32>}, {pipeline_mode = #tpu.pipeline_mode<synchronous>, transform_indices = @transform_15, window_bounds = array<i64: 32, 32>}, {pipeline_mode = #tpu.pipeline_mode<synchronous>, transform_indices = @transform_16, window_bounds = array<i64: 1, 32>}, {pipeline_mode = #tpu.pipeline_mode<synchronous>, transform_indices = @transform_17, window_bounds = array<i64: 96, 32>}, {pipeline_mode = #tpu.pipeline_mode<synchronous>, transform_indices = @transform_18, window_bounds = array<i64: 1, 32>}, {pipeline_mode = #tpu.pipeline_mode<synchronous>, transform_indices = @transform_19, window_bounds = array<i64: 32, 32>}, {pipeline_mode = #tpu.pipeline_mode<synchronous>, transform_indices = @transform_20, window_bounds = array<i64: 1, 32>}, {pipeline_mode = #tpu.pipeline_mode<synchronous>, transform_indices = @transform_21, window_bounds = array<i64: 32, 32>}, {pipeline_mode = #tpu.pipeline_mode<synchronous>, transform_indices = @transform_22, window_bounds = array<i64: 1, 32>}, {pipeline_mode = #tpu.pipeline_mode<synchronous>, transform_indices = @transform_23, window_bounds = array<i64: 96, 32>}, {pipeline_mode = #tpu.pipeline_mode<synchronous>, transform_indices = @transform_24, window_bounds = array<i64: 1, 32>}, {pipeline_mode = #tpu.pipeline_mode<synchronous>, transform_indices = @transform_25, window_bounds = array<i64: 32, 32>}, {pipeline_mode = #tpu.pipeline_mode<synchronous>, transform_indices = @transform_26, window_bounds = array<i64: 1, 32>}, {pipeline_mode = #tpu.pipeline_mode<synchronous>, transform_indices = @transform_27, window_bounds = array<i64: 32, 32>}, {pipeline_mode = #tpu.pipeline_mode<synchronous>, transform_indices = @transform_28, window_bounds = array<i64: 1, 32>}, {pipeline_mode = #tpu.pipeline_mode<synchronous>, transform_indices = @transform_29, window_bounds = array<i64: 64, 128>}, {pipeline_mode = #tpu.pipeline_mode<synchronous>, transform_indices = @transform_30, window_bounds = array<i64: 32, 128>}, {pipeline_mode = #tpu.pipeline_mode<synchronous>, transform_indices = @transform_31, window_bounds = array<i64: 1, 128>}, {pipeline_mode = #tpu.pipeline_mode<synchronous>, transform_indices = @transform_32, window_bounds = array<i64: 64, 128>}, {pipeline_mode = #tpu.pipeline_mode<synchronous>, transform_indices = @transform_33, window_bounds = array<i64: 32, 128>}, {pipeline_mode = #tpu.pipeline_mode<synchronous>, transform_indices = @transform_34, window_bounds = array<i64: 1, 128>}, {pipeline_mode = #tpu.pipeline_mode<synchronous>, transform_indices = @transform_35, window_bounds = array<i64: 160, 32>}, {pipeline_mode = #tpu.pipeline_mode<synchronous>, transform_indices = @transform_36, window_bounds = array<i64: 1, 32>}, {pipeline_mode = #tpu.pipeline_mode<synchronous>, transform_indices = @transform_37, window_bounds = array<i64: 32, 16>}, {pipeline_mode = #tpu.pipeline_mode<synchronous>, transform_indices = @transform_38, window_bounds = array<i64: 1, 16>}, {pipeline_mode = #tpu.pipeline_mode<synchronous>, transform_indices = @transform_39, window_bounds = array<i64: 16, 1>}, {pipeline_mode = #tpu.pipeline_mode<synchronous>, transform_indices = @transform_40, window_bounds = array<i64: 1, 1>}, {pipeline_mode = #tpu.pipeline_mode<synchronous>, transform_indices = @transform_41, window_bounds = array<i64: 2, 1>}]} {
    %c0 = arith.constant 0 : index
    %c0_0 = arith.constant 0 : index
    %0 = vector.load %arg6[%c0, %c0_0] : memref<16x32xf32, #tpu.memory_space<vmem>>, vector<16x32xf32>
    %c0_1 = arith.constant 0 : index
    %c0_2 = arith.constant 0 : index
    %1 = vector.load %arg8[%c0_1, %c0_2] : memref<2x32xf32, #tpu.memory_space<vmem>>, vector<2x32xf32>
    %c0_3 = arith.constant 0 : index
    %c0_4 = arith.constant 0 : index
    %2 = vector.load %arg1[%c0_3, %c0_4] : memref<224x1xf32, #tpu.memory_space<vmem>>, vector<224x1xf32>
    %c0_5 = arith.constant 0 : index
    %c0_6 = arith.constant 0 : index
    %3 = vector.load %arg2[%c0_5, %c0_6] : memref<1x32xf32, #tpu.memory_space<vmem>>, vector<1x32xf32>
    %4 = vector.broadcast %2 : vector<224x1xf32> to vector<224x32xf32>
    %5 = vector.broadcast %3 : vector<1x32xf32> to vector<224x32xf32>
    %6 = arith.subf %4, %5 : vector<224x32xf32>
    %cst = arith.constant -13.3472233 : f32
    %7 = vector.broadcast %cst : f32 to vector<224x32xf32>
    %8 = arith.mulf %7, %6 : vector<224x32xf32>
    %9 = arith.mulf %8, %6 : vector<224x32xf32>
    %10 = math.exp %9 : vector<224x32xf32>
    %c0_7 = arith.constant 0 : index
    %c0_8 = arith.constant 0 : index
    %11 = vector.load %arg12[%c0_7, %c0_8] : memref<128x32xbf16, #tpu.memory_space<vmem>>, vector<128x32xbf16>
    %c0_9 = arith.constant 0 : index
    %c0_10 = arith.constant 0 : index
    %12 = vector.load %arg3[%c0_9, %c0_10] : memref<224x32xf32, #tpu.memory_space<vmem>>, vector<224x32xf32>
    %13 = vector.extract_strided_slice %11 {offsets = [0, 0], sizes = [32, 32], strides = [1, 1]} : vector<128x32xbf16> to vector<32x32xbf16>
    %14 = arith.truncf %12 : vector<224x32xf32> to vector<224x32xbf16>
    %cst_11 = arith.constant dense<0.000000e+00> : vector<224x32xf32>
    %15 = tpu.matmul %14, %13, %cst_11 {dimension_numbers = #tpu.dot_dimension_numbers<[1], [0], [0], [1], [0, 0, 1, 1], [], []>} : vector<224x32xbf16>, vector<32x32xbf16>, vector<224x32xf32> -> vector<224x32xf32>
    %c0_12 = arith.constant 0 : index
    %c0_13 = arith.constant 0 : index
    %16 = vector.load %arg4[%c0_12, %c0_13] : memref<224x32xf32, #tpu.memory_space<vmem>>, vector<224x32xf32>
    %17 = vector.extract_strided_slice %11 {offsets = [32, 0], sizes = [32, 32], strides = [1, 1]} : vector<128x32xbf16> to vector<32x32xbf16>
    %18 = arith.truncf %16 : vector<224x32xf32> to vector<224x32xbf16>
    %cst_14 = arith.constant dense<0.000000e+00> : vector<224x32xf32>
    %19 = tpu.matmul %18, %17, %cst_14 {dimension_numbers = #tpu.dot_dimension_numbers<[1], [0], [0], [1], [0, 0, 1, 1], [], []>} : vector<224x32xbf16>, vector<32x32xbf16>, vector<224x32xf32> -> vector<224x32xf32>
    %20 = arith.addf %15, %19 : vector<224x32xf32>
    %21 = vector.extract_strided_slice %11 {offsets = [64, 0], sizes = [32, 32], strides = [1, 1]} : vector<128x32xbf16> to vector<32x32xbf16>
    %22 = arith.truncf %10 : vector<224x32xf32> to vector<224x32xbf16>
    %cst_15 = arith.constant dense<0.000000e+00> : vector<224x32xf32>
    %23 = tpu.matmul %22, %21, %cst_15 {dimension_numbers = #tpu.dot_dimension_numbers<[1], [0], [0], [1], [0, 0, 1, 1], [], []>} : vector<224x32xbf16>, vector<32x32xbf16>, vector<224x32xf32> -> vector<224x32xf32>
    %24 = arith.addf %20, %23 : vector<224x32xf32>
    %c0_16 = arith.constant 0 : index
    %c0_17 = arith.constant 0 : index
    %25 = vector.load %arg5[%c0_16, %c0_17] : memref<224x32xf32, #tpu.memory_space<vmem>>, vector<224x32xf32>
    %26 = vector.extract_strided_slice %11 {offsets = [96, 0], sizes = [32, 32], strides = [1, 1]} : vector<128x32xbf16> to vector<32x32xbf16>
    %27 = arith.truncf %25 : vector<224x32xf32> to vector<224x32xbf16>
    %cst_18 = arith.constant dense<0.000000e+00> : vector<224x32xf32>
    %28 = tpu.matmul %27, %26, %cst_18 {dimension_numbers = #tpu.dot_dimension_numbers<[1], [0], [0], [1], [0, 0, 1, 1], [], []>} : vector<224x32xbf16>, vector<32x32xbf16>, vector<224x32xf32> -> vector<224x32xf32>
    %29 = arith.addf %24, %28 : vector<224x32xf32>
    %c0_19 = arith.constant 0 : index
    %c0_20 = arith.constant 0 : index
    %30 = vector.load %arg13[%c0_19, %c0_20] : memref<1x32xf32, #tpu.memory_space<vmem>>, vector<1x32xf32>
    %31 = vector.broadcast %30 : vector<1x32xf32> to vector<224x32xf32>
    %32 = arith.addf %29, %31 : vector<224x32xf32>
    %c0_21 = arith.constant 0 : index
    %c0_22 = arith.constant 0 : index
    %33 = vector.load %arg14[%c0_21, %c0_22] : memref<32x32xbf16, #tpu.memory_space<vmem>>, vector<32x32xbf16>
    %c0_23 = arith.constant 0 : index
    %c0_24 = arith.constant 0 : index
    %34 = vector.load %arg15[%c0_23, %c0_24] : memref<1x32xf32, #tpu.memory_space<vmem>>, vector<1x32xf32>
    %c0_25 = arith.constant 0 : index
    %c0_26 = arith.constant 0 : index
    %35 = vector.load %arg16[%c0_25, %c0_26] : memref<32x32xbf16, #tpu.memory_space<vmem>>, vector<32x32xbf16>
    %c0_27 = arith.constant 0 : index
    %c0_28 = arith.constant 0 : index
    %36 = vector.load %arg17[%c0_27, %c0_28] : memref<1x32xf32, #tpu.memory_space<vmem>>, vector<1x32xf32>
    %cst_29 = arith.constant 0.000000e+00 : f32
    %37 = vector.broadcast %cst_29 : f32 to vector<224x32xf32>
    %38 = arith.maximumf %32, %37 : vector<224x32xf32>
    %39 = arith.truncf %38 : vector<224x32xf32> to vector<224x32xbf16>
    %cst_30 = arith.constant dense<0.000000e+00> : vector<224x32xf32>
    %40 = tpu.matmul %39, %33, %cst_30 {dimension_numbers = #tpu.dot_dimension_numbers<[1], [0], [0], [1], [0, 0, 1, 1], [], []>} : vector<224x32xbf16>, vector<32x32xbf16>, vector<224x32xf32> -> vector<224x32xf32>
    %41 = vector.broadcast %34 : vector<1x32xf32> to vector<224x32xf32>
    %42 = arith.addf %40, %41 : vector<224x32xf32>
    %cst_31 = arith.constant 0.000000e+00 : f32
    %43 = vector.broadcast %cst_31 : f32 to vector<224x32xf32>
    %44 = arith.maximumf %42, %43 : vector<224x32xf32>
    %45 = arith.truncf %44 : vector<224x32xf32> to vector<224x32xbf16>
    %cst_32 = arith.constant dense<0.000000e+00> : vector<224x32xf32>
    %46 = tpu.matmul %45, %35, %cst_32 {dimension_numbers = #tpu.dot_dimension_numbers<[1], [0], [0], [1], [0, 0, 1, 1], [], []>} : vector<224x32xbf16>, vector<32x32xbf16>, vector<224x32xf32> -> vector<224x32xf32>
    %47 = vector.broadcast %36 : vector<1x32xf32> to vector<224x32xf32>
    %48 = arith.addf %46, %47 : vector<224x32xf32>
    %49 = tpu.iota {dimensions = array<i32: 0>} : vector<16x224xi32>
    %c0_33 = arith.constant 0 : index
    %c0_34 = arith.constant 0 : index
    %50 = vector.load %arg9[%c0_33, %c0_34] : memref<1x224xi32, #tpu.memory_space<vmem>>, vector<1x224xi32>
    %51 = vector.broadcast %50 : vector<1x224xi32> to vector<16x224xi32>
    %52 = arith.cmpi eq, %49, %51 : vector<16x224xi32>
    %53 = arith.extui %52 : vector<16x224xi1> to vector<16x224xi32>
    %54 = arith.sitofp %53 : vector<16x224xi32> to vector<16x224xf32>
    %55 = tpu.iota {dimensions = array<i32: 0>} : vector<2x16xi32>
    %c0_35 = arith.constant 0 : index
    %c0_36 = arith.constant 0 : index
    %56 = vector.load %arg11[%c0_35, %c0_36] : memref<1x16xi32, #tpu.memory_space<vmem>>, vector<1x16xi32>
    %57 = vector.broadcast %56 : vector<1x16xi32> to vector<2x16xi32>
    %58 = arith.cmpi eq, %55, %57 : vector<2x16xi32>
    %59 = tpu.iota {dimensions = array<i32: 0>} : vector<2x224xi32>
    %c0_37 = arith.constant 0 : index
    %c0_38 = arith.constant 0 : index
    %60 = vector.load %arg10[%c0_37, %c0_38] : memref<1x224xi32, #tpu.memory_space<vmem>>, vector<1x224xi32>
    %61 = vector.broadcast %60 : vector<1x224xi32> to vector<2x224xi32>
    %62 = arith.cmpi eq, %59, %61 : vector<2x224xi32>
    %cst_39 = arith.constant dense<0.000000e+00> : vector<16xf32>
    %63 = vector.multi_reduction <add>, %54, %cst_39 [1] : vector<16x224xf32> to vector<16xf32>
    %64 = vector.shape_cast %63 : vector<16xf32> to vector<16x1xf32>
    %cst_40 = arith.constant 1.000000e+00 : f32
    %65 = vector.broadcast %cst_40 : f32 to vector<16x1xf32>
    %66 = arith.maximumf %64, %65 : vector<16x1xf32>
    %67 = arith.truncf %54 : vector<16x224xf32> to vector<16x224xbf16>
    %68 = arith.truncf %48 : vector<224x32xf32> to vector<224x32xbf16>
    %cst_41 = arith.constant dense<0.000000e+00> : vector<16x32xf32>
    %69 = tpu.matmul %67, %68, %cst_41 {dimension_numbers = #tpu.dot_dimension_numbers<[1], [0], [0], [1], [0, 0, 1, 1], [], []>} : vector<16x224xbf16>, vector<224x32xbf16>, vector<16x32xf32> -> vector<16x32xf32>
    %70 = vector.broadcast %66 : vector<16x1xf32> to vector<16x32xf32>
    %71 = arith.divf %69, %70 : vector<16x32xf32>
    %c0_42 = arith.constant 0 : index
    %c0_43 = arith.constant 0 : index
    %72 = vector.load %arg18[%c0_42, %c0_43] : memref<96x32xbf16, #tpu.memory_space<vmem>>, vector<96x32xbf16>
    %73 = vector.extract_strided_slice %72 {offsets = [0, 0], sizes = [32, 32], strides = [1, 1]} : vector<96x32xbf16> to vector<32x32xbf16>
    %74 = arith.truncf %0 : vector<16x32xf32> to vector<16x32xbf16>
    %cst_44 = arith.constant dense<0.000000e+00> : vector<16x32xf32>
    %75 = tpu.matmul %74, %73, %cst_44 {dimension_numbers = #tpu.dot_dimension_numbers<[1], [0], [0], [1], [0, 0, 1, 1], [], []>} : vector<16x32xbf16>, vector<32x32xbf16>, vector<16x32xf32> -> vector<16x32xf32>
    %76 = vector.extract_strided_slice %72 {offsets = [32, 0], sizes = [32, 32], strides = [1, 1]} : vector<96x32xbf16> to vector<32x32xbf16>
    %77 = arith.truncf %71 : vector<16x32xf32> to vector<16x32xbf16>
    %cst_45 = arith.constant dense<0.000000e+00> : vector<16x32xf32>
    %78 = tpu.matmul %77, %76, %cst_45 {dimension_numbers = #tpu.dot_dimension_numbers<[1], [0], [0], [1], [0, 0, 1, 1], [], []>} : vector<16x32xbf16>, vector<32x32xbf16>, vector<16x32xf32> -> vector<16x32xf32>
    %79 = arith.addf %75, %78 : vector<16x32xf32>
    %c0_46 = arith.constant 0 : index
    %c0_47 = arith.constant 0 : index
    %80 = vector.load %arg7[%c0_46, %c0_47] : memref<16x32xf32, #tpu.memory_space<vmem>>, vector<16x32xf32>
    %81 = vector.extract_strided_slice %72 {offsets = [64, 0], sizes = [32, 32], strides = [1, 1]} : vector<96x32xbf16> to vector<32x32xbf16>
    %82 = arith.truncf %80 : vector<16x32xf32> to vector<16x32xbf16>
    %cst_48 = arith.constant dense<0.000000e+00> : vector<16x32xf32>
    %83 = tpu.matmul %82, %81, %cst_48 {dimension_numbers = #tpu.dot_dimension_numbers<[1], [0], [0], [1], [0, 0, 1, 1], [], []>} : vector<16x32xbf16>, vector<32x32xbf16>, vector<16x32xf32> -> vector<16x32xf32>
    %84 = arith.addf %79, %83 : vector<16x32xf32>
    %c0_49 = arith.constant 0 : index
    %c0_50 = arith.constant 0 : index
    %85 = vector.load %arg19[%c0_49, %c0_50] : memref<1x32xf32, #tpu.memory_space<vmem>>, vector<1x32xf32>
    %86 = vector.broadcast %85 : vector<1x32xf32> to vector<16x32xf32>
    %87 = arith.addf %84, %86 : vector<16x32xf32>
    %c0_51 = arith.constant 0 : index
    %c0_52 = arith.constant 0 : index
    %88 = vector.load %arg20[%c0_51, %c0_52] : memref<32x32xbf16, #tpu.memory_space<vmem>>, vector<32x32xbf16>
    %c0_53 = arith.constant 0 : index
    %c0_54 = arith.constant 0 : index
    %89 = vector.load %arg21[%c0_53, %c0_54] : memref<1x32xf32, #tpu.memory_space<vmem>>, vector<1x32xf32>
    %c0_55 = arith.constant 0 : index
    %c0_56 = arith.constant 0 : index
    %90 = vector.load %arg22[%c0_55, %c0_56] : memref<32x32xbf16, #tpu.memory_space<vmem>>, vector<32x32xbf16>
    %c0_57 = arith.constant 0 : index
    %c0_58 = arith.constant 0 : index
    %91 = vector.load %arg23[%c0_57, %c0_58] : memref<1x32xf32, #tpu.memory_space<vmem>>, vector<1x32xf32>
    %cst_59 = arith.constant 0.000000e+00 : f32
    %92 = vector.broadcast %cst_59 : f32 to vector<16x32xf32>
    %93 = arith.maximumf %87, %92 : vector<16x32xf32>
    %94 = arith.truncf %93 : vector<16x32xf32> to vector<16x32xbf16>
    %cst_60 = arith.constant dense<0.000000e+00> : vector<16x32xf32>
    %95 = tpu.matmul %94, %88, %cst_60 {dimension_numbers = #tpu.dot_dimension_numbers<[1], [0], [0], [1], [0, 0, 1, 1], [], []>} : vector<16x32xbf16>, vector<32x32xbf16>, vector<16x32xf32> -> vector<16x32xf32>
    %96 = vector.broadcast %89 : vector<1x32xf32> to vector<16x32xf32>
    %97 = arith.addf %95, %96 : vector<16x32xf32>
    %cst_61 = arith.constant 0.000000e+00 : f32
    %98 = vector.broadcast %cst_61 : f32 to vector<16x32xf32>
    %99 = arith.maximumf %97, %98 : vector<16x32xf32>
    %100 = arith.truncf %99 : vector<16x32xf32> to vector<16x32xbf16>
    %cst_62 = arith.constant dense<0.000000e+00> : vector<16x32xf32>
    %101 = tpu.matmul %100, %90, %cst_62 {dimension_numbers = #tpu.dot_dimension_numbers<[1], [0], [0], [1], [0, 0, 1, 1], [], []>} : vector<16x32xbf16>, vector<32x32xbf16>, vector<16x32xf32> -> vector<16x32xf32>
    %102 = vector.broadcast %91 : vector<1x32xf32> to vector<16x32xf32>
    %103 = arith.addf %101, %102 : vector<16x32xf32>
    %104 = arith.extui %62 : vector<2x224xi1> to vector<2x224xi32>
    %105 = arith.sitofp %104 : vector<2x224xi32> to vector<2x224xf32>
    %cst_63 = arith.constant dense<0.000000e+00> : vector<2xf32>
    %106 = vector.multi_reduction <add>, %105, %cst_63 [1] : vector<2x224xf32> to vector<2xf32>
    %107 = vector.shape_cast %106 : vector<2xf32> to vector<2x1xf32>
    %cst_64 = arith.constant 1.000000e+00 : f32
    %108 = vector.broadcast %cst_64 : f32 to vector<2x1xf32>
    %109 = arith.maximumf %107, %108 : vector<2x1xf32>
    %110 = arith.truncf %105 : vector<2x224xf32> to vector<2x224xbf16>
    %111 = arith.truncf %48 : vector<224x32xf32> to vector<224x32xbf16>
    %cst_65 = arith.constant dense<0.000000e+00> : vector<2x32xf32>
    %112 = tpu.matmul %110, %111, %cst_65 {dimension_numbers = #tpu.dot_dimension_numbers<[1], [0], [0], [1], [0, 0, 1, 1], [], []>} : vector<2x224xbf16>, vector<224x32xbf16>, vector<2x32xf32> -> vector<2x32xf32>
    %113 = vector.broadcast %109 : vector<2x1xf32> to vector<2x32xf32>
    %114 = arith.divf %112, %113 : vector<2x32xf32>
    %115 = arith.extui %58 : vector<2x16xi1> to vector<2x16xi32>
    %116 = arith.sitofp %115 : vector<2x16xi32> to vector<2x16xf32>
    %cst_66 = arith.constant dense<0.000000e+00> : vector<2xf32>
    %117 = vector.multi_reduction <add>, %116, %cst_66 [1] : vector<2x16xf32> to vector<2xf32>
    %118 = vector.shape_cast %117 : vector<2xf32> to vector<2x1xf32>
    %cst_67 = arith.constant 1.000000e+00 : f32
    %119 = vector.broadcast %cst_67 : f32 to vector<2x1xf32>
    %120 = arith.maximumf %118, %119 : vector<2x1xf32>
    %121 = arith.truncf %116 : vector<2x16xf32> to vector<2x16xbf16>
    %122 = arith.truncf %103 : vector<16x32xf32> to vector<16x32xbf16>
    %cst_68 = arith.constant dense<0.000000e+00> : vector<2x32xf32>
    %123 = tpu.matmul %121, %122, %cst_68 {dimension_numbers = #tpu.dot_dimension_numbers<[1], [0], [0], [1], [0, 0, 1, 1], [], []>} : vector<2x16xbf16>, vector<16x32xbf16>, vector<2x32xf32> -> vector<2x32xf32>
    %124 = vector.broadcast %120 : vector<2x1xf32> to vector<2x32xf32>
    %125 = arith.divf %123, %124 : vector<2x32xf32>
    %c0_69 = arith.constant 0 : index
    %c0_70 = arith.constant 0 : index
    %126 = vector.load %arg24[%c0_69, %c0_70] : memref<96x32xbf16, #tpu.memory_space<vmem>>, vector<96x32xbf16>
    %127 = vector.extract_strided_slice %126 {offsets = [0, 0], sizes = [32, 32], strides = [1, 1]} : vector<96x32xbf16> to vector<32x32xbf16>
    %128 = arith.truncf %114 : vector<2x32xf32> to vector<2x32xbf16>
    %cst_71 = arith.constant dense<0.000000e+00> : vector<2x32xf32>
    %129 = tpu.matmul %128, %127, %cst_71 {dimension_numbers = #tpu.dot_dimension_numbers<[1], [0], [0], [1], [0, 0, 1, 1], [], []>} : vector<2x32xbf16>, vector<32x32xbf16>, vector<2x32xf32> -> vector<2x32xf32>
    %130 = vector.extract_strided_slice %126 {offsets = [32, 0], sizes = [32, 32], strides = [1, 1]} : vector<96x32xbf16> to vector<32x32xbf16>
    %131 = arith.truncf %125 : vector<2x32xf32> to vector<2x32xbf16>
    %cst_72 = arith.constant dense<0.000000e+00> : vector<2x32xf32>
    %132 = tpu.matmul %131, %130, %cst_72 {dimension_numbers = #tpu.dot_dimension_numbers<[1], [0], [0], [1], [0, 0, 1, 1], [], []>} : vector<2x32xbf16>, vector<32x32xbf16>, vector<2x32xf32> -> vector<2x32xf32>
    %133 = arith.addf %129, %132 : vector<2x32xf32>
    %134 = vector.extract_strided_slice %126 {offsets = [64, 0], sizes = [32, 32], strides = [1, 1]} : vector<96x32xbf16> to vector<32x32xbf16>
    %135 = arith.truncf %1 : vector<2x32xf32> to vector<2x32xbf16>
    %cst_73 = arith.constant dense<0.000000e+00> : vector<2x32xf32>
    %136 = tpu.matmul %135, %134, %cst_73 {dimension_numbers = #tpu.dot_dimension_numbers<[1], [0], [0], [1], [0, 0, 1, 1], [], []>} : vector<2x32xbf16>, vector<32x32xbf16>, vector<2x32xf32> -> vector<2x32xf32>
    %137 = arith.addf %133, %136 : vector<2x32xf32>
    %c0_74 = arith.constant 0 : index
    %c0_75 = arith.constant 0 : index
    %138 = vector.load %arg25[%c0_74, %c0_75] : memref<1x32xf32, #tpu.memory_space<vmem>>, vector<1x32xf32>
    %139 = vector.broadcast %138 : vector<1x32xf32> to vector<2x32xf32>
    %140 = arith.addf %137, %139 : vector<2x32xf32>
    %c0_76 = arith.constant 0 : index
    %c0_77 = arith.constant 0 : index
    %141 = vector.load %arg26[%c0_76, %c0_77] : memref<32x32xbf16, #tpu.memory_space<vmem>>, vector<32x32xbf16>
    %c0_78 = arith.constant 0 : index
    %c0_79 = arith.constant 0 : index
    %142 = vector.load %arg27[%c0_78, %c0_79] : memref<1x32xf32, #tpu.memory_space<vmem>>, vector<1x32xf32>
    %c0_80 = arith.constant 0 : index
    %c0_81 = arith.constant 0 : index
    %143 = vector.load %arg28[%c0_80, %c0_81] : memref<32x32xbf16, #tpu.memory_space<vmem>>, vector<32x32xbf16>
    %c0_82 = arith.constant 0 : index
    %c0_83 = arith.constant 0 : index
    %144 = vector.load %arg29[%c0_82, %c0_83] : memref<1x32xf32, #tpu.memory_space<vmem>>, vector<1x32xf32>
    %cst_84 = arith.constant 0.000000e+00 : f32
    %145 = vector.broadcast %cst_84 : f32 to vector<2x32xf32>
    %146 = arith.maximumf %140, %145 : vector<2x32xf32>
    %147 = arith.truncf %146 : vector<2x32xf32> to vector<2x32xbf16>
    %cst_85 = arith.constant dense<0.000000e+00> : vector<2x32xf32>
    %148 = tpu.matmul %147, %141, %cst_85 {dimension_numbers = #tpu.dot_dimension_numbers<[1], [0], [0], [1], [0, 0, 1, 1], [], []>} : vector<2x32xbf16>, vector<32x32xbf16>, vector<2x32xf32> -> vector<2x32xf32>
    %149 = vector.broadcast %142 : vector<1x32xf32> to vector<2x32xf32>
    %150 = arith.addf %148, %149 : vector<2x32xf32>
    %cst_86 = arith.constant 0.000000e+00 : f32
    %151 = vector.broadcast %cst_86 : f32 to vector<2x32xf32>
    %152 = arith.maximumf %150, %151 : vector<2x32xf32>
    %153 = arith.truncf %152 : vector<2x32xf32> to vector<2x32xbf16>
    %cst_87 = arith.constant dense<0.000000e+00> : vector<2x32xf32>
    %154 = tpu.matmul %153, %143, %cst_87 {dimension_numbers = #tpu.dot_dimension_numbers<[1], [0], [0], [1], [0, 0, 1, 1], [], []>} : vector<2x32xbf16>, vector<32x32xbf16>, vector<2x32xf32> -> vector<2x32xf32>
    %155 = vector.broadcast %144 : vector<1x32xf32> to vector<2x32xf32>
    %156 = arith.addf %154, %155 : vector<2x32xf32>
    %157 = arith.addf %103, %0 : vector<16x32xf32>
    %158 = vector.extract_strided_slice %48 {offsets = [0, 0], sizes = [112, 32], strides = [1, 1]} : vector<224x32xf32> to vector<112x32xf32>
    %159 = vector.extract_strided_slice %10 {offsets = [0, 0], sizes = [112, 32], strides = [1, 1]} : vector<224x32xf32> to vector<112x32xf32>
    %160 = arith.addf %158, %159 : vector<112x32xf32>
    %161 = arith.addf %156, %1 : vector<2x32xf32>
    %162 = vector.extract_strided_slice %62 {offsets = [0, 0], sizes = [2, 112], strides = [1, 1]} : vector<2x224xi1> to vector<2x112xi1>
    %c0_88 = arith.constant 0 : index
    %c0_89 = arith.constant 0 : index
    %163 = vector.load %arg30[%c0_88, %c0_89] : memref<64x128xbf16, #tpu.memory_space<vmem>>, vector<64x128xbf16>
    %c0_90 = arith.constant 0 : index
    %c0_91 = arith.constant 0 : index
    %164 = vector.load %arg31[%c0_90, %c0_91] : memref<32x128xbf16, #tpu.memory_space<vmem>>, vector<32x128xbf16>
    %c0_92 = arith.constant 0 : index
    %c0_93 = arith.constant 0 : index
    %165 = vector.load %arg32[%c0_92, %c0_93] : memref<1x128xf32, #tpu.memory_space<vmem>>, vector<1x128xf32>
    %cst_94 = arith.constant 0.000000e+00 : f32
    %166 = vector.broadcast %cst_94 : f32 to vector<2x32xf32>
    %cst_95 = arith.constant 0.000000e+00 : f32
    %167 = vector.broadcast %cst_95 : f32 to vector<2x32xf32>
    %cst_96 = arith.constant 0.000000e+00 : f32
    %168 = vector.broadcast %cst_96 : f32 to vector<2x32xf32>
    %cst_97 = arith.constant 0.000000e+00 : f32
    %169 = vector.broadcast %cst_97 : f32 to vector<2x32xf32>
    %170 = vector.extract_strided_slice %163 {offsets = [0, 0], sizes = [32, 128], strides = [1, 1]} : vector<64x128xbf16> to vector<32x128xbf16>
    %171 = arith.truncf %168 : vector<2x32xf32> to vector<2x32xbf16>
    %cst_98 = arith.constant dense<0.000000e+00> : vector<2x128xf32>
    %172 = tpu.matmul %171, %170, %cst_98 {dimension_numbers = #tpu.dot_dimension_numbers<[1], [0], [0], [1], [0, 0, 1, 1], [], []>} : vector<2x32xbf16>, vector<32x128xbf16>, vector<2x128xf32> -> vector<2x128xf32>
    %173 = vector.extract_strided_slice %163 {offsets = [32, 0], sizes = [32, 128], strides = [1, 1]} : vector<64x128xbf16> to vector<32x128xbf16>
    %174 = arith.truncf %169 : vector<2x32xf32> to vector<2x32xbf16>
    %cst_99 = arith.constant dense<0.000000e+00> : vector<2x128xf32>
    %175 = tpu.matmul %174, %173, %cst_99 {dimension_numbers = #tpu.dot_dimension_numbers<[1], [0], [0], [1], [0, 0, 1, 1], [], []>} : vector<2x32xbf16>, vector<32x128xbf16>, vector<2x128xf32> -> vector<2x128xf32>
    %176 = arith.addf %172, %175 : vector<2x128xf32>
    %177 = arith.truncf %166 : vector<2x32xf32> to vector<2x32xbf16>
    %cst_100 = arith.constant dense<0.000000e+00> : vector<2x128xf32>
    %178 = tpu.matmul %177, %164, %cst_100 {dimension_numbers = #tpu.dot_dimension_numbers<[1], [0], [0], [1], [0, 0, 1, 1], [], []>} : vector<2x32xbf16>, vector<32x128xbf16>, vector<2x128xf32> -> vector<2x128xf32>
    %179 = arith.addf %176, %178 : vector<2x128xf32>
    %180 = vector.broadcast %165 : vector<1x128xf32> to vector<2x128xf32>
    %181 = arith.addf %179, %180 : vector<2x128xf32>
    %182 = vector.extract_strided_slice %181 {offsets = [0, 0], sizes = [2, 32], strides = [1, 1]} : vector<2x128xf32> to vector<2x32xf32>
    %183 = arith.negf %182 : vector<2x32xf32>
    %184 = math.exp %183 : vector<2x32xf32>
    %cst_101 = arith.constant 1.000000e+00 : f32
    %185 = vector.broadcast %cst_101 : f32 to vector<2x32xf32>
    %186 = arith.addf %185, %184 : vector<2x32xf32>
    %187 = arith.divf %185, %186 : vector<2x32xf32>
    %188 = vector.extract_strided_slice %181 {offsets = [0, 32], sizes = [2, 32], strides = [1, 1]} : vector<2x128xf32> to vector<2x32xf32>
    %189 = arith.negf %188 : vector<2x32xf32>
    %190 = math.exp %189 : vector<2x32xf32>
    %cst_102 = arith.constant 1.000000e+00 : f32
    %191 = vector.broadcast %cst_102 : f32 to vector<2x32xf32>
    %192 = arith.addf %191, %190 : vector<2x32xf32>
    %193 = arith.divf %191, %192 : vector<2x32xf32>
    %194 = vector.extract_strided_slice %181 {offsets = [0, 64], sizes = [2, 32], strides = [1, 1]} : vector<2x128xf32> to vector<2x32xf32>
    %195 = math.tanh %194 : vector<2x32xf32>
    %196 = vector.extract_strided_slice %181 {offsets = [0, 96], sizes = [2, 32], strides = [1, 1]} : vector<2x128xf32> to vector<2x32xf32>
    %197 = arith.negf %196 : vector<2x32xf32>
    %198 = math.exp %197 : vector<2x32xf32>
    %cst_103 = arith.constant 1.000000e+00 : f32
    %199 = vector.broadcast %cst_103 : f32 to vector<2x32xf32>
    %200 = arith.addf %199, %198 : vector<2x32xf32>
    %201 = arith.divf %199, %200 : vector<2x32xf32>
    %202 = arith.mulf %193, %167 : vector<2x32xf32>
    %203 = arith.mulf %187, %195 : vector<2x32xf32>
    %204 = arith.addf %202, %203 : vector<2x32xf32>
    %205 = math.tanh %204 : vector<2x32xf32>
    %206 = arith.mulf %201, %205 : vector<2x32xf32>
    %207 = arith.truncf %206 : vector<2x32xf32> to vector<2x32xbf16>
    %208 = arith.truncf %157 : vector<16x32xf32> to vector<16x32xbf16>
    %cst_104 = arith.constant dense<0.000000e+00> : vector<2x16xf32>
    %209 = tpu.matmul %207, %208, %cst_104 {dimension_numbers = #tpu.dot_dimension_numbers<[1], [1], [0], [0], [0, 0, 1, 0], [], []>} : vector<2x32xbf16>, vector<16x32xbf16>, vector<2x16xf32> -> vector<2x16xf32>
    %cst_105 = arith.constant -1.000000e+30 : f32
    %210 = vector.broadcast %cst_105 : f32 to vector<2x16xf32>
    %211 = arith.select %58, %209, %210 : vector<2x16xi1>, vector<2x16xf32>
    %cst_106 = arith.constant dense<0xFF800000> : vector<2xf32>
    %212 = vector.multi_reduction <maximumf>, %211, %cst_106 [1] : vector<2x16xf32> to vector<2xf32>
    %213 = vector.shape_cast %212 : vector<2xf32> to vector<2x1xf32>
    %214 = vector.broadcast %213 : vector<2x1xf32> to vector<2x16xf32>
    %215 = arith.subf %211, %214 : vector<2x16xf32>
    %216 = math.exp %215 : vector<2x16xf32>
    %cst_107 = arith.constant 0.000000e+00 : f32
    %217 = vector.broadcast %cst_107 : f32 to vector<2x16xf32>
    %218 = arith.select %58, %216, %217 : vector<2x16xi1>, vector<2x16xf32>
    %cst_108 = arith.constant dense<0.000000e+00> : vector<2xf32>
    %219 = vector.multi_reduction <add>, %218, %cst_108 [1] : vector<2x16xf32> to vector<2xf32>
    %220 = vector.shape_cast %219 : vector<2xf32> to vector<2x1xf32>
    %cst_109 = arith.constant 9.99999968E-21 : f32
    %221 = vector.broadcast %cst_109 : f32 to vector<2x1xf32>
    %222 = arith.maximumf %220, %221 : vector<2x1xf32>
    %223 = tpu.reciprocal %222 {approx = true} : vector<2x1xf32> -> vector<2x1xf32>
    %224 = vector.broadcast %223 : vector<2x1xf32> to vector<2x16xf32>
    %225 = arith.mulf %218, %224 : vector<2x16xf32>
    %226 = arith.truncf %225 : vector<2x16xf32> to vector<2x16xbf16>
    %227 = arith.truncf %157 : vector<16x32xf32> to vector<16x32xbf16>
    %cst_110 = arith.constant dense<0.000000e+00> : vector<2x32xf32>
    %228 = tpu.matmul %226, %227, %cst_110 {dimension_numbers = #tpu.dot_dimension_numbers<[1], [0], [0], [1], [0, 0, 1, 1], [], []>} : vector<2x16xbf16>, vector<16x32xbf16>, vector<2x32xf32> -> vector<2x32xf32>
    %229 = vector.extract_strided_slice %163 {offsets = [0, 0], sizes = [32, 128], strides = [1, 1]} : vector<64x128xbf16> to vector<32x128xbf16>
    %230 = arith.truncf %206 : vector<2x32xf32> to vector<2x32xbf16>
    %cst_111 = arith.constant dense<0.000000e+00> : vector<2x128xf32>
    %231 = tpu.matmul %230, %229, %cst_111 {dimension_numbers = #tpu.dot_dimension_numbers<[1], [0], [0], [1], [0, 0, 1, 1], [], []>} : vector<2x32xbf16>, vector<32x128xbf16>, vector<2x128xf32> -> vector<2x128xf32>
    %232 = vector.extract_strided_slice %163 {offsets = [32, 0], sizes = [32, 128], strides = [1, 1]} : vector<64x128xbf16> to vector<32x128xbf16>
    %233 = arith.truncf %228 : vector<2x32xf32> to vector<2x32xbf16>
    %cst_112 = arith.constant dense<0.000000e+00> : vector<2x128xf32>
    %234 = tpu.matmul %233, %232, %cst_112 {dimension_numbers = #tpu.dot_dimension_numbers<[1], [0], [0], [1], [0, 0, 1, 1], [], []>} : vector<2x32xbf16>, vector<32x128xbf16>, vector<2x128xf32> -> vector<2x128xf32>
    %235 = arith.addf %231, %234 : vector<2x128xf32>
    %236 = arith.truncf %206 : vector<2x32xf32> to vector<2x32xbf16>
    %cst_113 = arith.constant dense<0.000000e+00> : vector<2x128xf32>
    %237 = tpu.matmul %236, %164, %cst_113 {dimension_numbers = #tpu.dot_dimension_numbers<[1], [0], [0], [1], [0, 0, 1, 1], [], []>} : vector<2x32xbf16>, vector<32x128xbf16>, vector<2x128xf32> -> vector<2x128xf32>
    %238 = arith.addf %235, %237 : vector<2x128xf32>
    %239 = vector.broadcast %165 : vector<1x128xf32> to vector<2x128xf32>
    %240 = arith.addf %238, %239 : vector<2x128xf32>
    %241 = vector.extract_strided_slice %240 {offsets = [0, 0], sizes = [2, 32], strides = [1, 1]} : vector<2x128xf32> to vector<2x32xf32>
    %242 = arith.negf %241 : vector<2x32xf32>
    %243 = math.exp %242 : vector<2x32xf32>
    %cst_114 = arith.constant 1.000000e+00 : f32
    %244 = vector.broadcast %cst_114 : f32 to vector<2x32xf32>
    %245 = arith.addf %244, %243 : vector<2x32xf32>
    %246 = arith.divf %244, %245 : vector<2x32xf32>
    %247 = vector.extract_strided_slice %240 {offsets = [0, 32], sizes = [2, 32], strides = [1, 1]} : vector<2x128xf32> to vector<2x32xf32>
    %248 = arith.negf %247 : vector<2x32xf32>
    %249 = math.exp %248 : vector<2x32xf32>
    %cst_115 = arith.constant 1.000000e+00 : f32
    %250 = vector.broadcast %cst_115 : f32 to vector<2x32xf32>
    %251 = arith.addf %250, %249 : vector<2x32xf32>
    %252 = arith.divf %250, %251 : vector<2x32xf32>
    %253 = vector.extract_strided_slice %240 {offsets = [0, 64], sizes = [2, 32], strides = [1, 1]} : vector<2x128xf32> to vector<2x32xf32>
    %254 = math.tanh %253 : vector<2x32xf32>
    %255 = vector.extract_strided_slice %240 {offsets = [0, 96], sizes = [2, 32], strides = [1, 1]} : vector<2x128xf32> to vector<2x32xf32>
    %256 = arith.negf %255 : vector<2x32xf32>
    %257 = math.exp %256 : vector<2x32xf32>
    %cst_116 = arith.constant 1.000000e+00 : f32
    %258 = vector.broadcast %cst_116 : f32 to vector<2x32xf32>
    %259 = arith.addf %258, %257 : vector<2x32xf32>
    %260 = arith.divf %258, %259 : vector<2x32xf32>
    %261 = arith.mulf %252, %204 : vector<2x32xf32>
    %262 = arith.mulf %246, %254 : vector<2x32xf32>
    %263 = arith.addf %261, %262 : vector<2x32xf32>
    %264 = math.tanh %263 : vector<2x32xf32>
    %265 = arith.mulf %260, %264 : vector<2x32xf32>
    %266 = arith.truncf %265 : vector<2x32xf32> to vector<2x32xbf16>
    %267 = arith.truncf %157 : vector<16x32xf32> to vector<16x32xbf16>
    %cst_117 = arith.constant dense<0.000000e+00> : vector<2x16xf32>
    %268 = tpu.matmul %266, %267, %cst_117 {dimension_numbers = #tpu.dot_dimension_numbers<[1], [1], [0], [0], [0, 0, 1, 0], [], []>} : vector<2x32xbf16>, vector<16x32xbf16>, vector<2x16xf32> -> vector<2x16xf32>
    %cst_118 = arith.constant -1.000000e+30 : f32
    %269 = vector.broadcast %cst_118 : f32 to vector<2x16xf32>
    %270 = arith.select %58, %268, %269 : vector<2x16xi1>, vector<2x16xf32>
    %cst_119 = arith.constant dense<0xFF800000> : vector<2xf32>
    %271 = vector.multi_reduction <maximumf>, %270, %cst_119 [1] : vector<2x16xf32> to vector<2xf32>
    %272 = vector.shape_cast %271 : vector<2xf32> to vector<2x1xf32>
    %273 = vector.broadcast %272 : vector<2x1xf32> to vector<2x16xf32>
    %274 = arith.subf %270, %273 : vector<2x16xf32>
    %275 = math.exp %274 : vector<2x16xf32>
    %cst_120 = arith.constant 0.000000e+00 : f32
    %276 = vector.broadcast %cst_120 : f32 to vector<2x16xf32>
    %277 = arith.select %58, %275, %276 : vector<2x16xi1>, vector<2x16xf32>
    %cst_121 = arith.constant dense<0.000000e+00> : vector<2xf32>
    %278 = vector.multi_reduction <add>, %277, %cst_121 [1] : vector<2x16xf32> to vector<2xf32>
    %279 = vector.shape_cast %278 : vector<2xf32> to vector<2x1xf32>
    %cst_122 = arith.constant 9.99999968E-21 : f32
    %280 = vector.broadcast %cst_122 : f32 to vector<2x1xf32>
    %281 = arith.maximumf %279, %280 : vector<2x1xf32>
    %282 = tpu.reciprocal %281 {approx = true} : vector<2x1xf32> -> vector<2x1xf32>
    %283 = vector.broadcast %282 : vector<2x1xf32> to vector<2x16xf32>
    %284 = arith.mulf %277, %283 : vector<2x16xf32>
    %285 = arith.truncf %284 : vector<2x16xf32> to vector<2x16xbf16>
    %286 = arith.truncf %157 : vector<16x32xf32> to vector<16x32xbf16>
    %cst_123 = arith.constant dense<0.000000e+00> : vector<2x32xf32>
    %287 = tpu.matmul %285, %286, %cst_123 {dimension_numbers = #tpu.dot_dimension_numbers<[1], [0], [0], [1], [0, 0, 1, 1], [], []>} : vector<2x16xbf16>, vector<16x32xbf16>, vector<2x32xf32> -> vector<2x32xf32>
    %288 = vector.extract_strided_slice %163 {offsets = [0, 0], sizes = [32, 128], strides = [1, 1]} : vector<64x128xbf16> to vector<32x128xbf16>
    %289 = arith.truncf %265 : vector<2x32xf32> to vector<2x32xbf16>
    %cst_124 = arith.constant dense<0.000000e+00> : vector<2x128xf32>
    %290 = tpu.matmul %289, %288, %cst_124 {dimension_numbers = #tpu.dot_dimension_numbers<[1], [0], [0], [1], [0, 0, 1, 1], [], []>} : vector<2x32xbf16>, vector<32x128xbf16>, vector<2x128xf32> -> vector<2x128xf32>
    %291 = vector.extract_strided_slice %163 {offsets = [32, 0], sizes = [32, 128], strides = [1, 1]} : vector<64x128xbf16> to vector<32x128xbf16>
    %292 = arith.truncf %287 : vector<2x32xf32> to vector<2x32xbf16>
    %cst_125 = arith.constant dense<0.000000e+00> : vector<2x128xf32>
    %293 = tpu.matmul %292, %291, %cst_125 {dimension_numbers = #tpu.dot_dimension_numbers<[1], [0], [0], [1], [0, 0, 1, 1], [], []>} : vector<2x32xbf16>, vector<32x128xbf16>, vector<2x128xf32> -> vector<2x128xf32>
    %294 = arith.addf %290, %293 : vector<2x128xf32>
    %295 = arith.truncf %265 : vector<2x32xf32> to vector<2x32xbf16>
    %cst_126 = arith.constant dense<0.000000e+00> : vector<2x128xf32>
    %296 = tpu.matmul %295, %164, %cst_126 {dimension_numbers = #tpu.dot_dimension_numbers<[1], [0], [0], [1], [0, 0, 1, 1], [], []>} : vector<2x32xbf16>, vector<32x128xbf16>, vector<2x128xf32> -> vector<2x128xf32>
    %297 = arith.addf %294, %296 : vector<2x128xf32>
    %298 = vector.broadcast %165 : vector<1x128xf32> to vector<2x128xf32>
    %299 = arith.addf %297, %298 : vector<2x128xf32>
    %300 = vector.extract_strided_slice %299 {offsets = [0, 0], sizes = [2, 32], strides = [1, 1]} : vector<2x128xf32> to vector<2x32xf32>
    %301 = arith.negf %300 : vector<2x32xf32>
    %302 = math.exp %301 : vector<2x32xf32>
    %cst_127 = arith.constant 1.000000e+00 : f32
    %303 = vector.broadcast %cst_127 : f32 to vector<2x32xf32>
    %304 = arith.addf %303, %302 : vector<2x32xf32>
    %305 = arith.divf %303, %304 : vector<2x32xf32>
    %306 = vector.extract_strided_slice %299 {offsets = [0, 32], sizes = [2, 32], strides = [1, 1]} : vector<2x128xf32> to vector<2x32xf32>
    %307 = arith.negf %306 : vector<2x32xf32>
    %308 = math.exp %307 : vector<2x32xf32>
    %cst_128 = arith.constant 1.000000e+00 : f32
    %309 = vector.broadcast %cst_128 : f32 to vector<2x32xf32>
    %310 = arith.addf %309, %308 : vector<2x32xf32>
    %311 = arith.divf %309, %310 : vector<2x32xf32>
    %312 = vector.extract_strided_slice %299 {offsets = [0, 64], sizes = [2, 32], strides = [1, 1]} : vector<2x128xf32> to vector<2x32xf32>
    %313 = math.tanh %312 : vector<2x32xf32>
    %314 = vector.extract_strided_slice %299 {offsets = [0, 96], sizes = [2, 32], strides = [1, 1]} : vector<2x128xf32> to vector<2x32xf32>
    %315 = arith.negf %314 : vector<2x32xf32>
    %316 = math.exp %315 : vector<2x32xf32>
    %cst_129 = arith.constant 1.000000e+00 : f32
    %317 = vector.broadcast %cst_129 : f32 to vector<2x32xf32>
    %318 = arith.addf %317, %316 : vector<2x32xf32>
    %319 = arith.divf %317, %318 : vector<2x32xf32>
    %320 = arith.mulf %311, %263 : vector<2x32xf32>
    %321 = arith.mulf %305, %313 : vector<2x32xf32>
    %322 = arith.addf %320, %321 : vector<2x32xf32>
    %323 = math.tanh %322 : vector<2x32xf32>
    %324 = arith.mulf %319, %323 : vector<2x32xf32>
    %325 = arith.truncf %324 : vector<2x32xf32> to vector<2x32xbf16>
    %326 = arith.truncf %157 : vector<16x32xf32> to vector<16x32xbf16>
    %cst_130 = arith.constant dense<0.000000e+00> : vector<2x16xf32>
    %327 = tpu.matmul %325, %326, %cst_130 {dimension_numbers = #tpu.dot_dimension_numbers<[1], [1], [0], [0], [0, 0, 1, 0], [], []>} : vector<2x32xbf16>, vector<16x32xbf16>, vector<2x16xf32> -> vector<2x16xf32>
    %cst_131 = arith.constant -1.000000e+30 : f32
    %328 = vector.broadcast %cst_131 : f32 to vector<2x16xf32>
    %329 = arith.select %58, %327, %328 : vector<2x16xi1>, vector<2x16xf32>
    %cst_132 = arith.constant dense<0xFF800000> : vector<2xf32>
    %330 = vector.multi_reduction <maximumf>, %329, %cst_132 [1] : vector<2x16xf32> to vector<2xf32>
    %331 = vector.shape_cast %330 : vector<2xf32> to vector<2x1xf32>
    %332 = vector.broadcast %331 : vector<2x1xf32> to vector<2x16xf32>
    %333 = arith.subf %329, %332 : vector<2x16xf32>
    %334 = math.exp %333 : vector<2x16xf32>
    %cst_133 = arith.constant 0.000000e+00 : f32
    %335 = vector.broadcast %cst_133 : f32 to vector<2x16xf32>
    %336 = arith.select %58, %334, %335 : vector<2x16xi1>, vector<2x16xf32>
    %cst_134 = arith.constant dense<0.000000e+00> : vector<2xf32>
    %337 = vector.multi_reduction <add>, %336, %cst_134 [1] : vector<2x16xf32> to vector<2xf32>
    %338 = vector.shape_cast %337 : vector<2xf32> to vector<2x1xf32>
    %cst_135 = arith.constant 9.99999968E-21 : f32
    %339 = vector.broadcast %cst_135 : f32 to vector<2x1xf32>
    %340 = arith.maximumf %338, %339 : vector<2x1xf32>
    %341 = tpu.reciprocal %340 {approx = true} : vector<2x1xf32> -> vector<2x1xf32>
    %342 = vector.broadcast %341 : vector<2x1xf32> to vector<2x16xf32>
    %343 = arith.mulf %336, %342 : vector<2x16xf32>
    %344 = arith.truncf %343 : vector<2x16xf32> to vector<2x16xbf16>
    %345 = arith.truncf %157 : vector<16x32xf32> to vector<16x32xbf16>
    %cst_136 = arith.constant dense<0.000000e+00> : vector<2x32xf32>
    %346 = tpu.matmul %344, %345, %cst_136 {dimension_numbers = #tpu.dot_dimension_numbers<[1], [0], [0], [1], [0, 0, 1, 1], [], []>} : vector<2x16xbf16>, vector<16x32xbf16>, vector<2x32xf32> -> vector<2x32xf32>
    %c0_137 = arith.constant 0 : index
    %c0_138 = arith.constant 0 : index
    %347 = vector.load %arg33[%c0_137, %c0_138] : memref<64x128xbf16, #tpu.memory_space<vmem>>, vector<64x128xbf16>
    %c0_139 = arith.constant 0 : index
    %c0_140 = arith.constant 0 : index
    %348 = vector.load %arg34[%c0_139, %c0_140] : memref<32x128xbf16, #tpu.memory_space<vmem>>, vector<32x128xbf16>
    %c0_141 = arith.constant 0 : index
    %c0_142 = arith.constant 0 : index
    %349 = vector.load %arg35[%c0_141, %c0_142] : memref<1x128xf32, #tpu.memory_space<vmem>>, vector<1x128xf32>
    %cst_143 = arith.constant 0.000000e+00 : f32
    %350 = vector.broadcast %cst_143 : f32 to vector<2x32xf32>
    %cst_144 = arith.constant 0.000000e+00 : f32
    %351 = vector.broadcast %cst_144 : f32 to vector<2x32xf32>
    %cst_145 = arith.constant 0.000000e+00 : f32
    %352 = vector.broadcast %cst_145 : f32 to vector<2x32xf32>
    %cst_146 = arith.constant 0.000000e+00 : f32
    %353 = vector.broadcast %cst_146 : f32 to vector<2x32xf32>
    %354 = vector.extract_strided_slice %347 {offsets = [0, 0], sizes = [32, 128], strides = [1, 1]} : vector<64x128xbf16> to vector<32x128xbf16>
    %355 = arith.truncf %352 : vector<2x32xf32> to vector<2x32xbf16>
    %cst_147 = arith.constant dense<0.000000e+00> : vector<2x128xf32>
    %356 = tpu.matmul %355, %354, %cst_147 {dimension_numbers = #tpu.dot_dimension_numbers<[1], [0], [0], [1], [0, 0, 1, 1], [], []>} : vector<2x32xbf16>, vector<32x128xbf16>, vector<2x128xf32> -> vector<2x128xf32>
    %357 = vector.extract_strided_slice %347 {offsets = [32, 0], sizes = [32, 128], strides = [1, 1]} : vector<64x128xbf16> to vector<32x128xbf16>
    %358 = arith.truncf %353 : vector<2x32xf32> to vector<2x32xbf16>
    %cst_148 = arith.constant dense<0.000000e+00> : vector<2x128xf32>
    %359 = tpu.matmul %358, %357, %cst_148 {dimension_numbers = #tpu.dot_dimension_numbers<[1], [0], [0], [1], [0, 0, 1, 1], [], []>} : vector<2x32xbf16>, vector<32x128xbf16>, vector<2x128xf32> -> vector<2x128xf32>
    %360 = arith.addf %356, %359 : vector<2x128xf32>
    %361 = arith.truncf %350 : vector<2x32xf32> to vector<2x32xbf16>
    %cst_149 = arith.constant dense<0.000000e+00> : vector<2x128xf32>
    %362 = tpu.matmul %361, %348, %cst_149 {dimension_numbers = #tpu.dot_dimension_numbers<[1], [0], [0], [1], [0, 0, 1, 1], [], []>} : vector<2x32xbf16>, vector<32x128xbf16>, vector<2x128xf32> -> vector<2x128xf32>
    %363 = arith.addf %360, %362 : vector<2x128xf32>
    %364 = vector.broadcast %349 : vector<1x128xf32> to vector<2x128xf32>
    %365 = arith.addf %363, %364 : vector<2x128xf32>
    %366 = vector.extract_strided_slice %365 {offsets = [0, 0], sizes = [2, 32], strides = [1, 1]} : vector<2x128xf32> to vector<2x32xf32>
    %367 = arith.negf %366 : vector<2x32xf32>
    %368 = math.exp %367 : vector<2x32xf32>
    %cst_150 = arith.constant 1.000000e+00 : f32
    %369 = vector.broadcast %cst_150 : f32 to vector<2x32xf32>
    %370 = arith.addf %369, %368 : vector<2x32xf32>
    %371 = arith.divf %369, %370 : vector<2x32xf32>
    %372 = vector.extract_strided_slice %365 {offsets = [0, 32], sizes = [2, 32], strides = [1, 1]} : vector<2x128xf32> to vector<2x32xf32>
    %373 = arith.negf %372 : vector<2x32xf32>
    %374 = math.exp %373 : vector<2x32xf32>
    %cst_151 = arith.constant 1.000000e+00 : f32
    %375 = vector.broadcast %cst_151 : f32 to vector<2x32xf32>
    %376 = arith.addf %375, %374 : vector<2x32xf32>
    %377 = arith.divf %375, %376 : vector<2x32xf32>
    %378 = vector.extract_strided_slice %365 {offsets = [0, 64], sizes = [2, 32], strides = [1, 1]} : vector<2x128xf32> to vector<2x32xf32>
    %379 = math.tanh %378 : vector<2x32xf32>
    %380 = vector.extract_strided_slice %365 {offsets = [0, 96], sizes = [2, 32], strides = [1, 1]} : vector<2x128xf32> to vector<2x32xf32>
    %381 = arith.negf %380 : vector<2x32xf32>
    %382 = math.exp %381 : vector<2x32xf32>
    %cst_152 = arith.constant 1.000000e+00 : f32
    %383 = vector.broadcast %cst_152 : f32 to vector<2x32xf32>
    %384 = arith.addf %383, %382 : vector<2x32xf32>
    %385 = arith.divf %383, %384 : vector<2x32xf32>
    %386 = arith.mulf %377, %351 : vector<2x32xf32>
    %387 = arith.mulf %371, %379 : vector<2x32xf32>
    %388 = arith.addf %386, %387 : vector<2x32xf32>
    %389 = math.tanh %388 : vector<2x32xf32>
    %390 = arith.mulf %385, %389 : vector<2x32xf32>
    %391 = arith.truncf %390 : vector<2x32xf32> to vector<2x32xbf16>
    %392 = arith.truncf %160 : vector<112x32xf32> to vector<112x32xbf16>
    %cst_153 = arith.constant dense<0.000000e+00> : vector<2x112xf32>
    %393 = tpu.matmul %391, %392, %cst_153 {dimension_numbers = #tpu.dot_dimension_numbers<[1], [1], [0], [0], [0, 0, 1, 0], [], []>} : vector<2x32xbf16>, vector<112x32xbf16>, vector<2x112xf32> -> vector<2x112xf32>
    %cst_154 = arith.constant -1.000000e+30 : f32
    %394 = vector.broadcast %cst_154 : f32 to vector<2x112xf32>
    %395 = arith.select %162, %393, %394 : vector<2x112xi1>, vector<2x112xf32>
    %cst_155 = arith.constant dense<0xFF800000> : vector<2xf32>
    %396 = vector.multi_reduction <maximumf>, %395, %cst_155 [1] : vector<2x112xf32> to vector<2xf32>
    %397 = vector.shape_cast %396 : vector<2xf32> to vector<2x1xf32>
    %398 = vector.broadcast %397 : vector<2x1xf32> to vector<2x112xf32>
    %399 = arith.subf %395, %398 : vector<2x112xf32>
    %400 = math.exp %399 : vector<2x112xf32>
    %cst_156 = arith.constant 0.000000e+00 : f32
    %401 = vector.broadcast %cst_156 : f32 to vector<2x112xf32>
    %402 = arith.select %162, %400, %401 : vector<2x112xi1>, vector<2x112xf32>
    %cst_157 = arith.constant dense<0.000000e+00> : vector<2xf32>
    %403 = vector.multi_reduction <add>, %402, %cst_157 [1] : vector<2x112xf32> to vector<2xf32>
    %404 = vector.shape_cast %403 : vector<2xf32> to vector<2x1xf32>
    %cst_158 = arith.constant 9.99999968E-21 : f32
    %405 = vector.broadcast %cst_158 : f32 to vector<2x1xf32>
    %406 = arith.maximumf %404, %405 : vector<2x1xf32>
    %407 = tpu.reciprocal %406 {approx = true} : vector<2x1xf32> -> vector<2x1xf32>
    %408 = vector.broadcast %407 : vector<2x1xf32> to vector<2x112xf32>
    %409 = arith.mulf %402, %408 : vector<2x112xf32>
    %410 = arith.truncf %409 : vector<2x112xf32> to vector<2x112xbf16>
    %411 = arith.truncf %160 : vector<112x32xf32> to vector<112x32xbf16>
    %cst_159 = arith.constant dense<0.000000e+00> : vector<2x32xf32>
    %412 = tpu.matmul %410, %411, %cst_159 {dimension_numbers = #tpu.dot_dimension_numbers<[1], [0], [0], [1], [0, 0, 1, 1], [], []>} : vector<2x112xbf16>, vector<112x32xbf16>, vector<2x32xf32> -> vector<2x32xf32>
    %413 = vector.extract_strided_slice %347 {offsets = [0, 0], sizes = [32, 128], strides = [1, 1]} : vector<64x128xbf16> to vector<32x128xbf16>
    %414 = arith.truncf %390 : vector<2x32xf32> to vector<2x32xbf16>
    %cst_160 = arith.constant dense<0.000000e+00> : vector<2x128xf32>
    %415 = tpu.matmul %414, %413, %cst_160 {dimension_numbers = #tpu.dot_dimension_numbers<[1], [0], [0], [1], [0, 0, 1, 1], [], []>} : vector<2x32xbf16>, vector<32x128xbf16>, vector<2x128xf32> -> vector<2x128xf32>
    %416 = vector.extract_strided_slice %347 {offsets = [32, 0], sizes = [32, 128], strides = [1, 1]} : vector<64x128xbf16> to vector<32x128xbf16>
    %417 = arith.truncf %412 : vector<2x32xf32> to vector<2x32xbf16>
    %cst_161 = arith.constant dense<0.000000e+00> : vector<2x128xf32>
    %418 = tpu.matmul %417, %416, %cst_161 {dimension_numbers = #tpu.dot_dimension_numbers<[1], [0], [0], [1], [0, 0, 1, 1], [], []>} : vector<2x32xbf16>, vector<32x128xbf16>, vector<2x128xf32> -> vector<2x128xf32>
    %419 = arith.addf %415, %418 : vector<2x128xf32>
    %420 = arith.truncf %390 : vector<2x32xf32> to vector<2x32xbf16>
    %cst_162 = arith.constant dense<0.000000e+00> : vector<2x128xf32>
    %421 = tpu.matmul %420, %348, %cst_162 {dimension_numbers = #tpu.dot_dimension_numbers<[1], [0], [0], [1], [0, 0, 1, 1], [], []>} : vector<2x32xbf16>, vector<32x128xbf16>, vector<2x128xf32> -> vector<2x128xf32>
    %422 = arith.addf %419, %421 : vector<2x128xf32>
    %423 = vector.broadcast %349 : vector<1x128xf32> to vector<2x128xf32>
    %424 = arith.addf %422, %423 : vector<2x128xf32>
    %425 = vector.extract_strided_slice %424 {offsets = [0, 0], sizes = [2, 32], strides = [1, 1]} : vector<2x128xf32> to vector<2x32xf32>
    %426 = arith.negf %425 : vector<2x32xf32>
    %427 = math.exp %426 : vector<2x32xf32>
    %cst_163 = arith.constant 1.000000e+00 : f32
    %428 = vector.broadcast %cst_163 : f32 to vector<2x32xf32>
    %429 = arith.addf %428, %427 : vector<2x32xf32>
    %430 = arith.divf %428, %429 : vector<2x32xf32>
    %431 = vector.extract_strided_slice %424 {offsets = [0, 32], sizes = [2, 32], strides = [1, 1]} : vector<2x128xf32> to vector<2x32xf32>
    %432 = arith.negf %431 : vector<2x32xf32>
    %433 = math.exp %432 : vector<2x32xf32>
    %cst_164 = arith.constant 1.000000e+00 : f32
    %434 = vector.broadcast %cst_164 : f32 to vector<2x32xf32>
    %435 = arith.addf %434, %433 : vector<2x32xf32>
    %436 = arith.divf %434, %435 : vector<2x32xf32>
    %437 = vector.extract_strided_slice %424 {offsets = [0, 64], sizes = [2, 32], strides = [1, 1]} : vector<2x128xf32> to vector<2x32xf32>
    %438 = math.tanh %437 : vector<2x32xf32>
    %439 = vector.extract_strided_slice %424 {offsets = [0, 96], sizes = [2, 32], strides = [1, 1]} : vector<2x128xf32> to vector<2x32xf32>
    %440 = arith.negf %439 : vector<2x32xf32>
    %441 = math.exp %440 : vector<2x32xf32>
    %cst_165 = arith.constant 1.000000e+00 : f32
    %442 = vector.broadcast %cst_165 : f32 to vector<2x32xf32>
    %443 = arith.addf %442, %441 : vector<2x32xf32>
    %444 = arith.divf %442, %443 : vector<2x32xf32>
    %445 = arith.mulf %436, %388 : vector<2x32xf32>
    %446 = arith.mulf %430, %438 : vector<2x32xf32>
    %447 = arith.addf %445, %446 : vector<2x32xf32>
    %448 = math.tanh %447 : vector<2x32xf32>
    %449 = arith.mulf %444, %448 : vector<2x32xf32>
    %450 = arith.truncf %449 : vector<2x32xf32> to vector<2x32xbf16>
    %451 = arith.truncf %160 : vector<112x32xf32> to vector<112x32xbf16>
    %cst_166 = arith.constant dense<0.000000e+00> : vector<2x112xf32>
    %452 = tpu.matmul %450, %451, %cst_166 {dimension_numbers = #tpu.dot_dimension_numbers<[1], [1], [0], [0], [0, 0, 1, 0], [], []>} : vector<2x32xbf16>, vector<112x32xbf16>, vector<2x112xf32> -> vector<2x112xf32>
    %cst_167 = arith.constant -1.000000e+30 : f32
    %453 = vector.broadcast %cst_167 : f32 to vector<2x112xf32>
    %454 = arith.select %162, %452, %453 : vector<2x112xi1>, vector<2x112xf32>
    %cst_168 = arith.constant dense<0xFF800000> : vector<2xf32>
    %455 = vector.multi_reduction <maximumf>, %454, %cst_168 [1] : vector<2x112xf32> to vector<2xf32>
    %456 = vector.shape_cast %455 : vector<2xf32> to vector<2x1xf32>
    %457 = vector.broadcast %456 : vector<2x1xf32> to vector<2x112xf32>
    %458 = arith.subf %454, %457 : vector<2x112xf32>
    %459 = math.exp %458 : vector<2x112xf32>
    %cst_169 = arith.constant 0.000000e+00 : f32
    %460 = vector.broadcast %cst_169 : f32 to vector<2x112xf32>
    %461 = arith.select %162, %459, %460 : vector<2x112xi1>, vector<2x112xf32>
    %cst_170 = arith.constant dense<0.000000e+00> : vector<2xf32>
    %462 = vector.multi_reduction <add>, %461, %cst_170 [1] : vector<2x112xf32> to vector<2xf32>
    %463 = vector.shape_cast %462 : vector<2xf32> to vector<2x1xf32>
    %cst_171 = arith.constant 9.99999968E-21 : f32
    %464 = vector.broadcast %cst_171 : f32 to vector<2x1xf32>
    %465 = arith.maximumf %463, %464 : vector<2x1xf32>
    %466 = tpu.reciprocal %465 {approx = true} : vector<2x1xf32> -> vector<2x1xf32>
    %467 = vector.broadcast %466 : vector<2x1xf32> to vector<2x112xf32>
    %468 = arith.mulf %461, %467 : vector<2x112xf32>
    %469 = arith.truncf %468 : vector<2x112xf32> to vector<2x112xbf16>
    %470 = arith.truncf %160 : vector<112x32xf32> to vector<112x32xbf16>
    %cst_172 = arith.constant dense<0.000000e+00> : vector<2x32xf32>
    %471 = tpu.matmul %469, %470, %cst_172 {dimension_numbers = #tpu.dot_dimension_numbers<[1], [0], [0], [1], [0, 0, 1, 1], [], []>} : vector<2x112xbf16>, vector<112x32xbf16>, vector<2x32xf32> -> vector<2x32xf32>
    %472 = vector.extract_strided_slice %347 {offsets = [0, 0], sizes = [32, 128], strides = [1, 1]} : vector<64x128xbf16> to vector<32x128xbf16>
    %473 = arith.truncf %449 : vector<2x32xf32> to vector<2x32xbf16>
    %cst_173 = arith.constant dense<0.000000e+00> : vector<2x128xf32>
    %474 = tpu.matmul %473, %472, %cst_173 {dimension_numbers = #tpu.dot_dimension_numbers<[1], [0], [0], [1], [0, 0, 1, 1], [], []>} : vector<2x32xbf16>, vector<32x128xbf16>, vector<2x128xf32> -> vector<2x128xf32>
    %475 = vector.extract_strided_slice %347 {offsets = [32, 0], sizes = [32, 128], strides = [1, 1]} : vector<64x128xbf16> to vector<32x128xbf16>
    %476 = arith.truncf %471 : vector<2x32xf32> to vector<2x32xbf16>
    %cst_174 = arith.constant dense<0.000000e+00> : vector<2x128xf32>
    %477 = tpu.matmul %476, %475, %cst_174 {dimension_numbers = #tpu.dot_dimension_numbers<[1], [0], [0], [1], [0, 0, 1, 1], [], []>} : vector<2x32xbf16>, vector<32x128xbf16>, vector<2x128xf32> -> vector<2x128xf32>
    %478 = arith.addf %474, %477 : vector<2x128xf32>
    %479 = arith.truncf %449 : vector<2x32xf32> to vector<2x32xbf16>
    %cst_175 = arith.constant dense<0.000000e+00> : vector<2x128xf32>
    %480 = tpu.matmul %479, %348, %cst_175 {dimension_numbers = #tpu.dot_dimension_numbers<[1], [0], [0], [1], [0, 0, 1, 1], [], []>} : vector<2x32xbf16>, vector<32x128xbf16>, vector<2x128xf32> -> vector<2x128xf32>
    %481 = arith.addf %478, %480 : vector<2x128xf32>
    %482 = vector.broadcast %349 : vector<1x128xf32> to vector<2x128xf32>
    %483 = arith.addf %481, %482 : vector<2x128xf32>
    %484 = vector.extract_strided_slice %483 {offsets = [0, 0], sizes = [2, 32], strides = [1, 1]} : vector<2x128xf32> to vector<2x32xf32>
    %485 = arith.negf %484 : vector<2x32xf32>
    %486 = math.exp %485 : vector<2x32xf32>
    %cst_176 = arith.constant 1.000000e+00 : f32
    %487 = vector.broadcast %cst_176 : f32 to vector<2x32xf32>
    %488 = arith.addf %487, %486 : vector<2x32xf32>
    %489 = arith.divf %487, %488 : vector<2x32xf32>
    %490 = vector.extract_strided_slice %483 {offsets = [0, 32], sizes = [2, 32], strides = [1, 1]} : vector<2x128xf32> to vector<2x32xf32>
    %491 = arith.negf %490 : vector<2x32xf32>
    %492 = math.exp %491 : vector<2x32xf32>
    %cst_177 = arith.constant 1.000000e+00 : f32
    %493 = vector.broadcast %cst_177 : f32 to vector<2x32xf32>
    %494 = arith.addf %493, %492 : vector<2x32xf32>
    %495 = arith.divf %493, %494 : vector<2x32xf32>
    %496 = vector.extract_strided_slice %483 {offsets = [0, 64], sizes = [2, 32], strides = [1, 1]} : vector<2x128xf32> to vector<2x32xf32>
    %497 = math.tanh %496 : vector<2x32xf32>
    %498 = vector.extract_strided_slice %483 {offsets = [0, 96], sizes = [2, 32], strides = [1, 1]} : vector<2x128xf32> to vector<2x32xf32>
    %499 = arith.negf %498 : vector<2x32xf32>
    %500 = math.exp %499 : vector<2x32xf32>
    %cst_178 = arith.constant 1.000000e+00 : f32
    %501 = vector.broadcast %cst_178 : f32 to vector<2x32xf32>
    %502 = arith.addf %501, %500 : vector<2x32xf32>
    %503 = arith.divf %501, %502 : vector<2x32xf32>
    %504 = arith.mulf %495, %447 : vector<2x32xf32>
    %505 = arith.mulf %489, %497 : vector<2x32xf32>
    %506 = arith.addf %504, %505 : vector<2x32xf32>
    %507 = math.tanh %506 : vector<2x32xf32>
    %508 = arith.mulf %503, %507 : vector<2x32xf32>
    %509 = arith.truncf %508 : vector<2x32xf32> to vector<2x32xbf16>
    %510 = arith.truncf %160 : vector<112x32xf32> to vector<112x32xbf16>
    %cst_179 = arith.constant dense<0.000000e+00> : vector<2x112xf32>
    %511 = tpu.matmul %509, %510, %cst_179 {dimension_numbers = #tpu.dot_dimension_numbers<[1], [1], [0], [0], [0, 0, 1, 0], [], []>} : vector<2x32xbf16>, vector<112x32xbf16>, vector<2x112xf32> -> vector<2x112xf32>
    %cst_180 = arith.constant -1.000000e+30 : f32
    %512 = vector.broadcast %cst_180 : f32 to vector<2x112xf32>
    %513 = arith.select %162, %511, %512 : vector<2x112xi1>, vector<2x112xf32>
    %cst_181 = arith.constant dense<0xFF800000> : vector<2xf32>
    %514 = vector.multi_reduction <maximumf>, %513, %cst_181 [1] : vector<2x112xf32> to vector<2xf32>
    %515 = vector.shape_cast %514 : vector<2xf32> to vector<2x1xf32>
    %516 = vector.broadcast %515 : vector<2x1xf32> to vector<2x112xf32>
    %517 = arith.subf %513, %516 : vector<2x112xf32>
    %518 = math.exp %517 : vector<2x112xf32>
    %cst_182 = arith.constant 0.000000e+00 : f32
    %519 = vector.broadcast %cst_182 : f32 to vector<2x112xf32>
    %520 = arith.select %162, %518, %519 : vector<2x112xi1>, vector<2x112xf32>
    %cst_183 = arith.constant dense<0.000000e+00> : vector<2xf32>
    %521 = vector.multi_reduction <add>, %520, %cst_183 [1] : vector<2x112xf32> to vector<2xf32>
    %522 = vector.shape_cast %521 : vector<2xf32> to vector<2x1xf32>
    %cst_184 = arith.constant 9.99999968E-21 : f32
    %523 = vector.broadcast %cst_184 : f32 to vector<2x1xf32>
    %524 = arith.maximumf %522, %523 : vector<2x1xf32>
    %525 = tpu.reciprocal %524 {approx = true} : vector<2x1xf32> -> vector<2x1xf32>
    %526 = vector.broadcast %525 : vector<2x1xf32> to vector<2x112xf32>
    %527 = arith.mulf %520, %526 : vector<2x112xf32>
    %528 = arith.truncf %527 : vector<2x112xf32> to vector<2x112xbf16>
    %529 = arith.truncf %160 : vector<112x32xf32> to vector<112x32xbf16>
    %cst_185 = arith.constant dense<0.000000e+00> : vector<2x32xf32>
    %530 = tpu.matmul %528, %529, %cst_185 {dimension_numbers = #tpu.dot_dimension_numbers<[1], [0], [0], [1], [0, 0, 1, 1], [], []>} : vector<2x112xbf16>, vector<112x32xbf16>, vector<2x32xf32> -> vector<2x32xf32>
    %c0_186 = arith.constant 0 : index
    %c0_187 = arith.constant 0 : index
    %531 = vector.load %arg36[%c0_186, %c0_187] : memref<160x32xbf16, #tpu.memory_space<vmem>>, vector<160x32xbf16>
    %532 = vector.extract_strided_slice %531 {offsets = [0, 0], sizes = [32, 32], strides = [1, 1]} : vector<160x32xbf16> to vector<32x32xbf16>
    %533 = arith.truncf %324 : vector<2x32xf32> to vector<2x32xbf16>
    %cst_188 = arith.constant dense<0.000000e+00> : vector<2x32xf32>
    %534 = tpu.matmul %533, %532, %cst_188 {dimension_numbers = #tpu.dot_dimension_numbers<[1], [0], [0], [1], [0, 0, 1, 1], [], []>} : vector<2x32xbf16>, vector<32x32xbf16>, vector<2x32xf32> -> vector<2x32xf32>
    %535 = vector.extract_strided_slice %531 {offsets = [32, 0], sizes = [32, 32], strides = [1, 1]} : vector<160x32xbf16> to vector<32x32xbf16>
    %536 = arith.truncf %346 : vector<2x32xf32> to vector<2x32xbf16>
    %cst_189 = arith.constant dense<0.000000e+00> : vector<2x32xf32>
    %537 = tpu.matmul %536, %535, %cst_189 {dimension_numbers = #tpu.dot_dimension_numbers<[1], [0], [0], [1], [0, 0, 1, 1], [], []>} : vector<2x32xbf16>, vector<32x32xbf16>, vector<2x32xf32> -> vector<2x32xf32>
    %538 = arith.addf %534, %537 : vector<2x32xf32>
    %539 = vector.extract_strided_slice %531 {offsets = [64, 0], sizes = [32, 32], strides = [1, 1]} : vector<160x32xbf16> to vector<32x32xbf16>
    %540 = arith.truncf %508 : vector<2x32xf32> to vector<2x32xbf16>
    %cst_190 = arith.constant dense<0.000000e+00> : vector<2x32xf32>
    %541 = tpu.matmul %540, %539, %cst_190 {dimension_numbers = #tpu.dot_dimension_numbers<[1], [0], [0], [1], [0, 0, 1, 1], [], []>} : vector<2x32xbf16>, vector<32x32xbf16>, vector<2x32xf32> -> vector<2x32xf32>
    %542 = arith.addf %538, %541 : vector<2x32xf32>
    %543 = vector.extract_strided_slice %531 {offsets = [96, 0], sizes = [32, 32], strides = [1, 1]} : vector<160x32xbf16> to vector<32x32xbf16>
    %544 = arith.truncf %530 : vector<2x32xf32> to vector<2x32xbf16>
    %cst_191 = arith.constant dense<0.000000e+00> : vector<2x32xf32>
    %545 = tpu.matmul %544, %543, %cst_191 {dimension_numbers = #tpu.dot_dimension_numbers<[1], [0], [0], [1], [0, 0, 1, 1], [], []>} : vector<2x32xbf16>, vector<32x32xbf16>, vector<2x32xf32> -> vector<2x32xf32>
    %546 = arith.addf %542, %545 : vector<2x32xf32>
    %547 = vector.extract_strided_slice %531 {offsets = [128, 0], sizes = [32, 32], strides = [1, 1]} : vector<160x32xbf16> to vector<32x32xbf16>
    %548 = arith.truncf %161 : vector<2x32xf32> to vector<2x32xbf16>
    %cst_192 = arith.constant dense<0.000000e+00> : vector<2x32xf32>
    %549 = tpu.matmul %548, %547, %cst_192 {dimension_numbers = #tpu.dot_dimension_numbers<[1], [0], [0], [1], [0, 0, 1, 1], [], []>} : vector<2x32xbf16>, vector<32x32xbf16>, vector<2x32xf32> -> vector<2x32xf32>
    %550 = arith.addf %546, %549 : vector<2x32xf32>
    %c0_193 = arith.constant 0 : index
    %c0_194 = arith.constant 0 : index
    %551 = vector.load %arg37[%c0_193, %c0_194] : memref<1x32xf32, #tpu.memory_space<vmem>>, vector<1x32xf32>
    %552 = vector.broadcast %551 : vector<1x32xf32> to vector<2x32xf32>
    %553 = arith.addf %550, %552 : vector<2x32xf32>
    %c0_195 = arith.constant 0 : index
    %c0_196 = arith.constant 0 : index
    %554 = vector.load %arg38[%c0_195, %c0_196] : memref<32x16xbf16, #tpu.memory_space<vmem>>, vector<32x16xbf16>
    %555 = arith.truncf %553 : vector<2x32xf32> to vector<2x32xbf16>
    %cst_197 = arith.constant dense<0.000000e+00> : vector<2x16xf32>
    %556 = tpu.matmul %555, %554, %cst_197 {dimension_numbers = #tpu.dot_dimension_numbers<[1], [0], [0], [1], [0, 0, 1, 1], [], []>} : vector<2x32xbf16>, vector<32x16xbf16>, vector<2x16xf32> -> vector<2x16xf32>
    %c0_198 = arith.constant 0 : index
    %c0_199 = arith.constant 0 : index
    %557 = vector.load %arg39[%c0_198, %c0_199] : memref<1x16xf32, #tpu.memory_space<vmem>>, vector<1x16xf32>
    %558 = vector.broadcast %557 : vector<1x16xf32> to vector<2x16xf32>
    %559 = arith.addf %556, %558 : vector<2x16xf32>
    %c0_200 = arith.constant 0 : index
    %c0_201 = arith.constant 0 : index
    %560 = vector.load %arg40[%c0_200, %c0_201] : memref<16x1xbf16, #tpu.memory_space<vmem>>, vector<16x1xbf16>
    %561 = arith.truncf %559 : vector<2x16xf32> to vector<2x16xbf16>
    %cst_202 = arith.constant dense<0.000000e+00> : vector<2x1xf32>
    %562 = tpu.matmul %561, %560, %cst_202 {dimension_numbers = #tpu.dot_dimension_numbers<[1], [0], [0], [1], [0, 0, 1, 1], [], []>} : vector<2x16xbf16>, vector<16x1xbf16>, vector<2x1xf32> -> vector<2x1xf32>
    %c0_203 = arith.constant 0 : index
    %c0_204 = arith.constant 0 : index
    %563 = vector.load %arg41[%c0_203, %c0_204] : memref<1x1xf32, #tpu.memory_space<vmem>>, vector<1x1xf32>
    %564 = vector.broadcast %563 : vector<1x1xf32> to vector<2x1xf32>
    %565 = arith.addf %562, %564 : vector<2x1xf32>
    %c0_205 = arith.constant 0 : index
    %c0_206 = arith.constant 0 : index
    %566 = vector.load %arg42[%c0_205, %c0_206] : memref<2x1xf32, #tpu.memory_space<vmem>>, vector<2x1xf32>
    tpu.vector_store %arg42[%c0_205, %c0_206], %565 {strides = array<i32>} : memref<2x1xf32, #tpu.memory_space<vmem>>, vector<2x1xf32>,
    return
  }
  func.func @transform_0(%arg0: i32) -> (i32, i32) {
    %c0_i32 = arith.constant 0 : i32
    %c0_i32_0 = arith.constant 0 : i32
    %c0_i32_1 = arith.constant 0 : i32
    return %c0_i32, %c0_i32_0 : i32, i32
  }
  func.func @transform_1(%arg0: i32) -> (i32, i32) {
    %c0_i32 = arith.constant 0 : i32
    %c0_i32_0 = arith.constant 0 : i32
    %c0_i32_1 = arith.constant 0 : i32
    return %c0_i32, %c0_i32_0 : i32, i32
  }
  func.func @transform_2(%arg0: i32) -> (i32, i32) {
    %c0_i32 = arith.constant 0 : i32
    %c0_i32_0 = arith.constant 0 : i32
    %c0_i32_1 = arith.constant 0 : i32
    return %c0_i32, %c0_i32_0 : i32, i32
  }
  func.func @transform_3(%arg0: i32) -> (i32, i32) {
    %c0_i32 = arith.constant 0 : i32
    %c0_i32_0 = arith.constant 0 : i32
    %c0_i32_1 = arith.constant 0 : i32
    return %c0_i32, %c0_i32_0 : i32, i32
  }
  func.func @transform_4(%arg0: i32) -> (i32, i32) {
    %c0_i32 = arith.constant 0 : i32
    %c0_i32_0 = arith.constant 0 : i32
    %c0_i32_1 = arith.constant 0 : i32
    return %c0_i32, %c0_i32_0 : i32, i32
  }
  func.func @transform_5(%arg0: i32) -> (i32, i32) {
    %c0_i32 = arith.constant 0 : i32
    %c0_i32_0 = arith.constant 0 : i32
    %c0_i32_1 = arith.constant 0 : i32
    return %c0_i32, %c0_i32_0 : i32, i32
  }
  func.func @transform_6(%arg0: i32) -> (i32, i32) {
    %c0_i32 = arith.constant 0 : i32
    %c0_i32_0 = arith.constant 0 : i32
    %c0_i32_1 = arith.constant 0 : i32
    return %c0_i32, %c0_i32_0 : i32, i32
  }
  func.func @transform_7(%arg0: i32) -> (i32, i32) {
    %c0_i32 = arith.constant 0 : i32
    %c0_i32_0 = arith.constant 0 : i32
    %c0_i32_1 = arith.constant 0 : i32
    return %c0_i32, %c0_i32_0 : i32, i32
  }
  func.func @transform_8(%arg0: i32) -> (i32, i32) {
    %c0_i32 = arith.constant 0 : i32
    %c0_i32_0 = arith.constant 0 : i32
    %c0_i32_1 = arith.constant 0 : i32
    return %c0_i32, %c0_i32_0 : i32, i32
  }
  func.func @transform_9(%arg0: i32) -> (i32, i32) {
    %c0_i32 = arith.constant 0 : i32
    %c0_i32_0 = arith.constant 0 : i32
    %c0_i32_1 = arith.constant 0 : i32
    return %c0_i32, %c0_i32_0 : i32, i32
  }
  func.func @transform_10(%arg0: i32) -> (i32, i32) {
    %c0_i32 = arith.constant 0 : i32
    %c0_i32_0 = arith.constant 0 : i32
    %c0_i32_1 = arith.constant 0 : i32
    return %c0_i32, %c0_i32_0 : i32, i32
  }
  func.func @transform_11(%arg0: i32) -> (i32, i32) {
    %c0_i32 = arith.constant 0 : i32
    %c0_i32_0 = arith.constant 0 : i32
    %c0_i32_1 = arith.constant 0 : i32
    return %c0_i32, %c0_i32_0 : i32, i32
  }
  func.func @transform_12(%arg0: i32) -> (i32, i32) {
    %c0_i32 = arith.constant 0 : i32
    %c0_i32_0 = arith.constant 0 : i32
    %c0_i32_1 = arith.constant 0 : i32
    return %c0_i32, %c0_i32_0 : i32, i32
  }
  func.func @transform_13(%arg0: i32) -> (i32, i32) {
    %c0_i32 = arith.constant 0 : i32
    %c0_i32_0 = arith.constant 0 : i32
    %c0_i32_1 = arith.constant 0 : i32
    return %c0_i32, %c0_i32_0 : i32, i32
  }
  func.func @transform_14(%arg0: i32) -> (i32, i32) {
    %c0_i32 = arith.constant 0 : i32
    %c0_i32_0 = arith.constant 0 : i32
    %c0_i32_1 = arith.constant 0 : i32
    return %c0_i32, %c0_i32_0 : i32, i32
  }
  func.func @transform_15(%arg0: i32) -> (i32, i32) {
    %c0_i32 = arith.constant 0 : i32
    %c0_i32_0 = arith.constant 0 : i32
    %c0_i32_1 = arith.constant 0 : i32
    return %c0_i32, %c0_i32_0 : i32, i32
  }
  func.func @transform_16(%arg0: i32) -> (i32, i32) {
    %c0_i32 = arith.constant 0 : i32
    %c0_i32_0 = arith.constant 0 : i32
    %c0_i32_1 = arith.constant 0 : i32
    return %c0_i32, %c0_i32_0 : i32, i32
  }
  func.func @transform_17(%arg0: i32) -> (i32, i32) {
    %c0_i32 = arith.constant 0 : i32
    %c0_i32_0 = arith.constant 0 : i32
    %c0_i32_1 = arith.constant 0 : i32
    return %c0_i32, %c0_i32_0 : i32, i32
  }
  func.func @transform_18(%arg0: i32) -> (i32, i32) {
    %c0_i32 = arith.constant 0 : i32
    %c0_i32_0 = arith.constant 0 : i32
    %c0_i32_1 = arith.constant 0 : i32
    return %c0_i32, %c0_i32_0 : i32, i32
  }
  func.func @transform_19(%arg0: i32) -> (i32, i32) {
    %c0_i32 = arith.constant 0 : i32
    %c0_i32_0 = arith.constant 0 : i32
    %c0_i32_1 = arith.constant 0 : i32
    return %c0_i32, %c0_i32_0 : i32, i32
  }
  func.func @transform_20(%arg0: i32) -> (i32, i32) {
    %c0_i32 = arith.constant 0 : i32
    %c0_i32_0 = arith.constant 0 : i32
    %c0_i32_1 = arith.constant 0 : i32
    return %c0_i32, %c0_i32_0 : i32, i32
  }
  func.func @transform_21(%arg0: i32) -> (i32, i32) {
    %c0_i32 = arith.constant 0 : i32
    %c0_i32_0 = arith.constant 0 : i32
    %c0_i32_1 = arith.constant 0 : i32
    return %c0_i32, %c0_i32_0 : i32, i32
  }
  func.func @transform_22(%arg0: i32) -> (i32, i32) {
    %c0_i32 = arith.constant 0 : i32
    %c0_i32_0 = arith.constant 0 : i32
    %c0_i32_1 = arith.constant 0 : i32
    return %c0_i32, %c0_i32_0 : i32, i32
  }
  func.func @transform_23(%arg0: i32) -> (i32, i32) {
    %c0_i32 = arith.constant 0 : i32
    %c0_i32_0 = arith.constant 0 : i32
    %c0_i32_1 = arith.constant 0 : i32
    return %c0_i32, %c0_i32_0 : i32, i32
  }
  func.func @transform_24(%arg0: i32) -> (i32, i32) {
    %c0_i32 = arith.constant 0 : i32
    %c0_i32_0 = arith.constant 0 : i32
    %c0_i32_1 = arith.constant 0 : i32
    return %c0_i32, %c0_i32_0 : i32, i32
  }
  func.func @transform_25(%arg0: i32) -> (i32, i32) {
    %c0_i32 = arith.constant 0 : i32
    %c0_i32_0 = arith.constant 0 : i32
    %c0_i32_1 = arith.constant 0 : i32
    return %c0_i32, %c0_i32_0 : i32, i32
  }
  func.func @transform_26(%arg0: i32) -> (i32, i32) {
    %c0_i32 = arith.constant 0 : i32
    %c0_i32_0 = arith.constant 0 : i32
    %c0_i32_1 = arith.constant 0 : i32
    return %c0_i32, %c0_i32_0 : i32, i32
  }
  func.func @transform_27(%arg0: i32) -> (i32, i32) {
    %c0_i32 = arith.constant 0 : i32
    %c0_i32_0 = arith.constant 0 : i32
    %c0_i32_1 = arith.constant 0 : i32
    return %c0_i32, %c0_i32_0 : i32, i32
  }
  func.func @transform_28(%arg0: i32) -> (i32, i32) {
    %c0_i32 = arith.constant 0 : i32
    %c0_i32_0 = arith.constant 0 : i32
    %c0_i32_1 = arith.constant 0 : i32
    return %c0_i32, %c0_i32_0 : i32, i32
  }
  func.func @transform_29(%arg0: i32) -> (i32, i32) {
    %c0_i32 = arith.constant 0 : i32
    %c0_i32_0 = arith.constant 0 : i32
    %c0_i32_1 = arith.constant 0 : i32
    return %c0_i32, %c0_i32_0 : i32, i32
  }
  func.func @transform_30(%arg0: i32) -> (i32, i32) {
    %c0_i32 = arith.constant 0 : i32
    %c0_i32_0 = arith.constant 0 : i32
    %c0_i32_1 = arith.constant 0 : i32
    return %c0_i32, %c0_i32_0 : i32, i32
  }
  func.func @transform_31(%arg0: i32) -> (i32, i32) {
    %c0_i32 = arith.constant 0 : i32
    %c0_i32_0 = arith.constant 0 : i32
    %c0_i32_1 = arith.constant 0 : i32
    return %c0_i32, %c0_i32_0 : i32, i32
  }
  func.func @transform_32(%arg0: i32) -> (i32, i32) {
    %c0_i32 = arith.constant 0 : i32
    %c0_i32_0 = arith.constant 0 : i32
    %c0_i32_1 = arith.constant 0 : i32
    return %c0_i32, %c0_i32_0 : i32, i32
  }
  func.func @transform_33(%arg0: i32) -> (i32, i32) {
    %c0_i32 = arith.constant 0 : i32
    %c0_i32_0 = arith.constant 0 : i32
    %c0_i32_1 = arith.constant 0 : i32
    return %c0_i32, %c0_i32_0 : i32, i32
  }
  func.func @transform_34(%arg0: i32) -> (i32, i32) {
    %c0_i32 = arith.constant 0 : i32
    %c0_i32_0 = arith.constant 0 : i32
    %c0_i32_1 = arith.constant 0 : i32
    return %c0_i32, %c0_i32_0 : i32, i32
  }
  func.func @transform_35(%arg0: i32) -> (i32, i32) {
    %c0_i32 = arith.constant 0 : i32
    %c0_i32_0 = arith.constant 0 : i32
    %c0_i32_1 = arith.constant 0 : i32
    return %c0_i32, %c0_i32_0 : i32, i32
  }
  func.func @transform_36(%arg0: i32) -> (i32, i32) {
    %c0_i32 = arith.constant 0 : i32
    %c0_i32_0 = arith.constant 0 : i32
    %c0_i32_1 = arith.constant 0 : i32
    return %c0_i32, %c0_i32_0 : i32, i32
  }
  func.func @transform_37(%arg0: i32) -> (i32, i32) {
    %c0_i32 = arith.constant 0 : i32
    %c0_i32_0 = arith.constant 0 : i32
    %c0_i32_1 = arith.constant 0 : i32
    return %c0_i32, %c0_i32_0 : i32, i32
  }
  func.func @transform_38(%arg0: i32) -> (i32, i32) {
    %c0_i32 = arith.constant 0 : i32
    %c0_i32_0 = arith.constant 0 : i32
    %c0_i32_1 = arith.constant 0 : i32
    return %c0_i32, %c0_i32_0 : i32, i32
  }
  func.func @transform_39(%arg0: i32) -> (i32, i32) {
    %c0_i32 = arith.constant 0 : i32
    %c0_i32_0 = arith.constant 0 : i32
    %c0_i32_1 = arith.constant 0 : i32
    return %c0_i32, %c0_i32_0 : i32, i32
  }
  func.func @transform_40(%arg0: i32) -> (i32, i32) {
    %c0_i32 = arith.constant 0 : i32
    %c0_i32_0 = arith.constant 0 : i32
    %c0_i32_1 = arith.constant 0 : i32
    return %c0_i32, %c0_i32_0 : i32, i32
  }
  func.func @transform_41(%arg0: i32) -> (i32, i32) {
    %c0_i32 = arith.constant 0 : i32
    %c0_i32_0 = arith.constant 0 : i32
    %c0_i32_1 = arith.constant 0 : i32
    return %c0_i32, %c0_i32_0 : i32, i32
  }
}

</mosaic_0001>

<llo_original>
// kernel: megnet_forward.1
$region0: #{megnet_forward.1}
  #allocation0 [shape = 'u32[]', space=smem, size = 0x4, offset = 0x4, fixed_abs, tag = 'smem constant byte address 0x4 - core index']
  #allocation1 [shape = 'u32[144,128]{1,0:T(1,128)}', space=vmem, size = 0x12000, scoped, tag = 'internal scratch']
  #allocation2 [shape = 'f32[1,1]{1,0:T(1,128)S(1)}', space=vmem, size = 0x200, scoped, tag = 'scoped memory for megnet_forward.1']
  %s0 = inlined_call_operand.smem [shape: u32[42], index: -1, kind: input, shape index: {}]
  %s1 = sld [smem:[%s0]]
  %s2 = scalar_lea.smem %s0, 1
  %s3 = sld [smem:[%s2]]
  %s4 = scalar_lea.smem %s0, 2
  %s5 = sld [smem:[%s4]]
  %s6 = scalar_lea.smem %s0, 3
  %s7 = sld [smem:[%s6]]
  %s8 = scalar_lea.smem %s0, 4
  %s9 = sld [smem:[%s8]]
  %s10 = scalar_lea.smem %s0, 5
  %s11 = sld [smem:[%s10]]
  %s12 = scalar_lea.smem %s0, 6
  %s13 = sld [smem:[%s12]]
  %s14 = scalar_lea.smem %s0, 7
  %s15 = sld [smem:[%s14]]
  %s16 = scalar_lea.smem %s0, 8
  %s17 = sld [smem:[%s16]]
  %s18 = scalar_lea.smem %s0, 9
  %s19 = sld [smem:[%s18]]
  %s20 = scalar_lea.smem %s0, 10
  %s21 = sld [smem:[%s20]]
  %s22 = scalar_lea.smem %s0, 11
  %s23 = sld [smem:[%s22]]
  %s24 = scalar_lea.smem %s0, 12
  %s25 = sld [smem:[%s24]]
  %s26 = scalar_lea.smem %s0, 13
  %s27 = sld [smem:[%s26]]
  %s28 = scalar_lea.smem %s0, 14
  %s29 = sld [smem:[%s28]]
  %s30 = scalar_lea.smem %s0, 15
  %s31 = sld [smem:[%s30]]
  %s32 = scalar_lea.smem %s0, 16
  %s33 = sld [smem:[%s32]]
  %s34 = scalar_lea.smem %s0, 17
  %s35 = sld [smem:[%s34]]
  %s36 = scalar_lea.smem %s0, 18
  %s37 = sld [smem:[%s36]]
  %s38 = scalar_lea.smem %s0, 19
  %s39 = sld [smem:[%s38]]
  %s40 = scalar_lea.smem %s0, 20
  %s41 = sld [smem:[%s40]]
  %s42 = scalar_lea.smem %s0, 21
  %s43 = sld [smem:[%s42]]
  %s44 = scalar_lea.smem %s0, 22
  %s45 = sld [smem:[%s44]]
  %s46 = scalar_lea.smem %s0, 23
  %s47 = sld [smem:[%s46]]
  %s48 = scalar_lea.smem %s0, 24
  %s49 = sld [smem:[%s48]]
  %s50 = scalar_lea.smem %s0, 25
  %s51 = sld [smem:[%s50]]
  %s52 = scalar_lea.smem %s0, 26
  %s53 = sld [smem:[%s52]]
  %s54 = scalar_lea.smem %s0, 27
  %s55 = sld [smem:[%s54]]
  %s56 = scalar_lea.smem %s0, 28
  %s57 = sld [smem:[%s56]]
  %s58 = scalar_lea.smem %s0, 29
  %s59 = sld [smem:[%s58]]
  %s60 = scalar_lea.smem %s0, 30
  %s61 = sld [smem:[%s60]]
  %s62 = scalar_lea.smem %s0, 31
  %s63 = sld [smem:[%s62]]
  %s64 = scalar_lea.smem %s0, 32
  %s65 = sld [smem:[%s64]]
  %s66 = scalar_lea.smem %s0, 33
  %s67 = sld [smem:[%s66]]
  %s68 = scalar_lea.smem %s0, 34
  %s69 = sld [smem:[%s68]]
  %s70 = scalar_lea.smem %s0, 35
  %s71 = sld [smem:[%s70]]
  %s72 = scalar_lea.smem %s0, 36
  %s73 = sld [smem:[%s72]]
  %s74 = scalar_lea.smem %s0, 37
  %s75 = sld [smem:[%s74]]
  %s76 = scalar_lea.smem %s0, 38
  %s77 = sld [smem:[%s76]]
  %s78 = scalar_lea.smem %s0, 39
  %s79 = sld [smem:[%s78]]
  %s80 = scalar_lea.smem %s0, 40
  %s81 = sld [smem:[%s80]]
  %s82 = scalar_lea.smem %s0, 41
  %s83 = sld [smem:[%s82]]
  %s84 = sld [smem:[#allocation0]]
  $region174: #{megnet_forward.1} parent=0
    _
  %s86 = ssub.s32 1, %s84
  %s87 = scalar_select 0, %s86, %s84
  %v88 = vstv %s81
  %89 = vst [vmem:[#allocation2] sm:$0x1] %v88
  // Predicated region
  $region2: #{megnet_forward.1} parent=0 // pred_check
    _
  $region3: #{megnet_forward.1} parent=0 // pred_check_branch
    %91 = sbr.rel (0) target = $region5
  $region4: #{megnet_forward.1} parent=0 // pred_region
    _
  $region5: #{megnet_forward.1} parent=0 // pred_fallthru
    _
  // Predicated region
  $region6: #{megnet_forward.1} parent=0 // pred_check
    _
  $region7: #{megnet_forward.1} parent=0 // pred_check_branch
    %93 = sbr.rel (0) target = $region9
  $region8: #{megnet_forward.1} parent=0 // pred_region
    _
  $region9: #{megnet_forward.1} parent=0 // pred_fallthru
    _
  // Predicated region
  $region10: #{megnet_forward.1} parent=0 // pred_check
    _
  $region11: #{megnet_forward.1} parent=0 // pred_check_branch
    %95 = sbr.rel (0) target = $region13
  $region12: #{megnet_forward.1} parent=0 // pred_region
    _
  $region13: #{megnet_forward.1} parent=0 // pred_fallthru
    _
  // Predicated region
  $region14: #{megnet_forward.1} parent=0 // pred_check
    _
  $region15: #{megnet_forward.1} parent=0 // pred_check_branch
    %97 = sbr.rel (0) target = $region17
  $region16: #{megnet_forward.1} parent=0 // pred_region
    _
  $region17: #{megnet_forward.1} parent=0 // pred_fallthru
    _
  // Predicated region
  $region18: #{megnet_forward.1} parent=0 // pred_check
    _
  $region19: #{megnet_forward.1} parent=0 // pred_check_branch
    %99 = sbr.rel (0) target = $region21
  $region20: #{megnet_forward.1} parent=0 // pred_region
    _
  $region21: #{megnet_forward.1} parent=0 // pred_fallthru
    _
  // Predicated region
  $region22: #{megnet_forward.1} parent=0 // pred_check
    _
  $region23: #{megnet_forward.1} parent=0 // pred_check_branch
    %101 = sbr.rel (0) target = $region25
  $region24: #{megnet_forward.1} parent=0 // pred_region
    _
  $region25: #{megnet_forward.1} parent=0 // pred_fallthru
    _
  // Predicated region
  $region26: #{megnet_forward.1} parent=0 // pred_check
    _
  $region27: #{megnet_forward.1} parent=0 // pred_check_branch
    %103 = sbr.rel (0) target = $region29
  $region28: #{megnet_forward.1} parent=0 // pred_region
    _
  $region29: #{megnet_forward.1} parent=0 // pred_fallthru
    _
  // Predicated region
  $region30: #{megnet_forward.1} parent=0 // pred_check
    _
  $region31: #{megnet_forward.1} parent=0 // pred_check_branch
    %105 = sbr.rel (0) target = $region33
  $region32: #{megnet_forward.1} parent=0 // pred_region
    _
  $region33: #{megnet_forward.1} parent=0 // pred_fallthru
    _
  // Predicated region
  $region34: #{megnet_forward.1} parent=0 // pred_check
    _
  $region35: #{megnet_forward.1} parent=0 // pred_check_branch
    %107 = sbr.rel (0) target = $region37
  $region36: #{megnet_forward.1} parent=0 // pred_region
    _
  $region37: #{megnet_forward.1} parent=0 // pred_fallthru
    _
  // Predicated region
  $region38: #{megnet_forward.1} parent=0 // pred_check
    _
  $region39: #{megnet_forward.1} parent=0 // pred_check_branch
    %109 = sbr.rel (0) target = $region41
  $region40: #{megnet_forward.1} parent=0 // pred_region
    _
  $region41: #{megnet_forward.1} parent=0 // pred_fallthru
    _
  // Predicated region
  $region42: #{megnet_forward.1} parent=0 // pred_check
    _
  $region43: #{megnet_forward.1} parent=0 // pred_check_branch
    %111 = sbr.rel (0) target = $region45
  $region44: #{megnet_forward.1} parent=0 // pred_region
    _
  $region45: #{megnet_forward.1} parent=0 // pred_fallthru
    _
  // Predicated region
  $region46: #{megnet_forward.1} parent=0 // pred_check
    _
  $region47: #{megnet_forward.1} parent=0 // pred_check_branch
    %113 = sbr.rel (0) target = $region49
  $region48: #{megnet_forward.1} parent=0 // pred_region
    _
  $region49: #{megnet_forward.1} parent=0 // pred_fallthru
    _
  // Predicated region
  $region50: #{megnet_forward.1} parent=0 // pred_check
    _
  $region51: #{megnet_forward.1} parent=0 // pred_check_branch
    %115 = sbr.rel (0) target = $region53
  $region52: #{megnet_forward.1} parent=0 // pred_region
    _
  $region53: #{megnet_forward.1} parent=0 // pred_fallthru
    _
  // Predicated region
  $region54: #{megnet_forward.1} parent=0 // pred_check
    _
  $region55: #{megnet_forward.1} parent=0 // pred_check_branch
    %117 = sbr.rel (0) target = $region57
  $region56: #{megnet_forward.1} parent=0 // pred_region
    _
  $region57: #{megnet_forward.1} parent=0 // pred_fallthru
    _
  // Predicated region
  $region58: #{megnet_forward.1} parent=0 // pred_check
    _
  $region59: #{megnet_forward.1} parent=0 // pred_check_branch
    %119 = sbr.rel (0) target = $region61
  $region60: #{megnet_forward.1} parent=0 // pred_region
    _
  $region61: #{megnet_forward.1} parent=0 // pred_fallthru
    _
  // Predicated region
  $region62: #{megnet_forward.1} parent=0 // pred_check
    _
  $region63: #{megnet_forward.1} parent=0 // pred_check_branch
    %121 = sbr.rel (0) target = $region65
  $region64: #{megnet_forward.1} parent=0 // pred_region
    _
  $region65: #{megnet_forward.1} parent=0 // pred_fallthru
    _
  // Predicated region
  $region66: #{megnet_forward.1} parent=0 // pred_check
    _
  $region67: #{megnet_forward.1} parent=0 // pred_check_branch
    %123 = sbr.rel (0) target = $region69
  $region68: #{megnet_forward.1} parent=0 // pred_region
    _
  $region69: #{megnet_forward.1} parent=0 // pred_fallthru
    _
  // Predicated region
  $region70: #{megnet_forward.1} parent=0 // pred_check
    _
  $region71: #{megnet_forward.1} parent=0 // pred_check_branch
    %125 = sbr.rel (0) target = $region73
  $region72: #{megnet_forward.1} parent=0 // pred_region
    _
  $region73: #{megnet_forward.1} parent=0 // pred_fallthru
    _
  // Predicated region
  $region74: #{megnet_forward.1} parent=0 // pred_check
    _
  $region75: #{megnet_forward.1} parent=0 // pred_check_branch
    %127 = sbr.rel (0) target = $region77
  $region76: #{megnet_forward.1} parent=0 // pred_region
    _
  $region77: #{megnet_forward.1} parent=0 // pred_fallthru
    _
  // Predicated region
  $region78: #{megnet_forward.1} parent=0 // pred_check
    _
  $region79: #{megnet_forward.1} parent=0 // pred_check_branch
    %129 = sbr.rel (0) target = $region81
  $region80: #{megnet_forward.1} parent=0 // pred_region
    _
  $region81: #{megnet_forward.1} parent=0 // pred_fallthru
    _
  // Predicated region
  $region82: #{megnet_forward.1} parent=0 // pred_check
    _
  $region83: #{megnet_forward.1} parent=0 // pred_check_branch
    %131 = sbr.rel (0) target = $region85
  $region84: #{megnet_forward.1} parent=0 // pred_region
    _
  $region85: #{megnet_forward.1} parent=0 // pred_fallthru
    _
  // Predicated region
  $region86: #{megnet_forward.1} parent=0 // pred_check
    _
  $region87: #{megnet_forward.1} parent=0 // pred_check_branch
    %133 = sbr.rel (0) target = $region89
  $region88: #{megnet_forward.1} parent=0 // pred_region
    _
  $region89: #{megnet_forward.1} parent=0 // pred_fallthru
    _
  // Predicated region
  $region90: #{megnet_forward.1} parent=0 // pred_check
    _
  $region91: #{megnet_forward.1} parent=0 // pred_check_branch
    %135 = sbr.rel (0) target = $region93
  $region92: #{megnet_forward.1} parent=0 // pred_region
    _
  $region93: #{megnet_forward.1} parent=0 // pred_fallthru
    _
  // Predicated region
  $region94: #{megnet_forward.1} parent=0 // pred_check
    _
  $region95: #{megnet_forward.1} parent=0 // pred_check_branch
    %137 = sbr.rel (0) target = $region97
  $region96: #{megnet_forward.1} parent=0 // pred_region
    _
  $region97: #{megnet_forward.1} parent=0 // pred_fallthru
    _
  // Predicated region
  $region98: #{megnet_forward.1} parent=0 // pred_check
    _
  $region99: #{megnet_forward.1} parent=0 // pred_check_branch
    %139 = sbr.rel (0) target = $region101
  $region100: #{megnet_forward.1} parent=0 // pred_region
    _
  $region101: #{megnet_forward.1} parent=0 // pred_fallthru
    _
  // Predicated region
  $region102: #{megnet_forward.1} parent=0 // pred_check
    _
  $region103: #{megnet_forward.1} parent=0 // pred_check_branch
    %141 = sbr.rel (0) target = $region105
  $region104: #{megnet_forward.1} parent=0 // pred_region
    _
  $region105: #{megnet_forward.1} parent=0 // pred_fallthru
    _
  // Predicated region
  $region106: #{megnet_forward.1} parent=0 // pred_check
    _
  $region107: #{megnet_forward.1} parent=0 // pred_check_branch
    %143 = sbr.rel (0) target = $region109
  $region108: #{megnet_forward.1} parent=0 // pred_region
    _
  $region109: #{megnet_forward.1} parent=0 // pred_fallthru
    _
  // Predicated region
  $region110: #{megnet_forward.1} parent=0 // pred_check
    _
  $region111: #{megnet_forward.1} parent=0 // pred_check_branch
    %145 = sbr.rel (0) target = $region113
  $region112: #{megnet_forward.1} parent=0 // pred_region
    _
  $region113: #{megnet_forward.1} parent=0 // pred_fallthru
    _
  // Predicated region
  $region114: #{megnet_forward.1} parent=0 // pred_check
    _
  $region115: #{megnet_forward.1} parent=0 // pred_check_branch
    %147 = sbr.rel (0) target = $region117
  $region116: #{megnet_forward.1} parent=0 // pred_region
    _
  $region117: #{megnet_forward.1} parent=0 // pred_fallthru
    _
  // Predicated region
  $region118: #{megnet_forward.1} parent=0 // pred_check
    _
  $region119: #{megnet_forward.1} parent=0 // pred_check_branch
    %149 = sbr.rel (0) target = $region121
  $region120: #{megnet_forward.1} parent=0 // pred_region
    _
  $region121: #{megnet_forward.1} parent=0 // pred_fallthru
    _
  // Predicated region
  $region122: #{megnet_forward.1} parent=0 // pred_check
    _
  $region123: #{megnet_forward.1} parent=0 // pred_check_branch
    %151 = sbr.rel (0) target = $region125
  $region124: #{megnet_forward.1} parent=0 // pred_region
    _
  $region125: #{megnet_forward.1} parent=0 // pred_fallthru
    _
  // Predicated region
  $region126: #{megnet_forward.1} parent=0 // pred_check
    _
  $region127: #{megnet_forward.1} parent=0 // pred_check_branch
    %153 = sbr.rel (0) target = $region129
  $region128: #{megnet_forward.1} parent=0 // pred_region
    _
  $region129: #{megnet_forward.1} parent=0 // pred_fallthru
    _
  // Predicated region
  $region130: #{megnet_forward.1} parent=0 // pred_check
    _
  $region131: #{megnet_forward.1} parent=0 // pred_check_branch
    %155 = sbr.rel (0) target = $region133
  $region132: #{megnet_forward.1} parent=0 // pred_region
    _
  $region133: #{megnet_forward.1} parent=0 // pred_fallthru
    _
  // Predicated region
  $region134: #{megnet_forward.1} parent=0 // pred_check
    _
  $region135: #{megnet_forward.1} parent=0 // pred_check_branch
    %157 = sbr.rel (0) target = $region137
  $region136: #{megnet_forward.1} parent=0 // pred_region
    _
  $region137: #{megnet_forward.1} parent=0 // pred_fallthru
    _
  // Predicated region
  $region138: #{megnet_forward.1} parent=0 // pred_check
    _
  $region139: #{megnet_forward.1} parent=0 // pred_check_branch
    %159 = sbr.rel (0) target = $region141
  $region140: #{megnet_forward.1} parent=0 // pred_region
    _
  $region141: #{megnet_forward.1} parent=0 // pred_fallthru
    _
  // Predicated region
  $region142: #{megnet_forward.1} parent=0 // pred_check
    _
  $region143: #{megnet_forward.1} parent=0 // pred_check_branch
    %161 = sbr.rel (0) target = $region145
  $region144: #{megnet_forward.1} parent=0 // pred_region
    _
  $region145: #{megnet_forward.1} parent=0 // pred_fallthru
    _
  // Predicated region
  $region146: #{megnet_forward.1} parent=0 // pred_check
    _
  $region147: #{megnet_forward.1} parent=0 // pred_check_branch
    %163 = sbr.rel (0) target = $region149
  $region148: #{megnet_forward.1} parent=0 // pred_region
    _
  $region149: #{megnet_forward.1} parent=0 // pred_fallthru
    _
  // Predicated region
  $region150: #{megnet_forward.1} parent=0 // pred_check
    _
  $region151: #{megnet_forward.1} parent=0 // pred_check_branch
    %165 = sbr.rel (0) target = $region153
  $region152: #{megnet_forward.1} parent=0 // pred_region
    _
  $region153: #{megnet_forward.1} parent=0 // pred_fallthru
    _
  // Predicated region
  $region154: #{megnet_forward.1} parent=0 // pred_check
    _
  $region155: #{megnet_forward.1} parent=0 // pred_check_branch
    %167 = sbr.rel (0) target = $region157
  $region156: #{megnet_forward.1} parent=0 // pred_region
    _
  $region157: #{megnet_forward.1} parent=0 // pred_fallthru
    _
  // Predicated region
  $region158: #{megnet_forward.1} parent=0 // pred_check
    _
  $region159: #{megnet_forward.1} parent=0 // pred_check_branch
    %169 = sbr.rel (0) target = $region161
  $region160: #{megnet_forward.1} parent=0 // pred_region
    _
  $region161: #{megnet_forward.1} parent=0 // pred_fallthru
    _
  // Predicated region
  $region162: #{megnet_forward.1} parent=0 // pred_check
    _
  $region163: #{megnet_forward.1} parent=0 // pred_check_branch
    %171 = sbr.rel (0) target = $region165
  $region164: #{megnet_forward.1} parent=0 // pred_region
    _
  $region165: #{megnet_forward.1} parent=0 // pred_fallthru
    _
  %v173 = vld [vmem:[%s11] sm:$0xff]
  %v174 = vld [vmem:[%s11 + $0x8] sm:$0xff]
  %v175 = vld [vmem:[%s15] sm:$0x3]
  %v176 = vld [vmem:[%s1] sm:$0xff]
  %v177 = vld [vmem:[%s1 + $0x8] sm:$0xff]
  %v178 = vld [vmem:[%s1 + $0x10] sm:$0xff]
  %v179 = vld [vmem:[%s1 + $0x18] sm:$0xff]
  %v180 = vld [vmem:[%s1 + $0x20] sm:$0xff]
  %v181 = vld [vmem:[%s1 + $0x28] sm:$0xff]
  %v182 = vld [vmem:[%s1 + $0x30] sm:$0xff]
  %v183 = vld [vmem:[%s1 + $0x38] sm:$0xff]
  %v184 = vld [vmem:[%s1 + $0x40] sm:$0xff]
  %v185 = vld [vmem:[%s1 + $0x48] sm:$0xff]
  %v186 = vld [vmem:[%s1 + $0x50] sm:$0xff]
  %v187 = vld [vmem:[%s1 + $0x58] sm:$0xff]
  %v188 = vld [vmem:[%s1 + $0x60] sm:$0xff]
  %v189 = vld [vmem:[%s1 + $0x68] sm:$0xff]
  %v190 = vld [vmem:[%s1 + $0x70] sm:$0xff]
  %v191 = vld [vmem:[%s1 + $0x78] sm:$0xff]
  %v192 = vld [vmem:[%s1 + $0x80] sm:$0xff]
  %v193 = vld [vmem:[%s1 + $0x88] sm:$0xff]
  %v194 = vld [vmem:[%s1 + $0x90] sm:$0xff]
  %v195 = vld [vmem:[%s1 + $0x98] sm:$0xff]
  %v196 = vld [vmem:[%s1 + $0xa0] sm:$0xff]
  %v197 = vld [vmem:[%s1 + $0xa8] sm:$0xff]
  %v198 = vld [vmem:[%s1 + $0xb0] sm:$0xff]
  %v199 = vld [vmem:[%s1 + $0xb8] sm:$0xff]
  %v200 = vld [vmem:[%s1 + $0xc0] sm:$0xff]
  %v201 = vld [vmem:[%s1 + $0xc8] sm:$0xff]
  %v202 = vld [vmem:[%s1 + $0xd0] sm:$0xff]
  %v203 = vld [vmem:[%s1 + $0xd8] sm:$0xff]
  %v204 = vld [vmem:[%s3] sm:$0x1]
  %206 = vset.pattern.permute.xlu0 0
  %207 = vperm.xlu0 %206, %v176
  %v208 = vpop.permute.xlu0 %207
  %211 = vset.pattern.permute.xlu0 0
  %212 = vperm.xlu0 %211, %v177
  %v213 = vpop.permute.xlu0 %212
  %216 = vset.pattern.permute.xlu0 0
  %217 = vperm.xlu0 %216, %v178
  %v218 = vpop.permute.xlu0 %217
  %221 = vset.pattern.permute.xlu0 0
  %222 = vperm.xlu0 %221, %v179
  %v223 = vpop.permute.xlu0 %222
  %226 = vset.pattern.permute.xlu0 0
  %227 = vperm.xlu0 %226, %v180
  %v228 = vpop.permute.xlu0 %227
  %231 = vset.pattern.permute.xlu0 0
  %232 = vperm.xlu0 %231, %v181
  %v233 = vpop.permute.xlu0 %232
  %236 = vset.pattern.permute.xlu0 0
  %237 = vperm.xlu0 %236, %v182
  %v238 = vpop.permute.xlu0 %237
  %241 = vset.pattern.permute.xlu0 0
  %242 = vperm.xlu0 %241, %v183
  %v243 = vpop.permute.xlu0 %242
  %246 = vset.pattern.permute.xlu0 0
  %247 = vperm.xlu0 %246, %v184
  %v248 = vpop.permute.xlu0 %247
  %251 = vset.pattern.permute.xlu0 0
  %252 = vperm.xlu0 %251, %v185
  %v253 = vpop.permute.xlu0 %252
  %256 = vset.pattern.permute.xlu0 0
  %257 = vperm.xlu0 %256, %v186
  %v258 = vpop.permute.xlu0 %257
  %261 = vset.pattern.permute.xlu0 0
  %262 = vperm.xlu0 %261, %v187
  %v263 = vpop.permute.xlu0 %262
  %266 = vset.pattern.permute.xlu0 0
  %267 = vperm.xlu0 %266, %v188
  %v268 = vpop.permute.xlu0 %267
  %271 = vset.pattern.permute.xlu0 0
  %272 = vperm.xlu0 %271, %v189
  %v273 = vpop.permute.xlu0 %272
  %276 = vset.pattern.permute.xlu0 0
  %277 = vperm.xlu0 %276, %v190
  %v278 = vpop.permute.xlu0 %277
  %281 = vset.pattern.permute.xlu0 0
  %282 = vperm.xlu0 %281, %v191
  %v283 = vpop.permute.xlu0 %282
  %286 = vset.pattern.permute.xlu0 0
  %287 = vperm.xlu0 %286, %v192
  %v288 = vpop.permute.xlu0 %287
  %291 = vset.pattern.permute.xlu0 0
  %292 = vperm.xlu0 %291, %v193
  %v293 = vpop.permute.xlu0 %292
  %296 = vset.pattern.permute.xlu0 0
  %297 = vperm.xlu0 %296, %v194
  %v298 = vpop.permute.xlu0 %297
  %301 = vset.pattern.permute.xlu0 0
  %302 = vperm.xlu0 %301, %v195
  %v303 = vpop.permute.xlu0 %302
  %306 = vset.pattern.permute.xlu0 0
  %307 = vperm.xlu0 %306, %v196
  %v308 = vpop.permute.xlu0 %307
  %311 = vset.pattern.permute.xlu0 0
  %312 = vperm.xlu0 %311, %v197
  %v313 = vpop.permute.xlu0 %312
  %316 = vset.pattern.permute.xlu0 0
  %317 = vperm.xlu0 %316, %v198
  %v318 = vpop.permute.xlu0 %317
  %321 = vset.pattern.permute.xlu0 0
  %322 = vperm.xlu0 %321, %v199
  %v323 = vpop.permute.xlu0 %322
  %326 = vset.pattern.permute.xlu0 0
  %327 = vperm.xlu0 %326, %v200
  %v328 = vpop.permute.xlu0 %327
  %331 = vset.pattern.permute.xlu0 0
  %332 = vperm.xlu0 %331, %v201
  %v333 = vpop.permute.xlu0 %332
  %336 = vset.pattern.permute.xlu0 0
  %337 = vperm.xlu0 %336, %v202
  %v338 = vpop.permute.xlu0 %337
  %341 = vset.pattern.permute.xlu0 0
  %342 = vperm.xlu0 %341, %v203
  %v343 = vpop.permute.xlu0 %342
  %v346 = vlaneseq
  %v347 = vshrl.u32 %v346, 7
  %v348 = vsub.s32 0, %v347
  %v349 = vrot.slane %v204, %v348
  %v351 = vsub.f32 %v208, %v349
  %v352 = vsub.f32 %v213, %v349
  %v353 = vsub.f32 %v218, %v349
  %v354 = vsub.f32 %v223, %v349
  %v355 = vsub.f32 %v228, %v349
  %v356 = vsub.f32 %v233, %v349
  %v357 = vsub.f32 %v238, %v349
  %v358 = vsub.f32 %v243, %v349
  %v359 = vsub.f32 %v248, %v349
  %v360 = vsub.f32 %v253, %v349
  %v361 = vsub.f32 %v258, %v349
  %v362 = vsub.f32 %v263, %v349
  %v363 = vsub.f32 %v268, %v349
  %v364 = vsub.f32 %v273, %v349
  %v365 = vsub.f32 %v278, %v349
  %v366 = vsub.f32 %v283, %v349
  %v367 = vsub.f32 %v288, %v349
  %v368 = vsub.f32 %v293, %v349
  %v369 = vsub.f32 %v298, %v349
  %v370 = vsub.f32 %v303, %v349
  %v371 = vsub.f32 %v308, %v349
  %v372 = vsub.f32 %v313, %v349
  %v373 = vsub.f32 %v318, %v349
  %v374 = vsub.f32 %v323, %v349
  %v375 = vsub.f32 %v328, %v349
  %v376 = vsub.f32 %v333, %v349
  %v377 = vsub.f32 %v338, %v349
  %v378 = vsub.f32 %v343, %v349
  %v379 = vmul.f32 %v351, -13.347223
  %v380 = vmul.f32 %v352, -13.347223
  %v381 = vmul.f32 %v353, -13.347223
  %v382 = vmul.f32 %v354, -13.347223
  %v383 = vmul.f32 %v355, -13.347223
  %v384 = vmul.f32 %v356, -13.347223
  %v385 = vmul.f32 %v357, -13.347223
  %v386 = vmul.f32 %v358, -13.347223
  %v387 = vmul.f32 %v359, -13.347223
  %v388 = vmul.f32 %v360, -13.347223
  %v389 = vmul.f32 %v361, -13.347223
  %v390 = vmul.f32 %v362, -13.347223
  %v391 = vmul.f32 %v363, -13.347223
  %v392 = vmul.f32 %v364, -13.347223
  %v393 = vmul.f32 %v365, -13.347223
  %v394 = vmul.f32 %v366, -13.347223
  %v395 = vmul.f32 %v367, -13.347223
  %v396 = vmul.f32 %v368, -13.347223
  %v397 = vmul.f32 %v369, -13.347223
  %v398 = vmul.f32 %v370, -13.347223
  %v399 = vmul.f32 %v371, -13.347223
  %v400 = vmul.f32 %v372, -13.347223
  %v401 = vmul.f32 %v373, -13.347223
  %v402 = vmul.f32 %v374, -13.347223
  %v403 = vmul.f32 %v375, -13.347223
  %v404 = vmul.f32 %v376, -13.347223
  %v405 = vmul.f32 %v377, -13.347223
  %v406 = vmul.f32 %v378, -13.347223
  %v407 = vmul.f32 %v379, %v351
  %v408 = vmul.f32 %v380, %v352
  %v409 = vmul.f32 %v381, %v353
  %v410 = vmul.f32 %v382, %v354
  %v411 = vmul.f32 %v383, %v355
  %v412 = vmul.f32 %v384, %v356
  %v413 = vmul.f32 %v385, %v357
  %v414 = vmul.f32 %v386, %v358
  %v415 = vmul.f32 %v387, %v359
  %v416 = vmul.f32 %v388, %v360
  %v417 = vmul.f32 %v389, %v361
  %v418 = vmul.f32 %v390, %v362
  %v419 = vmul.f32 %v391, %v363
  %v420 = vmul.f32 %v392, %v364
  %v421 = vmul.f32 %v393, %v365
  %v422 = vmul.f32 %v394, %v366
  %v423 = vmul.f32 %v395, %v367
  %v424 = vmul.f32 %v396, %v368
  %v425 = vmul.f32 %v397, %v369
  %v426 = vmul.f32 %v398, %v370
  %v427 = vmul.f32 %v399, %v371
  %v428 = vmul.f32 %v400, %v372
  %v429 = vmul.f32 %v401, %v373
  %v430 = vmul.f32 %v402, %v374
  %v431 = vmul.f32 %v403, %v375
  %v432 = vmul.f32 %v404, %v376
  %v433 = vmul.f32 %v405, %v377
  %v434 = vmul.f32 %v406, %v378
  %v435 = vmul.f32 %v407, 1.442695
  %v436 = vpow.pop %v435
  %v437 = vmul.f32 %v408, 1.442695
  %v438 = vpow.pop %v437
  %v439 = vmul.f32 %v409, 1.442695
  %v440 = vpow.pop %v439
  %v441 = vmul.f32 %v410, 1.442695
  %v442 = vpow.pop %v441
  %v443 = vmul.f32 %v411, 1.442695
  %v444 = vpow.pop %v443
  %v445 = vmul.f32 %v412, 1.442695
  %v446 = vpow.pop %v445
  %v447 = vmul.f32 %v413, 1.442695
  %v448 = vpow.pop %v447
  %v449 = vmul.f32 %v414, 1.442695
  %v450 = vpow.pop %v449
  %v451 = vmul.f32 %v415, 1.442695
  %v452 = vpow.pop %v451
  %v453 = vmul.f32 %v416, 1.442695
  %v454 = vpow.pop %v453
  %v455 = vmul.f32 %v417, 1.442695
  %v456 = vpow.pop %v455
  %v457 = vmul.f32 %v418, 1.442695
  %v458 = vpow.pop %v457
  %v459 = vmul.f32 %v419, 1.442695
  %v460 = vpow.pop %v459
  %v461 = vmul.f32 %v420, 1.442695
  %v462 = vpow.pop %v461
  %v463 = vmul.f32 %v421, 1.442695
  %v464 = vpow.pop %v463
  %v465 = vmul.f32 %v422, 1.442695
  %v466 = vpow.pop %v465
  %v467 = vmul.f32 %v423, 1.442695
  %v468 = vpow.pop %v467
  %v469 = vmul.f32 %v424, 1.442695
  %v470 = vpow.pop %v469
  %v471 = vmul.f32 %v425, 1.442695
  %v472 = vpow.pop %v471
  %v473 = vmul.f32 %v426, 1.442695
  %v474 = vpow.pop %v473
  %v475 = vmul.f32 %v427, 1.442695
  %v476 = vpow.pop %v475
  %v477 = vmul.f32 %v428, 1.442695
  %v478 = vpow.pop %v477
  %v479 = vmul.f32 %v429, 1.442695
  %v480 = vpow.pop %v479
  %v481 = vmul.f32 %v430, 1.442695
  %v482 = vpow.pop %v481
  %v483 = vmul.f32 %v431, 1.442695
  %v484 = vpow.pop %v483
  %v485 = vmul.f32 %v432, 1.442695
  %v486 = vpow.pop %v485
  %v487 = vmul.f32 %v433, 1.442695
  %v488 = vpow.pop %v487
  %v489 = vmul.f32 %v434, 1.442695
  %v490 = vpow.pop %v489
  %v491 = vld [vmem:[%s23] sm:$0xf]
  %v492 = vld [vmem:[%s23 + $0x4] sm:$0xf]
  %v493 = vld [vmem:[%s23 + $0x8] sm:$0xf]
  %v494 = vld [vmem:[%s23 + $0xc] sm:$0xf]
  %v495 = vld [vmem:[%s23 + $0x10] sm:$0xf]
  %v496 = vld [vmem:[%s23 + $0x14] sm:$0xf]
  %v497 = vld [vmem:[%s23 + $0x18] sm:$0xf]
  %v498 = vld [vmem:[%s23 + $0x1c] sm:$0xf]
  %v499 = vld [vmem:[%s23 + $0x20] sm:$0xf]
  %v500 = vld [vmem:[%s23 + $0x24] sm:$0xf]
  %v501 = vld [vmem:[%s23 + $0x28] sm:$0xf]
  %v502 = vld [vmem:[%s23 + $0x2c] sm:$0xf]
  %v503 = vld [vmem:[%s23 + $0x30] sm:$0xf]
  %v504 = vld [vmem:[%s23 + $0x34] sm:$0xf]
  %v505 = vld [vmem:[%s23 + $0x38] sm:$0xf]
  %v506 = vld [vmem:[%s23 + $0x3c] sm:$0xf]
  %v507 = vld [vmem:[%s5] sm:$0xff]
  %v508 = vld [vmem:[%s5 + $0x8] sm:$0xff]
  %v509 = vld [vmem:[%s5 + $0x10] sm:$0xff]
  %v510 = vld [vmem:[%s5 + $0x18] sm:$0xff]
  %v511 = vld [vmem:[%s5 + $0x20] sm:$0xff]
  %v512 = vld [vmem:[%s5 + $0x28] sm:$0xff]
  %v513 = vld [vmem:[%s5 + $0x30] sm:$0xff]
  %v514 = vld [vmem:[%s5 + $0x38] sm:$0xff]
  %v515 = vld [vmem:[%s5 + $0x40] sm:$0xff]
  %v516 = vld [vmem:[%s5 + $0x48] sm:$0xff]
  %v517 = vld [vmem:[%s5 + $0x50] sm:$0xff]
  %v518 = vld [vmem:[%s5 + $0x58] sm:$0xff]
  %v519 = vld [vmem:[%s5 + $0x60] sm:$0xff]
  %v520 = vld [vmem:[%s5 + $0x68] sm:$0xff]
  %v521 = vld [vmem:[%s5 + $0x70] sm:$0xff]
  %v522 = vld [vmem:[%s5 + $0x78] sm:$0xff]
  %v523 = vld [vmem:[%s5 + $0x80] sm:$0xff]
  %v524 = vld [vmem:[%s5 + $0x88] sm:$0xff]
  %v525 = vld [vmem:[%s5 + $0x90] sm:$0xff]
  %v526 = vld [vmem:[%s5 + $0x98] sm:$0xff]
  %v527 = vld [vmem:[%s5 + $0xa0] sm:$0xff]
  %v528 = vld [vmem:[%s5 + $0xa8] sm:$0xff]
  %v529 = vld [vmem:[%s5 + $0xb0] sm:$0xff]
  %v530 = vld [vmem:[%s5 + $0xb8] sm:$0xff]
  %v531 = vld [vmem:[%s5 + $0xc0] sm:$0xff]
  %v532 = vld [vmem:[%s5 + $0xc8] sm:$0xff]
  %v533 = vld [vmem:[%s5 + $0xd0] sm:$0xff]
  %v534 = vld [vmem:[%s5 + $0xd8] sm:$0xff]
  %v535 = vpack.c.bf16 %v508, %v507
  %v536 = vpack.c.bf16 %v510, %v509
  %v537 = vpack.c.bf16 %v512, %v511
  %v538 = vpack.c.bf16 %v514, %v513
  %v539 = vpack.c.bf16 %v516, %v515
  %v540 = vpack.c.bf16 %v518, %v517
  %v541 = vpack.c.bf16 %v520, %v519
  %v542 = vpack.c.bf16 %v522, %v521
  %v543 = vpack.c.bf16 %v524, %v523
  %v544 = vpack.c.bf16 %v526, %v525
  %v545 = vpack.c.bf16 %v528, %v527
  %v546 = vpack.c.bf16 %v530, %v529
  %v547 = vpack.c.bf16 %v532, %v531
  %v548 = vpack.c.bf16 %v534, %v533
  %v549 = vld [vmem:[%s7] sm:$0xff]
  %v550 = vld [vmem:[%s7 + $0x8] sm:$0xff]
  %v551 = vld [vmem:[%s7 + $0x10] sm:$0xff]
  %v552 = vld [vmem:[%s7 + $0x18] sm:$0xff]
  %v553 = vld [vmem:[%s7 + $0x20] sm:$0xff]
  %v554 = vld [vmem:[%s7 + $0x28] sm:$0xff]
  %v555 = vld [vmem:[%s7 + $0x30] sm:$0xff]
  %v556 = vld [vmem:[%s7 + $0x38] sm:$0xff]
  %v557 = vld [vmem:[%s7 + $0x40] sm:$0xff]
  %v558 = vld [vmem:[%s7 + $0x48] sm:$0xff]
  %v559 = vld [vmem:[%s7 + $0x50] sm:$0xff]
  %v560 = vld [vmem:[%s7 + $0x58] sm:$0xff]
  %v561 = vld [vmem:[%s7 + $0x60] sm:$0xff]
  %v562 = vld [vmem:[%s7 + $0x68] sm:$0xff]
  %v563 = vld [vmem:[%s7 + $0x70] sm:$0xff]
  %v564 = vld [vmem:[%s7 + $0x78] sm:$0xff]
  %v565 = vld [vmem:[%s7 + $0x80] sm:$0xff]
  %v566 = vld [vmem:[%s7 + $0x88] sm:$0xff]
  %v567 = vld [vmem:[%s7 + $0x90] sm:$0xff]
  %v568 = vld [vmem:[%s7 + $0x98] sm:$0xff]
  %v569 = vld [vmem:[%s7 + $0xa0] sm:$0xff]
  %v570 = vld [vmem:[%s7 + $0xa8] sm:$0xff]
  %v571 = vld [vmem:[%s7 + $0xb0] sm:$0xff]
  %v572 = vld [vmem:[%s7 + $0xb8] sm:$0xff]
  %v573 = vld [vmem:[%s7 + $0xc0] sm:$0xff]
  %v574 = vld [vmem:[%s7 + $0xc8] sm:$0xff]
  %v575 = vld [vmem:[%s7 + $0xd0] sm:$0xff]
  %v576 = vld [vmem:[%s7 + $0xd8] sm:$0xff]
  %v577 = vpack.c.bf16 %v550, %v549
  %v578 = vpack.c.bf16 %v552, %v551
  %v579 = vpack.c.bf16 %v554, %v553
  %v580 = vpack.c.bf16 %v556, %v555
  %v581 = vpack.c.bf16 %v558, %v557
  %v582 = vpack.c.bf16 %v560, %v559
  %v583 = vpack.c.bf16 %v562, %v561
  %v584 = vpack.c.bf16 %v564, %v563
  %v585 = vpack.c.bf16 %v566, %v565
  %v586 = vpack.c.bf16 %v568, %v567
  %v587 = vpack.c.bf16 %v570, %v569
  %v588 = vpack.c.bf16 %v572, %v571
  %v589 = vpack.c.bf16 %v574, %v573
  %v590 = vpack.c.bf16 %v576, %v575
  %v595 = vunpack.c.l.b16 %v495
  %v596 = vunpack.c.l.b16 %v496
  %v597 = vunpack.c.l.b16 %v497
  %v598 = vunpack.c.l.b16 %v498
  %v599 = vpack.c.b16 %v596, %v595
  %v600 = vpack.c.b16 %v598, %v597
  %vm603 = vcmask 261120
  %v605 = vsel %vm603, %v577, 0
  %v608 = vsel %vm603, %v578, 0
  %v611 = vsel %vm603, %v579, 0
  %v614 = vsel %vm603, %v580, 0
  %v617 = vsel %vm603, %v581, 0
  %v620 = vsel %vm603, %v582, 0
  %v623 = vsel %vm603, %v583, 0
  %v626 = vsel %vm603, %v584, 0
  %v629 = vsel %vm603, %v585, 0
  %v632 = vsel %vm603, %v586, 0
  %v635 = vsel %vm603, %v587, 0
  %v638 = vsel %vm603, %v588, 0
  %v641 = vsel %vm603, %v589, 0
  %v644 = vsel %vm603, %v590, 0
  %646 = vmatprep.subr.bf16.mxu0 0
  %647 = vmatpush1.bf16.msra.mxu0 0
  %648 = vmatprep.subr.bf16.mxu0 0
  %649 = vmatpush1.bf16.msra.mxu0 0
  %650 = vmatprep.subr.bf16.mxu0 0
  %651 = vmatpush1.bf16.msra.mxu0 0
  %652 = vmatprep.subr.bf16.mxu0 0
  %653 = vmatpush1.bf16.msra.mxu0 0
  %654 = vmatprep.subr.bf16.mxu0 0
  %655 = vmatpush1.bf16.msra.mxu0 0
  %656 = vmatprep.subr.bf16.mxu0 0
  %657 = vmatpush1.bf16.msra.mxu0 0
  %658 = vmatprep.subr.bf16.mxu0 0
  %659 = vmatpush1.bf16.msra.mxu0 %v600
  %660 = vmatprep.subr.bf16.mxu0 0
  %661 = vmatpush1.bf16.msra.mxu0 %v599
  %662 = vmatprep.subr.bf16.mxu0 0
  %663 = vmatpush2.bf16.msra.mxu0 0
  %664 = vmatprep.subr.bf16.mxu0 0
  %665 = vmatpush2.bf16.msra.mxu0 0
  %666 = vmatprep.subr.bf16.mxu0 0
  %667 = vmatpush2.bf16.msra.mxu0 0
  %668 = vmatprep.subr.bf16.mxu0 0
  %669 = vmatpush2.bf16.msra.mxu0 0
  %670 = vmatprep.subr.bf16.mxu0 0
  %671 = vmatpush2.bf16.msra.mxu0 0
  %672 = vmatprep.subr.bf16.mxu0 0
  %673 = vmatpush2.bf16.msra.mxu0 0
  %674 = vmatprep.subr.bf16.mxu0 0
  %675 = vmatpush2.bf16.msra.mxu0 0
  %676 = vmatprep.subr.bf16.mxu0 0
  %677 = vmatpush2.bf16.msra.mxu0 0
  %678 = vmatprep.mubr.bf16.mxu0 0
  %679 = vmatmul.mubr.bf16.gmra.mxu0 %v605
  %v680 = vpop.f32.mrf.mxu0
  %v681 = vadd.f32 0.0, %v680
  %v682 = vpop.f32.mrf.mxu0
  %v683 = vpop.f32.mrf.mxu0
  %v684 = vadd.f32 0.0, %v683
  %v685 = vpop.f32.mrf.mxu0
  %686 = vmatprep.mubr.bf16.mxu0 0
  %687 = vmatmul.mubr.bf16.gmra.mxu0 %v608
  %v688 = vpop.f32.mrf.mxu0
  %v689 = vadd.f32 0.0, %v688
  %v690 = vpop.f32.mrf.mxu0
  %v691 = vpop.f32.mrf.mxu0
  %v692 = vadd.f32 0.0, %v691
  %v693 = vpop.f32.mrf.mxu0
  %694 = vmatprep.mubr.bf16.mxu0 0
  %695 = vmatmul.mubr.bf16.gmra.mxu0 %v611
  %v696 = vpop.f32.mrf.mxu0
  %v697 = vadd.f32 0.0, %v696
  %v698 = vpop.f32.mrf.mxu0
  %v699 = vpop.f32.mrf.mxu0
  %v700 = vadd.f32 0.0, %v699
  %v701 = vpop.f32.mrf.mxu0
  %702 = vmatprep.mubr.bf16.mxu0 0
  %703 = vmatmul.mubr.bf16.gmra.mxu0 %v614
  %v704 = vpop.f32.mrf.mxu0
  %v705 = vadd.f32 0.0, %v704
  %v706 = vpop.f32.mrf.mxu0
  %v707 = vpop.f32.mrf.mxu0
  %v708 = vadd.f32 0.0, %v707
  %v709 = vpop.f32.mrf.mxu0
  %710 = vmatprep.mubr.bf16.mxu0 0
  %711 = vmatmul.mubr.bf16.gmra.mxu0 %v617
  %v712 = vpop.f32.mrf.mxu0
  %v713 = vadd.f32 0.0, %v712
  %v714 = vpop.f32.mrf.mxu0
  %v715 = vpop.f32.mrf.mxu0
  %v716 = vadd.f32 0.0, %v715
  %v717 = vpop.f32.mrf.mxu0
  %718 = vmatprep.mubr.bf16.mxu0 0
  %719 = vmatmul.mubr.bf16.gmra.mxu0 %v620
  %v720 = vpop.f32.mrf.mxu0
  %v721 = vadd.f32 0.0, %v720
  %v722 = vpop.f32.mrf.mxu0
  %v723 = vpop.f32.mrf.mxu0
  %v724 = vadd.f32 0.0, %v723
  %v725 = vpop.f32.mrf.mxu0
  %726 = vmatprep.mubr.bf16.mxu0 0
  %727 = vmatmul.mubr.bf16.gmra.mxu0 %v623
  %v728 = vpop.f32.mrf.mxu0
  %v729 = vadd.f32 0.0, %v728
  %v730 = vpop.f32.mrf.mxu0
  %v731 = vpop.f32.mrf.mxu0
  %v732 = vadd.f32 0.0, %v731
  %v733 = vpop.f32.mrf.mxu0
  %734 = vmatprep.mubr.bf16.mxu0 0
  %735 = vmatmul.mubr.bf16.gmra.mxu0 %v626
  %v736 = vpop.f32.mrf.mxu0
  %v737 = vadd.f32 0.0, %v736
  %v738 = vpop.f32.mrf.mxu0
  %v739 = vpop.f32.mrf.mxu0
  %v740 = vadd.f32 0.0, %v739
  %v741 = vpop.f32.mrf.mxu0
  %742 = vmatprep.mubr.bf16.mxu0 0
  %743 = vmatmul.mubr.bf16.gmra.mxu0 %v629
  %v744 = vpop.f32.mrf.mxu0
  %v745 = vadd.f32 0.0, %v744
  %v746 = vpop.f32.mrf.mxu0
  %v747 = vpop.f32.mrf.mxu0
  %v748 = vadd.f32 0.0, %v747
  %v749 = vpop.f32.mrf.mxu0
  %750 = vmatprep.mubr.bf16.mxu0 0
  %751 = vmatmul.mubr.bf16.gmra.mxu0 %v632
  %v752 = vpop.f32.mrf.mxu0
  %v753 = vadd.f32 0.0, %v752
  %v754 = vpop.f32.mrf.mxu0
  %v755 = vpop.f32.mrf.mxu0
  %v756 = vadd.f32 0.0, %v755
  %v757 = vpop.f32.mrf.mxu0
  %758 = vmatprep.mubr.bf16.mxu0 0
  %759 = vmatmul.mubr.bf16.gmra.mxu0 %v635
  %v760 = vpop.f32.mrf.mxu0
  %v761 = vadd.f32 0.0, %v760
  %v762 = vpop.f32.mrf.mxu0
  %v763 = vpop.f32.mrf.mxu0
  %v764 = vadd.f32 0.0, %v763
  %v765 = vpop.f32.mrf.mxu0
  %766 = vmatprep.mubr.bf16.mxu0 0
  %767 = vmatmul.mubr.bf16.gmra.mxu0 %v638
  %v768 = vpop.f32.mrf.mxu0
  %v769 = vadd.f32 0.0, %v768
  %v770 = vpop.f32.mrf.mxu0
  %v771 = vpop.f32.mrf.mxu0
  %v772 = vadd.f32 0.0, %v771
  %v773 = vpop.f32.mrf.mxu0
  %774 = vmatprep.mubr.bf16.mxu0 0
  %775 = vmatmul.mubr.bf16.gmra.mxu0 %v641
  %v776 = vpop.f32.mrf.mxu0
  %v777 = vadd.f32 0.0, %v776
  %v778 = vpop.f32.mrf.mxu0
  %v779 = vpop.f32.mrf.mxu0
  %v780 = vadd.f32 0.0, %v779
  %v781 = vpop.f32.mrf.mxu0
  %782 = vmatprep.mubr.bf16.mxu0 0
  %783 = vmatmul.mubr.bf16.gmra.mxu0 %v644
  %v784 = vpop.f32.mrf.mxu0
  %v785 = vadd.f32 0.0, %v784
  %v786 = vpop.f32.mrf.mxu0
  %v787 = vpop.f32.mrf.mxu0
  %v788 = vadd.f32 0.0, %v787
  %v789 = vpop.f32.mrf.mxu0
  %790 = vdwg.mxu0
  %v795 = vunpack.c.l.b16 %v491
  %v796 = vunpack.c.l.b16 %v492
  %v797 = vunpack.c.l.b16 %v493
  %v798 = vunpack.c.l.b16 %v494
  %v799 = vpack.c.b16 %v796, %v795
  %v800 = vpack.c.b16 %v798, %v797
  %v804 = vsel %vm603, %v535, 0
  %v807 = vsel %vm603, %v536, 0
  %v810 = vsel %vm603, %v537, 0
  %v813 = vsel %vm603, %v538, 0
  %v816 = vsel %vm603, %v539, 0
  %v819 = vsel %vm603, %v540, 0
  %v822 = vsel %vm603, %v541, 0
  %v825 = vsel %vm603, %v542, 0
  %v828 = vsel %vm603, %v543, 0
  %v831 = vsel %vm603, %v544, 0
  %v834 = vsel %vm603, %v545, 0
  %v837 = vsel %vm603, %v546, 0
  %v840 = vsel %vm603, %v547, 0
  %v843 = vsel %vm603, %v548, 0
  %845 = vmatprep.subr.bf16.mxu0 0
  %846 = vmatpush1.bf16.msra.mxu0 0
  %847 = vmatprep.subr.bf16.mxu0 0
  %848 = vmatpush1.bf16.msra.mxu0 0
  %849 = vmatprep.subr.bf16.mxu0 0
  %850 = vmatpush1.bf16.msra.mxu0 0
  %851 = vmatprep.subr.bf16.mxu0 0
  %852 = vmatpush1.bf16.msra.mxu0 0
  %853 = vmatprep.subr.bf16.mxu0 0
  %854 = vmatpush1.bf16.msra.mxu0 0
  %855 = vmatprep.subr.bf16.mxu0 0
  %856 = vmatpush1.bf16.msra.mxu0 0
  %857 = vmatprep.subr.bf16.mxu0 0
  %858 = vmatpush1.bf16.msra.mxu0 %v800
  %859 = vmatprep.subr.bf16.mxu0 0
  %860 = vmatpush1.bf16.msra.mxu0 %v799
  %861 = vmatprep.subr.bf16.mxu0 0
  %862 = vmatpush2.bf16.msra.mxu0 0
  %863 = vmatprep.subr.bf16.mxu0 0
  %864 = vmatpush2.bf16.msra.mxu0 0
  %865 = vmatprep.subr.bf16.mxu0 0
  %866 = vmatpush2.bf16.msra.mxu0 0
  %867 = vmatprep.subr.bf16.mxu0 0
  %868 = vmatpush2.bf16.msra.mxu0 0
  %869 = vmatprep.subr.bf16.mxu0 0
  %870 = vmatpush2.bf16.msra.mxu0 0
  %871 = vmatprep.subr.bf16.mxu0 0
  %872 = vmatpush2.bf16.msra.mxu0 0
  %873 = vmatprep.subr.bf16.mxu0 0
  %874 = vmatpush2.bf16.msra.mxu0 0
  %875 = vmatprep.subr.bf16.mxu0 0
  %876 = vmatpush2.bf16.msra.mxu0 0
  %877 = vmatprep.mubr.bf16.mxu0 0
  %878 = vmatmul.mubr.bf16.gmra.mxu0 %v804
  %v879 = vpop.f32.mrf.mxu0
  %v880 = vadd.f32 %v681, %v879
  %v881 = vpop.f32.mrf.mxu0
  %v882 = vpop.f32.mrf.mxu0
  %v883 = vadd.f32 %v684, %v882
  %v884 = vpop.f32.mrf.mxu0
  %885 = vmatprep.mubr.bf16.mxu0 0
  %886 = vmatmul.mubr.bf16.gmra.mxu0 %v807
  %v887 = vpop.f32.mrf.mxu0
  %v888 = vadd.f32 %v689, %v887
  %v889 = vpop.f32.mrf.mxu0
  %v890 = vpop.f32.mrf.mxu0
  %v891 = vadd.f32 %v692, %v890
  %v892 = vpop.f32.mrf.mxu0
  %893 = vmatprep.mubr.bf16.mxu0 0
  %894 = vmatmul.mubr.bf16.gmra.mxu0 %v810
  %v895 = vpop.f32.mrf.mxu0
  %v896 = vadd.f32 %v697, %v895
  %v897 = vpop.f32.mrf.mxu0
  %v898 = vpop.f32.mrf.mxu0
  %v899 = vadd.f32 %v700, %v898
  %v900 = vpop.f32.mrf.mxu0
  %901 = vmatprep.mubr.bf16.mxu0 0
  %902 = vmatmul.mubr.bf16.gmra.mxu0 %v813
  %v903 = vpop.f32.mrf.mxu0
  %v904 = vadd.f32 %v705, %v903
  %v905 = vpop.f32.mrf.mxu0
  %v906 = vpop.f32.mrf.mxu0
  %v907 = vadd.f32 %v708, %v906
  %v908 = vpop.f32.mrf.mxu0
  %909 = vmatprep.mubr.bf16.mxu0 0
  %910 = vmatmul.mubr.bf16.gmra.mxu0 %v816
  %v911 = vpop.f32.mrf.mxu0
  %v912 = vadd.f32 %v713, %v911
  %v913 = vpop.f32.mrf.mxu0
  %v914 = vpop.f32.mrf.mxu0
  %v915 = vadd.f32 %v716, %v914
  %v916 = vpop.f32.mrf.mxu0
  %917 = vmatprep.mubr.bf16.mxu0 0
  %918 = vmatmul.mubr.bf16.gmra.mxu0 %v819
  %v919 = vpop.f32.mrf.mxu0
  %v920 = vadd.f32 %v721, %v919
  %v921 = vpop.f32.mrf.mxu0
  %v922 = vpop.f32.mrf.mxu0
  %v923 = vadd.f32 %v724, %v922
  %v924 = vpop.f32.mrf.mxu0
  %925 = vmatprep.mubr.bf16.mxu0 0
  %926 = vmatmul.mubr.bf16.gmra.mxu0 %v822
  %v927 = vpop.f32.mrf.mxu0
  %v928 = vadd.f32 %v729, %v927
  %v929 = vpop.f32.mrf.mxu0
  %v930 = vpop.f32.mrf.mxu0
  %v931 = vadd.f32 %v732, %v930
  %v932 = vpop.f32.mrf.mxu0
  %933 = vmatprep.mubr.bf16.mxu0 0
  %934 = vmatmul.mubr.bf16.gmra.mxu0 %v825
  %v935 = vpop.f32.mrf.mxu0
  %v936 = vadd.f32 %v737, %v935
  %v937 = vpop.f32.mrf.mxu0
  %v938 = vpop.f32.mrf.mxu0
  %v939 = vadd.f32 %v740, %v938
  %v940 = vpop.f32.mrf.mxu0
  %941 = vmatprep.mubr.bf16.mxu0 0
  %942 = vmatmul.mubr.bf16.gmra.mxu0 %v828
  %v943 = vpop.f32.mrf.mxu0
  %v944 = vadd.f32 %v745, %v943
  %v945 = vpop.f32.mrf.mxu0
  %v946 = vpop.f32.mrf.mxu0
  %v947 = vadd.f32 %v748, %v946
  %v948 = vpop.f32.mrf.mxu0
  %949 = vmatprep.mubr.bf16.mxu0 0
  %950 = vmatmul.mubr.bf16.gmra.mxu0 %v831
  %v951 = vpop.f32.mrf.mxu0
  %v952 = vadd.f32 %v753, %v951
  %v953 = vpop.f32.mrf.mxu0
  %v954 = vpop.f32.mrf.mxu0
  %v955 = vadd.f32 %v756, %v954
  %v956 = vpop.f32.mrf.mxu0
  %957 = vmatprep.mubr.bf16.mxu0 0
  %958 = vmatmul.mubr.bf16.gmra.mxu0 %v834
  %v959 = vpop.f32.mrf.mxu0
  %v960 = vadd.f32 %v761, %v959
  %v961 = vpop.f32.mrf.mxu0
  %v962 = vpop.f32.mrf.mxu0
  %v963 = vadd.f32 %v764, %v962
  %v964 = vpop.f32.mrf.mxu0
  %965 = vmatprep.mubr.bf16.mxu0 0
  %966 = vmatmul.mubr.bf16.gmra.mxu0 %v837
  %v967 = vpop.f32.mrf.mxu0
  %v968 = vadd.f32 %v769, %v967
  %v969 = vpop.f32.mrf.mxu0
  %v970 = vpop.f32.mrf.mxu0
  %v971 = vadd.f32 %v772, %v970
  %v972 = vpop.f32.mrf.mxu0
  %973 = vmatprep.mubr.bf16.mxu0 0
  %974 = vmatmul.mubr.bf16.gmra.mxu0 %v840
  %v975 = vpop.f32.mrf.mxu0
  %v976 = vadd.f32 %v777, %v975
  %v977 = vpop.f32.mrf.mxu0
  %v978 = vpop.f32.mrf.mxu0
  %v979 = vadd.f32 %v780, %v978
  %v980 = vpop.f32.mrf.mxu0
  %981 = vmatprep.mubr.bf16.mxu0 0
  %982 = vmatmul.mubr.bf16.gmra.mxu0 %v843
  %v983 = vpop.f32.mrf.mxu0
  %v984 = vadd.f32 %v785, %v983
  %v985 = vpop.f32.mrf.mxu0
  %v986 = vpop.f32.mrf.mxu0
  %v987 = vadd.f32 %v788, %v986
  %v988 = vpop.f32.mrf.mxu0
  %989 = vdwg.mxu0
  %v990 = vpack.c.bf16 %v438, %v436
  %v991 = vpack.c.bf16 %v442, %v440
  %v992 = vpack.c.bf16 %v446, %v444
  %v993 = vpack.c.bf16 %v450, %v448
  %v994 = vpack.c.bf16 %v454, %v452
  %v995 = vpack.c.bf16 %v458, %v456
  %v996 = vpack.c.bf16 %v462, %v460
  %v997 = vpack.c.bf16 %v466, %v464
  %v998 = vpack.c.bf16 %v470, %v468
  %v999 = vpack.c.bf16 %v474, %v472
  %v1000 = vpack.c.bf16 %v478, %v476
  %v1001 = vpack.c.bf16 %v482, %v480
  %v1002 = vpack.c.bf16 %v486, %v484
  %v1003 = vpack.c.bf16 %v490, %v488
  %v1008 = vunpack.c.l.b16 %v499
  %v1009 = vunpack.c.l.b16 %v500
  %v1010 = vunpack.c.l.b16 %v501
  %v1011 = vunpack.c.l.b16 %v502
  %v1012 = vpack.c.b16 %v1009, %v1008
  %v1013 = vpack.c.b16 %v1011, %v1010
  %v1017 = vsel %vm603, %v990, 0
  %v1020 = vsel %vm603, %v991, 0
  %v1023 = vsel %vm603, %v992, 0
  %v1026 = vsel %vm603, %v993, 0
  %v1029 = vsel %vm603, %v994, 0
  %v1032 = vsel %vm603, %v995, 0
  %v1035 = vsel %vm603, %v996, 0
  %v1038 = vsel %vm603, %v997, 0
  %v1041 = vsel %vm603, %v998, 0
  %v1044 = vsel %vm603, %v999, 0
  %v1047 = vsel %vm603, %v1000, 0
  %v1050 = vsel %vm603, %v1001, 0
  %v1053 = vsel %vm603, %v1002, 0
  %v1056 = vsel %vm603, %v1003, 0
  %1058 = vmatprep.subr.bf16.mxu0 0
  %1059 = vmatpush1.bf16.msra.mxu0 0
  %1060 = vmatprep.subr.bf16.mxu0 0
  %1061 = vmatpush1.bf16.msra.mxu0 0
  %1062 = vmatprep.subr.bf16.mxu0 0
  %1063 = vmatpush1.bf16.msra.mxu0 0
  %1064 = vmatprep.subr.bf16.mxu0 0
  %1065 = vmatpush1.bf16.msra.mxu0 0
  %1066 = vmatprep.subr.bf16.mxu0 0
  %1067 = vmatpush1.bf16.msra.mxu0 0
  %1068 = vmatprep.subr.bf16.mxu0 0
  %1069 = vmatpush1.bf16.msra.mxu0 0
  %1070 = vmatprep.subr.bf16.mxu0 0
  %1071 = vmatpush1.bf16.msra.mxu0 %v1013
  %1072 = vmatprep.subr.bf16.mxu0 0
  %1073 = vmatpush1.bf16.msra.mxu0 %v1012
  %1074 = vmatprep.subr.bf16.mxu0 0
  %1075 = vmatpush2.bf16.msra.mxu0 0
  %1076 = vmatprep.subr.bf16.mxu0 0
  %1077 = vmatpush2.bf16.msra.mxu0 0
  %1078 = vmatprep.subr.bf16.mxu0 0
  %1079 = vmatpush2.bf16.msra.mxu0 0
  %1080 = vmatprep.subr.bf16.mxu0 0
  %1081 = vmatpush2.bf16.msra.mxu0 0
  %1082 = vmatprep.subr.bf16.mxu0 0
  %1083 = vmatpush2.bf16.msra.mxu0 0
  %1084 = vmatprep.subr.bf16.mxu0 0
  %1085 = vmatpush2.bf16.msra.mxu0 0
  %1086 = vmatprep.subr.bf16.mxu0 0
  %1087 = vmatpush2.bf16.msra.mxu0 0
  %1088 = vmatprep.subr.bf16.mxu0 0
  %1089 = vmatpush2.bf16.msra.mxu0 0
  %1090 = vmatprep.mubr.bf16.mxu0 0
  %1091 = vmatmul.mubr.bf16.gmra.mxu0 %v1017
  %v1092 = vpop.f32.mrf.mxu0
  %v1093 = vadd.f32 0.0, %v1092
  %v1094 = vpop.f32.mrf.mxu0
  %v1095 = vpop.f32.mrf.mxu0
  %v1096 = vadd.f32 0.0, %v1095
  %v1097 = vpop.f32.mrf.mxu0
  %1098 = vmatprep.mubr.bf16.mxu0 0
  %1099 = vmatmul.mubr.bf16.gmra.mxu0 %v1020
  %v1100 = vpop.f32.mrf.mxu0
  %v1101 = vadd.f32 0.0, %v1100
  %v1102 = vpop.f32.mrf.mxu0
  %v1103 = vpop.f32.mrf.mxu0
  %v1104 = vadd.f32 0.0, %v1103
  %v1105 = vpop.f32.mrf.mxu0
  %1106 = vmatprep.mubr.bf16.mxu0 0
  %1107 = vmatmul.mubr.bf16.gmra.mxu0 %v1023
  %v1108 = vpop.f32.mrf.mxu0
  %v1109 = vadd.f32 0.0, %v1108
  %v1110 = vpop.f32.mrf.mxu0
  %v1111 = vpop.f32.mrf.mxu0
  %v1112 = vadd.f32 0.0, %v1111
  %v1113 = vpop.f32.mrf.mxu0
  %1114 = vmatprep.mubr.bf16.mxu0 0
  %1115 = vmatmul.mubr.bf16.gmra.mxu0 %v1026
  %v1116 = vpop.f32.mrf.mxu0
  %v1117 = vadd.f32 0.0, %v1116
  %v1118 = vpop.f32.mrf.mxu0
  %v1119 = vpop.f32.mrf.mxu0
  %v1120 = vadd.f32 0.0, %v1119
  %v1121 = vpop.f32.mrf.mxu0
  %1122 = vmatprep.mubr.bf16.mxu0 0
  %1123 = vmatmul.mubr.bf16.gmra.mxu0 %v1029
  %v1124 = vpop.f32.mrf.mxu0
  %v1125 = vadd.f32 0.0, %v1124
  %v1126 = vpop.f32.mrf.mxu0
  %v1127 = vpop.f32.mrf.mxu0
  %v1128 = vadd.f32 0.0, %v1127
  %v1129 = vpop.f32.mrf.mxu0
  %1130 = vmatprep.mubr.bf16.mxu0 0
  %1131 = vmatmul.mubr.bf16.gmra.mxu0 %v1032
  %v1132 = vpop.f32.mrf.mxu0
  %v1133 = vadd.f32 0.0, %v1132
  %v1134 = vpop.f32.mrf.mxu0
  %v1135 = vpop.f32.mrf.mxu0
  %v1136 = vadd.f32 0.0, %v1135
  %v1137 = vpop.f32.mrf.mxu0
  %1138 = vmatprep.mubr.bf16.mxu0 0
  %1139 = vmatmul.mubr.bf16.gmra.mxu0 %v1035
  %v1140 = vpop.f32.mrf.mxu0
  %v1141 = vadd.f32 0.0, %v1140
  %v1142 = vpop.f32.mrf.mxu0
  %v1143 = vpop.f32.mrf.mxu0
  %v1144 = vadd.f32 0.0, %v1143
  %v1145 = vpop.f32.mrf.mxu0
  %1146 = vmatprep.mubr.bf16.mxu0 0
  %1147 = vmatmul.mubr.bf16.gmra.mxu0 %v1038
  %v1148 = vpop.f32.mrf.mxu0
  %v1149 = vadd.f32 0.0, %v1148
  %v1150 = vpop.f32.mrf.mxu0
  %v1151 = vpop.f32.mrf.mxu0
  %v1152 = vadd.f32 0.0, %v1151
  %v1153 = vpop.f32.mrf.mxu0
  %1154 = vmatprep.mubr.bf16.mxu0 0
  %1155 = vmatmul.mubr.bf16.gmra.mxu0 %v1041
  %v1156 = vpop.f32.mrf.mxu0
  %v1157 = vadd.f32 0.0, %v1156
  %v1158 = vpop.f32.mrf.mxu0
  %v1159 = vpop.f32.mrf.mxu0
  %v1160 = vadd.f32 0.0, %v1159
  %v1161 = vpop.f32.mrf.mxu0
  %1162 = vmatprep.mubr.bf16.mxu0 0
  %1163 = vmatmul.mubr.bf16.gmra.mxu0 %v1044
  %v1164 = vpop.f32.mrf.mxu0
  %v1165 = vadd.f32 0.0, %v1164
  %v1166 = vpop.f32.mrf.mxu0
  %v1167 = vpop.f32.mrf.mxu0
  %v1168 = vadd.f32 0.0, %v1167
  %v1169 = vpop.f32.mrf.mxu0
  %1170 = vmatprep.mubr.bf16.mxu0 0
  %1171 = vmatmul.mubr.bf16.gmra.mxu0 %v1047
  %v1172 = vpop.f32.mrf.mxu0
  %v1173 = vadd.f32 0.0, %v1172
  %v1174 = vpop.f32.mrf.mxu0
  %v1175 = vpop.f32.mrf.mxu0
  %v1176 = vadd.f32 0.0, %v1175
  %v1177 = vpop.f32.mrf.mxu0
  %1178 = vmatprep.mubr.bf16.mxu0 0
  %1179 = vmatmul.mubr.bf16.gmra.mxu0 %v1050
  %v1180 = vpop.f32.mrf.mxu0
  %v1181 = vadd.f32 0.0, %v1180
  %v1182 = vpop.f32.mrf.mxu0
  %v1183 = vpop.f32.mrf.mxu0
  %v1184 = vadd.f32 0.0, %v1183
  %v1185 = vpop.f32.mrf.mxu0
  %1186 = vmatprep.mubr.bf16.mxu0 0
  %1187 = vmatmul.mubr.bf16.gmra.mxu0 %v1053
  %v1188 = vpop.f32.mrf.mxu0
  %v1189 = vadd.f32 0.0, %v1188
  %v1190 = vpop.f32.mrf.mxu0
  %v1191 = vpop.f32.mrf.mxu0
  %v1192 = vadd.f32 0.0, %v1191
  %v1193 = vpop.f32.mrf.mxu0
  %1194 = vmatprep.mubr.bf16.mxu0 0
  %1195 = vmatmul.mubr.bf16.gmra.mxu0 %v1056
  %v1196 = vpop.f32.mrf.mxu0
  %v1197 = vadd.f32 0.0, %v1196
  %v1198 = vpop.f32.mrf.mxu0
  %v1199 = vpop.f32.mrf.mxu0
  %v1200 = vadd.f32 0.0, %v1199
  %v1201 = vpop.f32.mrf.mxu0
  %1202 = vdwg.mxu0
  %v1203 = vadd.f32 %v880, %v1093
  %v1204 = vadd.f32 %v883, %v1096
  %v1205 = vadd.f32 %v888, %v1101
  %v1206 = vadd.f32 %v891, %v1104
  %v1207 = vadd.f32 %v896, %v1109
  %v1208 = vadd.f32 %v899, %v1112
  %v1209 = vadd.f32 %v904, %v1117
  %v1210 = vadd.f32 %v907, %v1120
  %v1211 = vadd.f32 %v912, %v1125
  %v1212 = vadd.f32 %v915, %v1128
  %v1213 = vadd.f32 %v920, %v1133
  %v1214 = vadd.f32 %v923, %v1136
  %v1215 = vadd.f32 %v928, %v1141
  %v1216 = vadd.f32 %v931, %v1144
  %v1217 = vadd.f32 %v936, %v1149
  %v1218 = vadd.f32 %v939, %v1152
  %v1219 = vadd.f32 %v944, %v1157
  %v1220 = vadd.f32 %v947, %v1160
  %v1221 = vadd.f32 %v952, %v1165
  %v1222 = vadd.f32 %v955, %v1168
  %v1223 = vadd.f32 %v960, %v1173
  %v1224 = vadd.f32 %v963, %v1176
  %v1225 = vadd.f32 %v968, %v1181
  %v1226 = vadd.f32 %v971, %v1184
  %v1227 = vadd.f32 %v976, %v1189
  %v1228 = vadd.f32 %v979, %v1192
  %v1229 = vadd.f32 %v984, %v1197
  %v1230 = vadd.f32 %v987, %v1200
  %v1231 = vld [vmem:[%s9] sm:$0xff]
  %v1232 = vld [vmem:[%s9 + $0x8] sm:$0xff]
  %v1233 = vld [vmem:[%s9 + $0x10] sm:$0xff]
  %v1234 = vld [vmem:[%s9 + $0x18] sm:$0xff]
  %v1235 = vld [vmem:[%s9 + $0x20] sm:$0xff]
  %v1236 = vld [vmem:[%s9 + $0x28] sm:$0xff]
  %v1237 = vld [vmem:[%s9 + $0x30] sm:$0xff]
  %v1238 = vld [vmem:[%s9 + $0x38] sm:$0xff]
  %v1239 = vld [vmem:[%s9 + $0x40] sm:$0xff]
  %v1240 = vld [vmem:[%s9 + $0x48] sm:$0xff]
  %v1241 = vld [vmem:[%s9 + $0x50] sm:$0xff]
  %v1242 = vld [vmem:[%s9 + $0x58] sm:$0xff]
  %v1243 = vld [vmem:[%s9 + $0x60] sm:$0xff]
  %v1244 = vld [vmem:[%s9 + $0x68] sm:$0xff]
  %v1245 = vld [vmem:[%s9 + $0x70] sm:$0xff]
  %v1246 = vld [vmem:[%s9 + $0x78] sm:$0xff]
  %v1247 = vld [vmem:[%s9 + $0x80] sm:$0xff]
  %v1248 = vld [vmem:[%s9 + $0x88] sm:$0xff]
  %v1249 = vld [vmem:[%s9 + $0x90] sm:$0xff]
  %v1250 = vld [vmem:[%s9 + $0x98] sm:$0xff]
  %v1251 = vld [vmem:[%s9 + $0xa0] sm:$0xff]
  %v1252 = vld [vmem:[%s9 + $0xa8] sm:$0xff]
  %v1253 = vld [vmem:[%s9 + $0xb0] sm:$0xff]
  %v1254 = vld [vmem:[%s9 + $0xb8] sm:$0xff]
  %v1255 = vld [vmem:[%s9 + $0xc0] sm:$0xff]
  %v1256 = vld [vmem:[%s9 + $0xc8] sm:$0xff]
  %v1257 = vld [vmem:[%s9 + $0xd0] sm:$0xff]
  %v1258 = vld [vmem:[%s9 + $0xd8] sm:$0xff]
  %v1259 = vpack.c.bf16 %v1232, %v1231
  %v1260 = vpack.c.bf16 %v1234, %v1233
  %v1261 = vpack.c.bf16 %v1236, %v1235
  %v1262 = vpack.c.bf16 %v1238, %v1237
  %v1263 = vpack.c.bf16 %v1240, %v1239
  %v1264 = vpack.c.bf16 %v1242, %v1241
  %v1265 = vpack.c.bf16 %v1244, %v1243
  %v1266 = vpack.c.bf16 %v1246, %v1245
  %v1267 = vpack.c.bf16 %v1248, %v1247
  %v1268 = vpack.c.bf16 %v1250, %v1249
  %v1269 = vpack.c.bf16 %v1252, %v1251
  %v1270 = vpack.c.bf16 %v1254, %v1253
  %v1271 = vpack.c.bf16 %v1256, %v1255
  %v1272 = vpack.c.bf16 %v1258, %v1257
  %v1277 = vunpack.c.l.b16 %v503
  %v1278 = vunpack.c.l.b16 %v504
  %v1279 = vunpack.c.l.b16 %v505
  %v1280 = vunpack.c.l.b16 %v506
  %v1281 = vpack.c.b16 %v1278, %v1277
  %v1282 = vpack.c.b16 %v1280, %v1279
  %v1286 = vsel %vm603, %v1259, 0
  %v1289 = vsel %vm603, %v1260, 0
  %v1292 = vsel %vm603, %v1261, 0
  %v1295 = vsel %vm603, %v1262, 0
  %v1298 = vsel %vm603, %v1263, 0
  %v1301 = vsel %vm603, %v1264, 0
  %v1304 = vsel %vm603, %v1265, 0
  %v1307 = vsel %vm603, %v1266, 0
  %v1310 = vsel %vm603, %v1267, 0
  %v1313 = vsel %vm603, %v1268, 0
  %v1316 = vsel %vm603, %v1269, 0
  %v1319 = vsel %vm603, %v1270, 0
  %v1322 = vsel %vm603, %v1271, 0
  %v1325 = vsel %vm603, %v1272, 0
  %1327 = vmatprep.subr.bf16.mxu0 0
  %1328 = vmatpush1.bf16.msra.mxu0 0
  %1329 = vmatprep.subr.bf16.mxu0 0
  %1330 = vmatpush1.bf16.msra.mxu0 0
  %1331 = vmatprep.subr.bf16.mxu0 0
  %1332 = vmatpush1.bf16.msra.mxu0 0
  %1333 = vmatprep.subr.bf16.mxu0 0
  %1334 = vmatpush1.bf16.msra.mxu0 0
  %1335 = vmatprep.subr.bf16.mxu0 0
  %1336 = vmatpush1.bf16.msra.mxu0 0
  %1337 = vmatprep.subr.bf16.mxu0 0
  %1338 = vmatpush1.bf16.msra.mxu0 0
  %1339 = vmatprep.subr.bf16.mxu0 0
  %1340 = vmatpush1.bf16.msra.mxu0 %v1282
  %1341 = vmatprep.subr.bf16.mxu0 0
  %1342 = vmatpush1.bf16.msra.mxu0 %v1281
  %1343 = vmatprep.subr.bf16.mxu0 0
  %1344 = vmatpush2.bf16.msra.mxu0 0
  %1345 = vmatprep.subr.bf16.mxu0 0
  %1346 = vmatpush2.bf16.msra.mxu0 0
  %1347 = vmatprep.subr.bf16.mxu0 0
  %1348 = vmatpush2.bf16.msra.mxu0 0
  %1349 = vmatprep.subr.bf16.mxu0 0
  %1350 = vmatpush2.bf16.msra.mxu0 0
  %1351 = vmatprep.subr.bf16.mxu0 0
  %1352 = vmatpush2.bf16.msra.mxu0 0
  %1353 = vmatprep.subr.bf16.mxu0 0
  %1354 = vmatpush2.bf16.msra.mxu0 0
  %1355 = vmatprep.subr.bf16.mxu0 0
  %1356 = vmatpush2.bf16.msra.mxu0 0
  %1357 = vmatprep.subr.bf16.mxu0 0
  %1358 = vmatpush2.bf16.msra.mxu0 0
  %1359 = vmatprep.mubr.bf16.mxu0 0
  %1360 = vmatmul.mubr.bf16.gmra.mxu0 %v1286
  %v1361 = vpop.f32.mrf.mxu0
  %v1362 = vadd.f32 0.0, %v1361
  %v1363 = vpop.f32.mrf.mxu0
  %v1364 = vpop.f32.mrf.mxu0
  %v1365 = vadd.f32 0.0, %v1364
  %v1366 = vpop.f32.mrf.mxu0
  %1367 = vmatprep.mubr.bf16.mxu0 0
  %1368 = vmatmul.mubr.bf16.gmra.mxu0 %v1289
  %v1369 = vpop.f32.mrf.mxu0
  %v1370 = vadd.f32 0.0, %v1369
  %v1371 = vpop.f32.mrf.mxu0
  %v1372 = vpop.f32.mrf.mxu0
  %v1373 = vadd.f32 0.0, %v1372
  %v1374 = vpop.f32.mrf.mxu0
  %1375 = vmatprep.mubr.bf16.mxu0 0
  %1376 = vmatmul.mubr.bf16.gmra.mxu0 %v1292
  %v1377 = vpop.f32.mrf.mxu0
  %v1378 = vadd.f32 0.0, %v1377
  %v1379 = vpop.f32.mrf.mxu0
  %v1380 = vpop.f32.mrf.mxu0
  %v1381 = vadd.f32 0.0, %v1380
  %v1382 = vpop.f32.mrf.mxu0
  %1383 = vmatprep.mubr.bf16.mxu0 0
  %1384 = vmatmul.mubr.bf16.gmra.mxu0 %v1295
  %v1385 = vpop.f32.mrf.mxu0
  %v1386 = vadd.f32 0.0, %v1385
  %v1387 = vpop.f32.mrf.mxu0
  %v1388 = vpop.f32.mrf.mxu0
  %v1389 = vadd.f32 0.0, %v1388
  %v1390 = vpop.f32.mrf.mxu0
  %1391 = vmatprep.mubr.bf16.mxu0 0
  %1392 = vmatmul.mubr.bf16.gmra.mxu0 %v1298
  %v1393 = vpop.f32.mrf.mxu0
  %v1394 = vadd.f32 0.0, %v1393
  %v1395 = vpop.f32.mrf.mxu0
  %v1396 = vpop.f32.mrf.mxu0
  %v1397 = vadd.f32 0.0, %v1396
  %v1398 = vpop.f32.mrf.mxu0
  %1399 = vmatprep.mubr.bf16.mxu0 0
  %1400 = vmatmul.mubr.bf16.gmra.mxu0 %v1301
  %v1401 = vpop.f32.mrf.mxu0
  %v1402 = vadd.f32 0.0, %v1401
  %v1403 = vpop.f32.mrf.mxu0
  %v1404 = vpop.f32.mrf.mxu0
  %v1405 = vadd.f32 0.0, %v1404
  %v1406 = vpop.f32.mrf.mxu0
  %1407 = vmatprep.mubr.bf16.mxu0 0
  %1408 = vmatmul.mubr.bf16.gmra.mxu0 %v1304
  %v1409 = vpop.f32.mrf.mxu0
  %v1410 = vadd.f32 0.0, %v1409
  %v1411 = vpop.f32.mrf.mxu0
  %v1412 = vpop.f32.mrf.mxu0
  %v1413 = vadd.f32 0.0, %v1412
  %v1414 = vpop.f32.mrf.mxu0
  %1415 = vmatprep.mubr.bf16.mxu0 0
  %1416 = vmatmul.mubr.bf16.gmra.mxu0 %v1307
  %v1417 = vpop.f32.mrf.mxu0
  %v1418 = vadd.f32 0.0, %v1417
  %v1419 = vpop.f32.mrf.mxu0
  %v1420 = vpop.f32.mrf.mxu0
  %v1421 = vadd.f32 0.0, %v1420
  %v1422 = vpop.f32.mrf.mxu0
  %1423 = vmatprep.mubr.bf16.mxu0 0
  %1424 = vmatmul.mubr.bf16.gmra.mxu0 %v1310
  %v1425 = vpop.f32.mrf.mxu0
  %v1426 = vadd.f32 0.0, %v1425
  %v1427 = vpop.f32.mrf.mxu0
  %v1428 = vpop.f32.mrf.mxu0
  %v1429 = vadd.f32 0.0, %v1428
  %v1430 = vpop.f32.mrf.mxu0
  %1431 = vmatprep.mubr.bf16.mxu0 0
  %1432 = vmatmul.mubr.bf16.gmra.mxu0 %v1313
  %v1433 = vpop.f32.mrf.mxu0
  %v1434 = vadd.f32 0.0, %v1433
  %v1435 = vpop.f32.mrf.mxu0
  %v1436 = vpop.f32.mrf.mxu0
  %v1437 = vadd.f32 0.0, %v1436
  %v1438 = vpop.f32.mrf.mxu0
  %1439 = vmatprep.mubr.bf16.mxu0 0
  %1440 = vmatmul.mubr.bf16.gmra.mxu0 %v1316
  %v1441 = vpop.f32.mrf.mxu0
  %v1442 = vadd.f32 0.0, %v1441
  %v1443 = vpop.f32.mrf.mxu0
  %v1444 = vpop.f32.mrf.mxu0
  %v1445 = vadd.f32 0.0, %v1444
  %v1446 = vpop.f32.mrf.mxu0
  %1447 = vmatprep.mubr.bf16.mxu0 0
  %1448 = vmatmul.mubr.bf16.gmra.mxu0 %v1319
  %v1449 = vpop.f32.mrf.mxu0
  %v1450 = vadd.f32 0.0, %v1449
  %v1451 = vpop.f32.mrf.mxu0
  %v1452 = vpop.f32.mrf.mxu0
  %v1453 = vadd.f32 0.0, %v1452
  %v1454 = vpop.f32.mrf.mxu0
  %1455 = vmatprep.mubr.bf16.mxu0 0
  %1456 = vmatmul.mubr.bf16.gmra.mxu0 %v1322
  %v1457 = vpop.f32.mrf.mxu0
  %v1458 = vadd.f32 0.0, %v1457
  %v1459 = vpop.f32.mrf.mxu0
  %v1460 = vpop.f32.mrf.mxu0
  %v1461 = vadd.f32 0.0, %v1460
  %v1462 = vpop.f32.mrf.mxu0
  %1463 = vmatprep.mubr.bf16.mxu0 0
  %1464 = vmatmul.mubr.bf16.gmra.mxu0 %v1325
  %v1465 = vpop.f32.mrf.mxu0
  %v1466 = vadd.f32 0.0, %v1465
  %v1467 = vpop.f32.mrf.mxu0
  %v1468 = vpop.f32.mrf.mxu0
  %v1469 = vadd.f32 0.0, %v1468
  %v1470 = vpop.f32.mrf.mxu0
  %1471 = vdwg.mxu0
  %v1472 = vadd.f32 %v1203, %v1362
  %v1473 = vadd.f32 %v1204, %v1365
  %v1474 = vadd.f32 %v1205, %v1370
  %v1475 = vadd.f32 %v1206, %v1373
  %v1476 = vadd.f32 %v1207, %v1378
  %v1477 = vadd.f32 %v1208, %v1381
  %v1478 = vadd.f32 %v1209, %v1386
  %v1479 = vadd.f32 %v1210, %v1389
  %v1480 = vadd.f32 %v1211, %v1394
  %v1481 = vadd.f32 %v1212, %v1397
  %v1482 = vadd.f32 %v1213, %v1402
  %v1483 = vadd.f32 %v1214, %v1405
  %v1484 = vadd.f32 %v1215, %v1410
  %v1485 = vadd.f32 %v1216, %v1413
  %v1486 = vadd.f32 %v1217, %v1418
  %v1487 = vadd.f32 %v1218, %v1421
  %v1488 = vadd.f32 %v1219, %v1426
  %v1489 = vadd.f32 %v1220, %v1429
  %v1490 = vadd.f32 %v1221, %v1434
  %v1491 = vadd.f32 %v1222, %v1437
  %v1492 = vadd.f32 %v1223, %v1442
  %v1493 = vadd.f32 %v1224, %v1445
  %v1494 = vadd.f32 %v1225, %v1450
  %v1495 = vadd.f32 %v1226, %v1453
  %v1496 = vadd.f32 %v1227, %v1458
  %v1497 = vadd.f32 %v1228, %v1461
  %v1498 = vadd.f32 %v1229, %v1466
  %v1499 = vadd.f32 %v1230, %v1469
  %v1500 = vld [vmem:[%s25] sm:$0x1]
  %v1502 = vlaneseq
  %v1503 = vshrl.u32 %v1502, 7
  %v1504 = vsub.s32 0, %v1503
  %v1505 = vrot.slane %v1500, %v1504
  %v1507 = vadd.f32 %v1472, %v1505
  %v1508 = vadd.f32 %v1473, %v1505
  %v1509 = vadd.f32 %v1474, %v1505
  %v1510 = vadd.f32 %v1475, %v1505
  %v1511 = vadd.f32 %v1476, %v1505
  %v1512 = vadd.f32 %v1477, %v1505
  %v1513 = vadd.f32 %v1478, %v1505
  %v1514 = vadd.f32 %v1479, %v1505
  %v1515 = vadd.f32 %v1480, %v1505
  %v1516 = vadd.f32 %v1481, %v1505
  %v1517 = vadd.f32 %v1482, %v1505
  %v1518 = vadd.f32 %v1483, %v1505
  %v1519 = vadd.f32 %v1484, %v1505
  %v1520 = vadd.f32 %v1485, %v1505
  %v1521 = vadd.f32 %v1486, %v1505
  %v1522 = vadd.f32 %v1487, %v1505
  %v1523 = vadd.f32 %v1488, %v1505
  %v1524 = vadd.f32 %v1489, %v1505
  %v1525 = vadd.f32 %v1490, %v1505
  %v1526 = vadd.f32 %v1491, %v1505
  %v1527 = vadd.f32 %v1492, %v1505
  %v1528 = vadd.f32 %v1493, %v1505
  %v1529 = vadd.f32 %v1494, %v1505
  %v1530 = vadd.f32 %v1495, %v1505
  %v1531 = vadd.f32 %v1496, %v1505
  %v1532 = vadd.f32 %v1497, %v1505
  %v1533 = vadd.f32 %v1498, %v1505
  %v1534 = vadd.f32 %v1499, %v1505
  %v1535 = vld [vmem:[%s27] sm:$0xf]
  %v1536 = vld [vmem:[%s27 + $0x4] sm:$0xf]
  %v1537 = vld [vmem:[%s27 + $0x8] sm:$0xf]
  %v1538 = vld [vmem:[%s27 + $0xc] sm:$0xf]
  %v1539 = vld [vmem:[%s29] sm:$0x1]
  %v1540 = vld [vmem:[%s31] sm:$0xf]
  %v1541 = vld [vmem:[%s31 + $0x4] sm:$0xf]
  %v1542 = vld [vmem:[%s31 + $0x8] sm:$0xf]
  %v1543 = vld [vmem:[%s31 + $0xc] sm:$0xf]
  %v1544 = vld [vmem:[%s33] sm:$0x1]
  %v1545 = vmax.f32 %v1507, 0.0
  %v1546 = vmax.f32 %v1508, 0.0
  %v1547 = vmax.f32 %v1509, 0.0
  %v1548 = vmax.f32 %v1510, 0.0
  %v1549 = vmax.f32 %v1511, 0.0
  %v1550 = vmax.f32 %v1512, 0.0
  %v1551 = vmax.f32 %v1513, 0.0
  %v1552 = vmax.f32 %v1514, 0.0
  %v1553 = vmax.f32 %v1515, 0.0
  %v1554 = vmax.f32 %v1516, 0.0
  %v1555 = vmax.f32 %v1517, 0.0
  %v1556 = vmax.f32 %v1518, 0.0
  %v1557 = vmax.f32 %v1519, 0.0
  %v1558 = vmax.f32 %v1520, 0.0
  %v1559 = vmax.f32 %v1521, 0.0
  %v1560 = vmax.f32 %v1522, 0.0
  %v1561 = vmax.f32 %v1523, 0.0
  %v1562 = vmax.f32 %v1524, 0.0
  %v1563 = vmax.f32 %v1525, 0.0
  %v1564 = vmax.f32 %v1526, 0.0
  %v1565 = vmax.f32 %v1527, 0.0
  %v1566 = vmax.f32 %v1528, 0.0
  %v1567 = vmax.f32 %v1529, 0.0
  %v1568 = vmax.f32 %v1530, 0.0
  %v1569 = vmax.f32 %v1531, 0.0
  %v1570 = vmax.f32 %v1532, 0.0
  %v1571 = vmax.f32 %v1533, 0.0
  %v1572 = vmax.f32 %v1534, 0.0
  %v1573 = vpack.c.bf16 %v1546, %v1545
  %v1574 = vpack.c.bf16 %v1548, %v1547
  %v1575 = vpack.c.bf16 %v1550, %v1549
  %v1576 = vpack.c.bf16 %v1552, %v1551
  %v1577 = vpack.c.bf16 %v1554, %v1553
  %v1578 = vpack.c.bf16 %v1556, %v1555
  %v1579 = vpack.c.bf16 %v1558, %v1557
  %v1580 = vpack.c.bf16 %v1560, %v1559
  %v1581 = vpack.c.bf16 %v1562, %v1561
  %v1582 = vpack.c.bf16 %v1564, %v1563
  %v1583 = vpack.c.bf16 %v1566, %v1565
  %v1584 = vpack.c.bf16 %v1568, %v1567
  %v1585 = vpack.c.bf16 %v1570, %v1569
  %v1586 = vpack.c.bf16 %v1572, %v1571
  %v1588 = vlaneseq
  %v1589 = vshrl.u32 %v1588, 7
  %v1590 = vsub.s32 0, %v1589
  %v1591 = vrot.slane %v1539, %v1590
  %v1597 = vunpack.c.l.b16 %v1535
  %v1598 = vunpack.c.l.b16 %v1536
  %v1599 = vunpack.c.l.b16 %v1537
  %v1600 = vunpack.c.l.b16 %v1538
  %v1601 = vpack.c.b16 %v1598, %v1597
  %v1602 = vpack.c.b16 %v1600, %v1599
  %v1606 = vsel %vm603, %v1573, 0
  %v1609 = vsel %vm603, %v1574, 0
  %v1612 = vsel %vm603, %v1575, 0
  %v1615 = vsel %vm603, %v1576, 0
  %v1618 = vsel %vm603, %v1577, 0
  %v1621 = vsel %vm603, %v1578, 0
  %v1624 = vsel %vm603, %v1579, 0
  %v1627 = vsel %vm603, %v1580, 0
  %v1630 = vsel %vm603, %v1581, 0
  %v1633 = vsel %vm603, %v1582, 0
  %v1636 = vsel %vm603, %v1583, 0
  %v1639 = vsel %vm603, %v1584, 0
  %v1642 = vsel %vm603, %v1585, 0
  %v1645 = vsel %vm603, %v1586, 0
  %1647 = vmatprep.subr.bf16.mxu0 0
  %1648 = vmatpush1.bf16.msra.mxu0 0
  %1649 = vmatprep.subr.bf16.mxu0 0
  %1650 = vmatpush1.bf16.msra.mxu0 0
  %1651 = vmatprep.subr.bf16.mxu0 0
  %1652 = vmatpush1.bf16.msra.mxu0 0
  %1653 = vmatprep.subr.bf16.mxu0 0
  %1654 = vmatpush1.bf16.msra.mxu0 0
  %1655 = vmatprep.subr.bf16.mxu0 0
  %1656 = vmatpush1.bf16.msra.mxu0 0
  %1657 = vmatprep.subr.bf16.mxu0 0
  %1658 = vmatpush1.bf16.msra.mxu0 0
  %1659 = vmatprep.subr.bf16.mxu0 0
  %1660 = vmatpush1.bf16.msra.mxu0 %v1602
  %1661 = vmatprep.subr.bf16.mxu0 0
  %1662 = vmatpush1.bf16.msra.mxu0 %v1601
  %1663 = vmatprep.subr.bf16.mxu0 0
  %1664 = vmatpush2.bf16.msra.mxu0 0
  %1665 = vmatprep.subr.bf16.mxu0 0
  %1666 = vmatpush2.bf16.msra.mxu0 0
  %1667 = vmatprep.subr.bf16.mxu0 0
  %1668 = vmatpush2.bf16.msra.mxu0 0
  %1669 = vmatprep.subr.bf16.mxu0 0
  %1670 = vmatpush2.bf16.msra.mxu0 0
  %1671 = vmatprep.subr.bf16.mxu0 0
  %1672 = vmatpush2.bf16.msra.mxu0 0
  %1673 = vmatprep.subr.bf16.mxu0 0
  %1674 = vmatpush2.bf16.msra.mxu0 0
  %1675 = vmatprep.subr.bf16.mxu0 0
  %1676 = vmatpush2.bf16.msra.mxu0 0
  %1677 = vmatprep.subr.bf16.mxu0 0
  %1678 = vmatpush2.bf16.msra.mxu0 0
  %1679 = vmatprep.mubr.bf16.mxu0 0
  %1680 = vmatmul.mubr.bf16.gmra.mxu0 %v1606
  %v1681 = vpop.f32.mrf.mxu0
  %v1682 = vadd.f32 %v1591, %v1681
  %v1683 = vpop.f32.mrf.mxu0
  %v1684 = vpop.f32.mrf.mxu0
  %v1685 = vadd.f32 %v1591, %v1684
  %v1686 = vpop.f32.mrf.mxu0
  %1687 = vmatprep.mubr.bf16.mxu0 0
  %1688 = vmatmul.mubr.bf16.gmra.mxu0 %v1609
  %v1689 = vpop.f32.mrf.mxu0
  %v1690 = vadd.f32 %v1591, %v1689
  %v1691 = vpop.f32.mrf.mxu0
  %v1692 = vpop.f32.mrf.mxu0
  %v1693 = vadd.f32 %v1591, %v1692
  %v1694 = vpop.f32.mrf.mxu0
  %1695 = vmatprep.mubr.bf16.mxu0 0
  %1696 = vmatmul.mubr.bf16.gmra.mxu0 %v1612
  %v1697 = vpop.f32.mrf.mxu0
  %v1698 = vadd.f32 %v1591, %v1697
  %v1699 = vpop.f32.mrf.mxu0
  %v1700 = vpop.f32.mrf.mxu0
  %v1701 = vadd.f32 %v1591, %v1700
  %v1702 = vpop.f32.mrf.mxu0
  %1703 = vmatprep.mubr.bf16.mxu0 0
  %1704 = vmatmul.mubr.bf16.gmra.mxu0 %v1615
  %v1705 = vpop.f32.mrf.mxu0
  %v1706 = vadd.f32 %v1591, %v1705
  %v1707 = vpop.f32.mrf.mxu0
  %v1708 = vpop.f32.mrf.mxu0
  %v1709 = vadd.f32 %v1591, %v1708
  %v1710 = vpop.f32.mrf.mxu0
  %1711 = vmatprep.mubr.bf16.mxu0 0
  %1712 = vmatmul.mubr.bf16.gmra.mxu0 %v1618
  %v1713 = vpop.f32.mrf.mxu0
  %v1714 = vadd.f32 %v1591, %v1713
  %v1715 = vpop.f32.mrf.mxu0
  %v1716 = vpop.f32.mrf.mxu0
  %v1717 = vadd.f32 %v1591, %v1716
  %v1718 = vpop.f32.mrf.mxu0
  %1719 = vmatprep.mubr.bf16.mxu0 0
  %1720 = vmatmul.mubr.bf16.gmra.mxu0 %v1621
  %v1721 = vpop.f32.mrf.mxu0
  %v1722 = vadd.f32 %v1591, %v1721
  %v1723 = vpop.f32.mrf.mxu0
  %v1724 = vpop.f32.mrf.mxu0
  %v1725 = vadd.f32 %v1591, %v1724
  %v1726 = vpop.f32.mrf.mxu0
  %1727 = vmatprep.mubr.bf16.mxu0 0
  %1728 = vmatmul.mubr.bf16.gmra.mxu0 %v1624
  %v1729 = vpop.f32.mrf.mxu0
  %v1730 = vadd.f32 %v1591, %v1729
  %v1731 = vpop.f32.mrf.mxu0
  %v1732 = vpop.f32.mrf.mxu0
  %v1733 = vadd.f32 %v1591, %v1732
  %v1734 = vpop.f32.mrf.mxu0
  %1735 = vmatprep.mubr.bf16.mxu0 0
  %1736 = vmatmul.mubr.bf16.gmra.mxu0 %v1627
  %v1737 = vpop.f32.mrf.mxu0
  %v1738 = vadd.f32 %v1591, %v1737
  %v1739 = vpop.f32.mrf.mxu0
  %v1740 = vpop.f32.mrf.mxu0
  %v1741 = vadd.f32 %v1591, %v1740
  %v1742 = vpop.f32.mrf.mxu0
  %1743 = vmatprep.mubr.bf16.mxu0 0
  %1744 = vmatmul.mubr.bf16.gmra.mxu0 %v1630
  %v1745 = vpop.f32.mrf.mxu0
  %v1746 = vadd.f32 %v1591, %v1745
  %v1747 = vpop.f32.mrf.mxu0
  %v1748 = vpop.f32.mrf.mxu0
  %v1749 = vadd.f32 %v1591, %v1748
  %v1750 = vpop.f32.mrf.mxu0
  %1751 = vmatprep.mubr.bf16.mxu0 0
  %1752 = vmatmul.mubr.bf16.gmra.mxu0 %v1633
  %v1753 = vpop.f32.mrf.mxu0
  %v1754 = vadd.f32 %v1591, %v1753
  %v1755 = vpop.f32.mrf.mxu0
  %v1756 = vpop.f32.mrf.mxu0
  %v1757 = vadd.f32 %v1591, %v1756
  %v1758 = vpop.f32.mrf.mxu0
  %1759 = vmatprep.mubr.bf16.mxu0 0
  %1760 = vmatmul.mubr.bf16.gmra.mxu0 %v1636
  %v1761 = vpop.f32.mrf.mxu0
  %v1762 = vadd.f32 %v1591, %v1761
  %v1763 = vpop.f32.mrf.mxu0
  %v1764 = vpop.f32.mrf.mxu0
  %v1765 = vadd.f32 %v1591, %v1764
  %v1766 = vpop.f32.mrf.mxu0
  %1767 = vmatprep.mubr.bf16.mxu0 0
  %1768 = vmatmul.mubr.bf16.gmra.mxu0 %v1639
  %v1769 = vpop.f32.mrf.mxu0
  %v1770 = vadd.f32 %v1591, %v1769
  %v1771 = vpop.f32.mrf.mxu0
  %v1772 = vpop.f32.mrf.mxu0
  %v1773 = vadd.f32 %v1591, %v1772
  %v1774 = vpop.f32.mrf.mxu0
  %1775 = vmatprep.mubr.bf16.mxu0 0
  %1776 = vmatmul.mubr.bf16.gmra.mxu0 %v1642
  %v1777 = vpop.f32.mrf.mxu0
  %v1778 = vadd.f32 %v1591, %v1777
  %v1779 = vpop.f32.mrf.mxu0
  %v1780 = vpop.f32.mrf.mxu0
  %v1781 = vadd.f32 %v1591, %v1780
  %v1782 = vpop.f32.mrf.mxu0
  %1783 = vmatprep.mubr.bf16.mxu0 0
  %1784 = vmatmul.mubr.bf16.gmra.mxu0 %v1645
  %v1785 = vpop.f32.mrf.mxu0
  %v1786 = vadd.f32 %v1591, %v1785
  %v1787 = vpop.f32.mrf.mxu0
  %v1788 = vpop.f32.mrf.mxu0
  %v1789 = vadd.f32 %v1591, %v1788
  %v1790 = vpop.f32.mrf.mxu0
  %1791 = vdwg.mxu0
  %v1792 = vmax.f32 %v1682, 0.0
  %v1793 = vmax.f32 %v1685, 0.0
  %v1794 = vmax.f32 %v1690, 0.0
  %v1795 = vmax.f32 %v1693, 0.0
  %v1796 = vmax.f32 %v1698, 0.0
  %v1797 = vmax.f32 %v1701, 0.0
  %v1798 = vmax.f32 %v1706, 0.0
  %v1799 = vmax.f32 %v1709, 0.0
  %v1800 = vmax.f32 %v1714, 0.0
  %v1801 = vmax.f32 %v1717, 0.0
  %v1802 = vmax.f32 %v1722, 0.0
  %v1803 = vmax.f32 %v1725, 0.0
  %v1804 = vmax.f32 %v1730, 0.0
  %v1805 = vmax.f32 %v1733, 0.0
  %v1806 = vmax.f32 %v1738, 0.0
  %v1807 = vmax.f32 %v1741, 0.0
  %v1808 = vmax.f32 %v1746, 0.0
  %v1809 = vmax.f32 %v1749, 0.0
  %v1810 = vmax.f32 %v1754, 0.0
  %v1811 = vmax.f32 %v1757, 0.0
  %v1812 = vmax.f32 %v1762, 0.0
  %v1813 = vmax.f32 %v1765, 0.0
  %v1814 = vmax.f32 %v1770, 0.0
  %v1815 = vmax.f32 %v1773, 0.0
  %v1816 = vmax.f32 %v1778, 0.0
  %v1817 = vmax.f32 %v1781, 0.0
  %v1818 = vmax.f32 %v1786, 0.0
  %v1819 = vmax.f32 %v1789, 0.0
  %v1820 = vpack.c.bf16 %v1793, %v1792
  %v1821 = vpack.c.bf16 %v1795, %v1794
  %v1822 = vpack.c.bf16 %v1797, %v1796
  %v1823 = vpack.c.bf16 %v1799, %v1798
  %v1824 = vpack.c.bf16 %v1801, %v1800
  %v1825 = vpack.c.bf16 %v1803, %v1802
  %v1826 = vpack.c.bf16 %v1805, %v1804
  %v1827 = vpack.c.bf16 %v1807, %v1806
  %v1828 = vpack.c.bf16 %v1809, %v1808
  %v1829 = vpack.c.bf16 %v1811, %v1810
  %v1830 = vpack.c.bf16 %v1813, %v1812
  %v1831 = vpack.c.bf16 %v1815, %v1814
  %v1832 = vpack.c.bf16 %v1817, %v1816
  %v1833 = vpack.c.bf16 %v1819, %v1818
  %v1835 = vlaneseq
  %v1836 = vshrl.u32 %v1835, 7
  %v1837 = vsub.s32 0, %v1836
  %v1838 = vrot.slane %v1544, %v1837
  %v1844 = vunpack.c.l.b16 %v1540
  %v1845 = vunpack.c.l.b16 %v1541
  %v1846 = vunpack.c.l.b16 %v1542
  %v1847 = vunpack.c.l.b16 %v1543
  %v1848 = vpack.c.b16 %v1845, %v1844
  %v1849 = vpack.c.b16 %v1847, %v1846
  %v1853 = vsel %vm603, %v1820, 0
  %v1856 = vsel %vm603, %v1821, 0
  %v1859 = vsel %vm603, %v1822, 0
  %v1862 = vsel %vm603, %v1823, 0
  %v1865 = vsel %vm603, %v1824, 0
  %v1868 = vsel %vm603, %v1825, 0
  %v1871 = vsel %vm603, %v1826, 0
  %v1874 = vsel %vm603, %v1827, 0
  %v1877 = vsel %vm603, %v1828, 0
  %v1880 = vsel %vm603, %v1829, 0
  %v1883 = vsel %vm603, %v1830, 0
  %v1886 = vsel %vm603, %v1831, 0
  %v1889 = vsel %vm603, %v1832, 0
  %v1892 = vsel %vm603, %v1833, 0
  %1894 = vmatprep.subr.bf16.mxu0 0
  %1895 = vmatpush1.bf16.msra.mxu0 0
  %1896 = vmatprep.subr.bf16.mxu0 0
  %1897 = vmatpush1.bf16.msra.mxu0 0
  %1898 = vmatprep.subr.bf16.mxu0 0
  %1899 = vmatpush1.bf16.msra.mxu0 0
  %1900 = vmatprep.subr.bf16.mxu0 0
  %1901 = vmatpush1.bf16.msra.mxu0 0
  %1902 = vmatprep.subr.bf16.mxu0 0
  %1903 = vmatpush1.bf16.msra.mxu0 0
  %1904 = vmatprep.subr.bf16.mxu0 0
  %1905 = vmatpush1.bf16.msra.mxu0 0
  %1906 = vmatprep.subr.bf16.mxu0 0
  %1907 = vmatpush1.bf16.msra.mxu0 %v1849
  %1908 = vmatprep.subr.bf16.mxu0 0
  %1909 = vmatpush1.bf16.msra.mxu0 %v1848
  %1910 = vmatprep.subr.bf16.mxu0 0
  %1911 = vmatpush2.bf16.msra.mxu0 0
  %1912 = vmatprep.subr.bf16.mxu0 0
  %1913 = vmatpush2.bf16.msra.mxu0 0
  %1914 = vmatprep.subr.bf16.mxu0 0
  %1915 = vmatpush2.bf16.msra.mxu0 0
  %1916 = vmatprep.subr.bf16.mxu0 0
  %1917 = vmatpush2.bf16.msra.mxu0 0
  %1918 = vmatprep.subr.bf16.mxu0 0
  %1919 = vmatpush2.bf16.msra.mxu0 0
  %1920 = vmatprep.subr.bf16.mxu0 0
  %1921 = vmatpush2.bf16.msra.mxu0 0
  %1922 = vmatprep.subr.bf16.mxu0 0
  %1923 = vmatpush2.bf16.msra.mxu0 0
  %1924 = vmatprep.subr.bf16.mxu0 0
  %1925 = vmatpush2.bf16.msra.mxu0 0
  %1926 = vmatprep.mubr.bf16.mxu0 0
  %1927 = vmatmul.mubr.bf16.gmra.mxu0 %v1853
  %v1928 = vpop.f32.mrf.mxu0
  %v1929 = vadd.f32 %v1838, %v1928
  %v1930 = vpop.f32.mrf.mxu0
  %v1931 = vpop.f32.mrf.mxu0
  %v1932 = vadd.f32 %v1838, %v1931
  %v1933 = vpop.f32.mrf.mxu0
  %1934 = vmatprep.mubr.bf16.mxu0 0
  %1935 = vmatmul.mubr.bf16.gmra.mxu0 %v1856
  %v1936 = vpop.f32.mrf.mxu0
  %v1937 = vadd.f32 %v1838, %v1936
  %v1938 = vpop.f32.mrf.mxu0
  %v1939 = vpop.f32.mrf.mxu0
  %v1940 = vadd.f32 %v1838, %v1939
  %v1941 = vpop.f32.mrf.mxu0
  %1942 = vmatprep.mubr.bf16.mxu0 0
  %1943 = vmatmul.mubr.bf16.gmra.mxu0 %v1859
  %v1944 = vpop.f32.mrf.mxu0
  %v1945 = vadd.f32 %v1838, %v1944
  %v1946 = vpop.f32.mrf.mxu0
  %v1947 = vpop.f32.mrf.mxu0
  %v1948 = vadd.f32 %v1838, %v1947
  %v1949 = vpop.f32.mrf.mxu0
  %1950 = vmatprep.mubr.bf16.mxu0 0
  %1951 = vmatmul.mubr.bf16.gmra.mxu0 %v1862
  %v1952 = vpop.f32.mrf.mxu0
  %v1953 = vadd.f32 %v1838, %v1952
  %v1954 = vpop.f32.mrf.mxu0
  %v1955 = vpop.f32.mrf.mxu0
  %v1956 = vadd.f32 %v1838, %v1955
  %v1957 = vpop.f32.mrf.mxu0
  %1958 = vmatprep.mubr.bf16.mxu0 0
  %1959 = vmatmul.mubr.bf16.gmra.mxu0 %v1865
  %v1960 = vpop.f32.mrf.mxu0
  %v1961 = vadd.f32 %v1838, %v1960
  %v1962 = vpop.f32.mrf.mxu0
  %v1963 = vpop.f32.mrf.mxu0
  %v1964 = vadd.f32 %v1838, %v1963
  %v1965 = vpop.f32.mrf.mxu0
  %1966 = vmatprep.mubr.bf16.mxu0 0
  %1967 = vmatmul.mubr.bf16.gmra.mxu0 %v1868
  %v1968 = vpop.f32.mrf.mxu0
  %v1969 = vadd.f32 %v1838, %v1968
  %v1970 = vpop.f32.mrf.mxu0
  %v1971 = vpop.f32.mrf.mxu0
  %v1972 = vadd.f32 %v1838, %v1971
  %v1973 = vpop.f32.mrf.mxu0
  %1974 = vmatprep.mubr.bf16.mxu0 0
  %1975 = vmatmul.mubr.bf16.gmra.mxu0 %v1871
  %v1976 = vpop.f32.mrf.mxu0
  %v1977 = vadd.f32 %v1838, %v1976
  %v1978 = vpop.f32.mrf.mxu0
  %v1979 = vpop.f32.mrf.mxu0
  %v1980 = vadd.f32 %v1838, %v1979
  %v1981 = vpop.f32.mrf.mxu0
  %1982 = vmatprep.mubr.bf16.mxu0 0
  %1983 = vmatmul.mubr.bf16.gmra.mxu0 %v1874
  %v1984 = vpop.f32.mrf.mxu0
  %v1985 = vadd.f32 %v1838, %v1984
  %v1986 = vpop.f32.mrf.mxu0
  %v1987 = vpop.f32.mrf.mxu0
  %v1988 = vadd.f32 %v1838, %v1987
  %v1989 = vpop.f32.mrf.mxu0
  %1990 = vmatprep.mubr.bf16.mxu0 0
  %1991 = vmatmul.mubr.bf16.gmra.mxu0 %v1877
  %v1992 = vpop.f32.mrf.mxu0
  %v1993 = vadd.f32 %v1838, %v1992
  %v1994 = vpop.f32.mrf.mxu0
  %v1995 = vpop.f32.mrf.mxu0
  %v1996 = vadd.f32 %v1838, %v1995
  %v1997 = vpop.f32.mrf.mxu0
  %1998 = vmatprep.mubr.bf16.mxu0 0
  %1999 = vmatmul.mubr.bf16.gmra.mxu0 %v1880
  %v2000 = vpop.f32.mrf.mxu0
  %v2001 = vadd.f32 %v1838, %v2000
  %v2002 = vpop.f32.mrf.mxu0
  %v2003 = vpop.f32.mrf.mxu0
  %v2004 = vadd.f32 %v1838, %v2003
  %v2005 = vpop.f32.mrf.mxu0
  %2006 = vmatprep.mubr.bf16.mxu0 0
  %2007 = vmatmul.mubr.bf16.gmra.mxu0 %v1883
  %v2008 = vpop.f32.mrf.mxu0
  %v2009 = vadd.f32 %v1838, %v2008
  %v2010 = vpop.f32.mrf.mxu0
  %v2011 = vpop.f32.mrf.mxu0
  %v2012 = vadd.f32 %v1838, %v2011
  %v2013 = vpop.f32.mrf.mxu0
  %2014 = vmatprep.mubr.bf16.mxu0 0
  %2015 = vmatmul.mubr.bf16.gmra.mxu0 %v1886
  %v2016 = vpop.f32.mrf.mxu0
  %v2017 = vadd.f32 %v1838, %v2016
  %v2018 = vpop.f32.mrf.mxu0
  %v2019 = vpop.f32.mrf.mxu0
  %v2020 = vadd.f32 %v1838, %v2019
  %v2021 = vpop.f32.mrf.mxu0
  %2022 = vmatprep.mubr.bf16.mxu0 0
  %2023 = vmatmul.mubr.bf16.gmra.mxu0 %v1889
  %v2024 = vpop.f32.mrf.mxu0
  %v2025 = vadd.f32 %v1838, %v2024
  %v2026 = vpop.f32.mrf.mxu0
  %v2027 = vpop.f32.mrf.mxu0
  %v2028 = vadd.f32 %v1838, %v2027
  %v2029 = vpop.f32.mrf.mxu0
  %2030 = vmatprep.mubr.bf16.mxu0 0
  %2031 = vmatmul.mubr.bf16.gmra.mxu0 %v1892
  %v2032 = vpop.f32.mrf.mxu0
  %v2033 = vadd.f32 %v1838, %v2032
  %v2034 = vpop.f32.mrf.mxu0
  %v2035 = vpop.f32.mrf.mxu0
  %v2036 = vadd.f32 %v1838, %v2035
  %v2037 = vpop.f32.mrf.mxu0
  %2038 = vdwg.mxu0
  %v2039 = vlaneseq
  %v2040 = vshrl.u32 %v2039, 7
  %v2041 = vadd.s32 %v2040, 8
  %v2042 = vld [vmem:[%s17] sm:$0x3]
  %v2043 = vlaneseq
  %v2044 = vshrl.u32 %v2043, 7
  %v2045 = vsub.s32 0, %v2044
  %v2046 = vrot.slane %v2042, %v2045
  %v2047 = vlaneseq
  %v2048 = vshrl.u32 %v2047, 7
  %v2049 = vsub.s32 1, %v2048
  %v2050 = vrot.slane %v2042, %v2049
  %vm2051 = vcmp.eq.s32.totalorder %v2040, %v2046
  %vm2052 = vcmp.eq.s32.totalorder %v2040, %v2050
  %vm2053 = vcmp.eq.s32.totalorder %v2041, %v2046
  %vm2054 = vcmp.eq.s32.totalorder %v2041, %v2050
  %v2055 = vsel %vm2051, 1, 0
  %v2056 = vsel %vm2052, 1, 0
  %v2057 = vsel %vm2053, 1, 0
  %v2058 = vsel %vm2054, 1, 0
  %v2059 = vcvt.s32.f32 %v2055
  %v2060 = vcvt.s32.f32 %v2056
  %v2061 = vcvt.s32.f32 %v2057
  %v2062 = vcvt.s32.f32 %v2058
  %v2063 = vld [vmem:[%s21] sm:$0x1]
  %v2064 = vlaneseq
  %v2065 = vshrl.u32 %v2064, 7
  %v2066 = vsub.s32 0, %v2065
  %v2067 = vrot.slane %v2063, %v2066
  %vm2068 = vcmp.eq.s32.totalorder %v2040, %v2067
  %v2069 = vld [vmem:[%s19] sm:$0x3]
  %v2070 = vlaneseq
  %v2071 = vshrl.u32 %v2070, 7
  %v2072 = vsub.s32 0, %v2071
  %v2073 = vrot.slane %v2069, %v2072
  %v2074 = vlaneseq
  %v2075 = vshrl.u32 %v2074, 7
  %v2076 = vsub.s32 1, %v2075
  %v2077 = vrot.slane %v2069, %v2076
  %vm2078 = vcmp.eq.s32.totalorder %v2040, %v2073
  %vm2079 = vcmp.eq.s32.totalorder %v2040, %v2077
  %vm2080 = vcmask 785408
  %v2081 = vsel %vm2080, %v2060, 0.0
  %v2082 = vadd.f32 %v2059, %v2081
  %2083 = vadd.xlane.f32.xlu0 %v2082
  %v2084 = vpop.xlane.xlu0 %2083
  %v2085 = vsel %vm2080, %v2062, 0.0
  %v2086 = vadd.f32 %v2061, %v2085
  %2087 = vadd.xlane.f32.xlu0 %v2086
  %v2088 = vpop.xlane.xlu0 %2087
  %v2089 = vmax.f32 %v2084, 1.0
  %v2090 = vmax.f32 %v2088, 1.0
  %v2091 = vpack.c.bf16 %v2061, %v2059
  %v2092 = vpack.c.bf16 %v2062, %v2060
  %v2093 = vpack.c.bf16 %v1932, %v1929
  %v2094 = vpack.c.bf16 %v1940, %v1937
  %v2095 = vpack.c.bf16 %v1948, %v1945
  %v2096 = vpack.c.bf16 %v1956, %v1953
  %v2097 = vpack.c.bf16 %v1964, %v1961
  %v2098 = vpack.c.bf16 %v1972, %v1969
  %v2099 = vpack.c.bf16 %v1980, %v1977
  %v2100 = vpack.c.bf16 %v1988, %v1985
  %v2101 = vpack.c.bf16 %v1996, %v1993
  %v2102 = vpack.c.bf16 %v2004, %v2001
  %v2103 = vpack.c.bf16 %v2012, %v2009
  %v2104 = vpack.c.bf16 %v2020, %v2017
  %v2105 = vpack.c.bf16 %v2028, %v2025
  %v2106 = vpack.c.bf16 %v2036, %v2033
  %v2108 = vsel %vm2080, %v2092, 0
  %2110 = vmatprep.subr.bf16.mxu0 0
  %2111 = vmatpush1.bf16.msra.mxu0 %v2100
  %2112 = vmatprep.subr.bf16.mxu0 0
  %2113 = vmatpush1.bf16.msra.mxu0 %v2099
  %2114 = vmatprep.subr.bf16.mxu0 0
  %2115 = vmatpush1.bf16.msra.mxu0 %v2098
  %2116 = vmatprep.subr.bf16.mxu0 0
  %2117 = vmatpush1.bf16.msra.mxu0 %v2097
  %2118 = vmatprep.subr.bf16.mxu0 0
  %2119 = vmatpush1.bf16.msra.mxu0 %v2096
  %2120 = vmatprep.subr.bf16.mxu0 0
  %2121 = vmatpush1.bf16.msra.mxu0 %v2095
  %2122 = vmatprep.subr.bf16.mxu0 0
  %2123 = vmatpush1.bf16.msra.mxu0 %v2094
  %2124 = vmatprep.subr.bf16.mxu0 0
  %2125 = vmatpush1.bf16.msra.mxu0 %v2093
  %2126 = vmatprep.subr.bf16.mxu0 0
  %2127 = vmatpush2.bf16.msra.mxu0 0
  %2128 = vmatprep.subr.bf16.mxu0 0
  %2129 = vmatpush2.bf16.msra.mxu0 0
  %2130 = vmatprep.subr.bf16.mxu0 0
  %2131 = vmatpush2.bf16.msra.mxu0 %v2106
  %2132 = vmatprep.subr.bf16.mxu0 0
  %2133 = vmatpush2.bf16.msra.mxu0 %v2105
  %2134 = vmatprep.subr.bf16.mxu0 0
  %2135 = vmatpush2.bf16.msra.mxu0 %v2104
  %2136 = vmatprep.subr.bf16.mxu0 0
  %2137 = vmatpush2.bf16.msra.mxu0 %v2103
  %2138 = vmatprep.subr.bf16.mxu0 0
  %2139 = vmatpush2.bf16.msra.mxu0 %v2102
  %2140 = vmatprep.subr.bf16.mxu0 0
  %2141 = vmatpush2.bf16.msra.mxu0 %v2101
  %2142 = vmatprep.mubr.bf16.mxu0 %v2108
  %2143 = vmatmul.mubr.bf16.gmra.mxu0 %v2091
  %v2144 = vpop.f32.mrf.mxu0
  %v2145 = vadd.f32 0.0, %v2144
  %v2146 = vpop.f32.mrf.mxu0
  %v2147 = vpop.f32.mrf.mxu0
  %v2148 = vadd.f32 0.0, %v2147
  %v2149 = vpop.f32.mrf.mxu0
  %2150 = vdwg.mxu0
  %v2151 = vrcp.pop %v2089
  %v2152 = vmul.f32 %v2145, %v2151
  %v2153 = vrcp.pop %v2090
  %v2154 = vmul.f32 %v2148, %v2153
  %v2155 = vld [vmem:[%s35] sm:$0xf]
  %v2156 = vld [vmem:[%s35 + $0x4] sm:$0xf]
  %v2157 = vld [vmem:[%s35 + $0x8] sm:$0xf]
  %v2158 = vld [vmem:[%s35 + $0xc] sm:$0xf]
  %v2159 = vld [vmem:[%s35 + $0x10] sm:$0xf]
  %v2160 = vld [vmem:[%s35 + $0x14] sm:$0xf]
  %v2161 = vld [vmem:[%s35 + $0x18] sm:$0xf]
  %v2162 = vld [vmem:[%s35 + $0x1c] sm:$0xf]
  %v2163 = vld [vmem:[%s35 + $0x20] sm:$0xf]
  %v2164 = vld [vmem:[%s35 + $0x24] sm:$0xf]
  %v2165 = vld [vmem:[%s35 + $0x28] sm:$0xf]
  %v2166 = vld [vmem:[%s35 + $0x2c] sm:$0xf]
  %v2167 = vpack.c.bf16 %v174, %v173
  %v2168 = vpack.c.bf16 %v2154, %v2152
  %v2173 = vunpack.c.l.b16 %v2159
  %v2174 = vunpack.c.l.b16 %v2160
  %v2175 = vunpack.c.l.b16 %v2161
  %v2176 = vunpack.c.l.b16 %v2162
  %v2177 = vpack.c.b16 %v2174, %v2173
  %v2178 = vpack.c.b16 %v2176, %v2175
  %v2182 = vsel %vm603, %v2168, 0
  %2184 = vmatprep.subr.bf16.mxu0 0
  %2185 = vmatpush1.bf16.msra.mxu0 0
  %2186 = vmatprep.subr.bf16.mxu0 0
  %2187 = vmatpush1.bf16.msra.mxu0 0
  %2188 = vmatprep.subr.bf16.mxu0 0
  %2189 = vmatpush1.bf16.msra.mxu0 0
  %2190 = vmatprep.subr.bf16.mxu0 0
  %2191 = vmatpush1.bf16.msra.mxu0 0
  %2192 = vmatprep.subr.bf16.mxu0 0
  %2193 = vmatpush1.bf16.msra.mxu0 0
  %2194 = vmatprep.subr.bf16.mxu0 0
  %2195 = vmatpush1.bf16.msra.mxu0 0
  %2196 = vmatprep.subr.bf16.mxu0 0
  %2197 = vmatpush1.bf16.msra.mxu0 %v2178
  %2198 = vmatprep.subr.bf16.mxu0 0
  %2199 = vmatpush1.bf16.msra.mxu0 %v2177
  %2200 = vmatprep.subr.bf16.mxu0 0
  %2201 = vmatpush2.bf16.msra.mxu0 0
  %2202 = vmatprep.subr.bf16.mxu0 0
  %2203 = vmatpush2.bf16.msra.mxu0 0
  %2204 = vmatprep.subr.bf16.mxu0 0
  %2205 = vmatpush2.bf16.msra.mxu0 0
  %2206 = vmatprep.subr.bf16.mxu0 0
  %2207 = vmatpush2.bf16.msra.mxu0 0
  %2208 = vmatprep.subr.bf16.mxu0 0
  %2209 = vmatpush2.bf16.msra.mxu0 0
  %2210 = vmatprep.subr.bf16.mxu0 0
  %2211 = vmatpush2.bf16.msra.mxu0 0
  %2212 = vmatprep.subr.bf16.mxu0 0
  %2213 = vmatpush2.bf16.msra.mxu0 0
  %2214 = vmatprep.subr.bf16.mxu0 0
  %2215 = vmatpush2.bf16.msra.mxu0 0
  %2216 = vmatprep.mubr.bf16.mxu0 0
  %2217 = vmatmul.mubr.bf16.gmra.mxu0 %v2182
  %v2218 = vpop.f32.mrf.mxu0
  %v2219 = vadd.f32 0.0, %v2218
  %v2220 = vpop.f32.mrf.mxu0
  %v2221 = vpop.f32.mrf.mxu0
  %v2222 = vadd.f32 0.0, %v2221
  %v2223 = vpop.f32.mrf.mxu0
  %2224 = vdwg.mxu0
  %v2229 = vunpack.c.l.b16 %v2155
  %v2230 = vunpack.c.l.b16 %v2156
  %v2231 = vunpack.c.l.b16 %v2157
  %v2232 = vunpack.c.l.b16 %v2158
  %v2233 = vpack.c.b16 %v2230, %v2229
  %v2234 = vpack.c.b16 %v2232, %v2231
  %v2238 = vsel %vm603, %v2167, 0
  %2240 = vmatprep.subr.bf16.mxu0 0
  %2241 = vmatpush1.bf16.msra.mxu0 0
  %2242 = vmatprep.subr.bf16.mxu0 0
  %2243 = vmatpush1.bf16.msra.mxu0 0
  %2244 = vmatprep.subr.bf16.mxu0 0
  %2245 = vmatpush1.bf16.msra.mxu0 0
  %2246 = vmatprep.subr.bf16.mxu0 0
  %2247 = vmatpush1.bf16.msra.mxu0 0
  %2248 = vmatprep.subr.bf16.mxu0 0
  %2249 = vmatpush1.bf16.msra.mxu0 0
  %2250 = vmatprep.subr.bf16.mxu0 0
  %2251 = vmatpush1.bf16.msra.mxu0 0
  %2252 = vmatprep.subr.bf16.mxu0 0
  %2253 = vmatpush1.bf16.msra.mxu0 %v2234
  %2254 = vmatprep.subr.bf16.mxu0 0
  %2255 = vmatpush1.bf16.msra.mxu0 %v2233
  %2256 = vmatprep.subr.bf16.mxu0 0
  %2257 = vmatpush2.bf16.msra.mxu0 0
  %2258 = vmatprep.subr.bf16.mxu0 0
  %2259 = vmatpush2.bf16.msra.mxu0 0
  %2260 = vmatprep.subr.bf16.mxu0 0
  %2261 = vmatpush2.bf16.msra.mxu0 0
  %2262 = vmatprep.subr.bf16.mxu0 0
  %2263 = vmatpush2.bf16.msra.mxu0 0
  %2264 = vmatprep.subr.bf16.mxu0 0
  %2265 = vmatpush2.bf16.msra.mxu0 0
  %2266 = vmatprep.subr.bf16.mxu0 0
  %2267 = vmatpush2.bf16.msra.mxu0 0
  %2268 = vmatprep.subr.bf16.mxu0 0
  %2269 = vmatpush2.bf16.msra.mxu0 0
  %2270 = vmatprep.subr.bf16.mxu0 0
  %2271 = vmatpush2.bf16.msra.mxu0 0
  %2272 = vmatprep.mubr.bf16.mxu0 0
  %2273 = vmatmul.mubr.bf16.gmra.mxu0 %v2238
  %v2274 = vpop.f32.mrf.mxu0
  %v2275 = vadd.f32 %v2219, %v2274
  %v2276 = vpop.f32.mrf.mxu0
  %v2277 = vpop.f32.mrf.mxu0
  %v2278 = vadd.f32 %v2222, %v2277
  %v2279 = vpop.f32.mrf.mxu0
  %2280 = vdwg.mxu0
  %v2281 = vld [vmem:[%s13] sm:$0xff]
  %v2282 = vld [vmem:[%s13 + $0x8] sm:$0xff]
  %v2283 = vpack.c.bf16 %v2282, %v2281
  %v2288 = vunpack.c.l.b16 %v2163
  %v2289 = vunpack.c.l.b16 %v2164
  %v2290 = vunpack.c.l.b16 %v2165
  %v2291 = vunpack.c.l.b16 %v2166
  %v2292 = vpack.c.b16 %v2289, %v2288
  %v2293 = vpack.c.b16 %v2291, %v2290
  %v2297 = vsel %vm603, %v2283, 0
  %2299 = vmatprep.subr.bf16.mxu0 0
  %2300 = vmatpush1.bf16.msra.mxu0 0
  %2301 = vmatprep.subr.bf16.mxu0 0
  %2302 = vmatpush1.bf16.msra.mxu0 0
  %2303 = vmatprep.subr.bf16.mxu0 0
  %2304 = vmatpush1.bf16.msra.mxu0 0
  %2305 = vmatprep.subr.bf16.mxu0 0
  %2306 = vmatpush1.bf16.msra.mxu0 0
  %2307 = vmatprep.subr.bf16.mxu0 0
  %2308 = vmatpush1.bf16.msra.mxu0 0
  %2309 = vmatprep.subr.bf16.mxu0 0
  %2310 = vmatpush1.bf16.msra.mxu0 0
  %2311 = vmatprep.subr.bf16.mxu0 0
  %2312 = vmatpush1.bf16.msra.mxu0 %v2293
  %2313 = vmatprep.subr.bf16.mxu0 0
  %2314 = vmatpush1.bf16.msra.mxu0 %v2292
  %2315 = vmatprep.subr.bf16.mxu0 0
  %2316 = vmatpush2.bf16.msra.mxu0 0
  %2317 = vmatprep.subr.bf16.mxu0 0
  %2318 = vmatpush2.bf16.msra.mxu0 0
  %2319 = vmatprep.subr.bf16.mxu0 0
  %2320 = vmatpush2.bf16.msra.mxu0 0
  %2321 = vmatprep.subr.bf16.mxu0 0
  %2322 = vmatpush2.bf16.msra.mxu0 0
  %2323 = vmatprep.subr.bf16.mxu0 0
  %2324 = vmatpush2.bf16.msra.mxu0 0
  %2325 = vmatprep.subr.bf16.mxu0 0
  %2326 = vmatpush2.bf16.msra.mxu0 0
  %2327 = vmatprep.subr.bf16.mxu0 0
  %2328 = vmatpush2.bf16.msra.mxu0 0
  %2329 = vmatprep.subr.bf16.mxu0 0
  %2330 = vmatpush2.bf16.msra.mxu0 0
  %2331 = vmatprep.mubr.bf16.mxu0 0
  %2332 = vmatmul.mubr.bf16.gmra.mxu0 %v2297
  %v2333 = vpop.f32.mrf.mxu0
  %v2334 = vadd.f32 0.0, %v2333
  %v2335 = vpop.f32.mrf.mxu0
  %v2336 = vpop.f32.mrf.mxu0
  %v2337 = vadd.f32 0.0, %v2336
  %v2338 = vpop.f32.mrf.mxu0
  %2339 = vdwg.mxu0
  %v2340 = vadd.f32 %v2275, %v2334
  %v2341 = vadd.f32 %v2278, %v2337
  %v2342 = vld [vmem:[%s37] sm:$0x1]
  %v2344 = vlaneseq
  %v2345 = vshrl.u32 %v2344, 7
  %v2346 = vsub.s32 0, %v2345
  %v2347 = vrot.slane %v2342, %v2346
  %v2349 = vadd.f32 %v2340, %v2347
  %v2350 = vadd.f32 %v2341, %v2347
  %v2351 = vld [vmem:[%s39] sm:$0xf]
  %v2352 = vld [vmem:[%s39 + $0x4] sm:$0xf]
  %v2353 = vld [vmem:[%s39 + $0x8] sm:$0xf]
  %v2354 = vld [vmem:[%s39 + $0xc] sm:$0xf]
  %v2355 = vld [vmem:[%s41] sm:$0x1]
  %v2356 = vld [vmem:[%s43] sm:$0xf]
  %v2357 = vld [vmem:[%s43 + $0x4] sm:$0xf]
  %v2358 = vld [vmem:[%s43 + $0x8] sm:$0xf]
  %v2359 = vld [vmem:[%s43 + $0xc] sm:$0xf]
  %v2360 = vld [vmem:[%s45] sm:$0x1]
  %v2361 = vmax.f32 %v2349, 0.0
  %v2362 = vmax.f32 %v2350, 0.0
  %v2363 = vpack.c.bf16 %v2362, %v2361
  %v2365 = vlaneseq
  %v2366 = vshrl.u32 %v2365, 7
  %v2367 = vsub.s32 0, %v2366
  %v2368 = vrot.slane %v2355, %v2367
  %v2374 = vunpack.c.l.b16 %v2351
  %v2375 = vunpack.c.l.b16 %v2352
  %v2376 = vunpack.c.l.b16 %v2353
  %v2377 = vunpack.c.l.b16 %v2354
  %v2378 = vpack.c.b16 %v2375, %v2374
  %v2379 = vpack.c.b16 %v2377, %v2376
  %v2383 = vsel %vm603, %v2363, 0
  %2385 = vmatprep.subr.bf16.mxu0 0
  %2386 = vmatpush1.bf16.msra.mxu0 0
  %2387 = vmatprep.subr.bf16.mxu0 0
  %2388 = vmatpush1.bf16.msra.mxu0 0
  %2389 = vmatprep.subr.bf16.mxu0 0
  %2390 = vmatpush1.bf16.msra.mxu0 0
  %2391 = vmatprep.subr.bf16.mxu0 0
  %2392 = vmatpush1.bf16.msra.mxu0 0
  %2393 = vmatprep.subr.bf16.mxu0 0
  %2394 = vmatpush1.bf16.msra.mxu0 0
  %2395 = vmatprep.subr.bf16.mxu0 0
  %2396 = vmatpush1.bf16.msra.mxu0 0
  %2397 = vmatprep.subr.bf16.mxu0 0
  %2398 = vmatpush1.bf16.msra.mxu0 %v2379
  %2399 = vmatprep.subr.bf16.mxu0 0
  %2400 = vmatpush1.bf16.msra.mxu0 %v2378
  %2401 = vmatprep.subr.bf16.mxu0 0
  %2402 = vmatpush2.bf16.msra.mxu0 0
  %2403 = vmatprep.subr.bf16.mxu0 0
  %2404 = vmatpush2.bf16.msra.mxu0 0
  %2405 = vmatprep.subr.bf16.mxu0 0
  %2406 = vmatpush2.bf16.msra.mxu0 0
  %2407 = vmatprep.subr.bf16.mxu0 0
  %2408 = vmatpush2.bf16.msra.mxu0 0
  %2409 = vmatprep.subr.bf16.mxu0 0
  %2410 = vmatpush2.bf16.msra.mxu0 0
  %2411 = vmatprep.subr.bf16.mxu0 0
  %2412 = vmatpush2.bf16.msra.mxu0 0
  %2413 = vmatprep.subr.bf16.mxu0 0
  %2414 = vmatpush2.bf16.msra.mxu0 0
  %2415 = vmatprep.subr.bf16.mxu0 0
  %2416 = vmatpush2.bf16.msra.mxu0 0
  %2417 = vmatprep.mubr.bf16.mxu0 0
  %2418 = vmatmul.mubr.bf16.gmra.mxu0 %v2383
  %v2419 = vpop.f32.mrf.mxu0
  %v2420 = vadd.f32 %v2368, %v2419
  %v2421 = vpop.f32.mrf.mxu0
  %v2422 = vpop.f32.mrf.mxu0
  %v2423 = vadd.f32 %v2368, %v2422
  %v2424 = vpop.f32.mrf.mxu0
  %2425 = vdwg.mxu0
  %v2426 = vmax.f32 %v2420, 0.0
  %v2427 = vmax.f32 %v2423, 0.0
  %v2428 = vpack.c.bf16 %v2427, %v2426
  %v2430 = vlaneseq
  %v2431 = vshrl.u32 %v2430, 7
  %v2432 = vsub.s32 0, %v2431
  %v2433 = vrot.slane %v2360, %v2432
  %v2439 = vunpack.c.l.b16 %v2356
  %v2440 = vunpack.c.l.b16 %v2357
  %v2441 = vunpack.c.l.b16 %v2358
  %v2442 = vunpack.c.l.b16 %v2359
  %v2443 = vpack.c.b16 %v2440, %v2439
  %v2444 = vpack.c.b16 %v2442, %v2441
  %v2448 = vsel %vm603, %v2428, 0
  %2450 = vmatprep.subr.bf16.mxu0 0
  %2451 = vmatpush1.bf16.msra.mxu0 0
  %2452 = vmatprep.subr.bf16.mxu0 0
  %2453 = vmatpush1.bf16.msra.mxu0 0
  %2454 = vmatprep.subr.bf16.mxu0 0
  %2455 = vmatpush1.bf16.msra.mxu0 0
  %2456 = vmatprep.subr.bf16.mxu0 0
  %2457 = vmatpush1.bf16.msra.mxu0 0
  %2458 = vmatprep.subr.bf16.mxu0 0
  %2459 = vmatpush1.bf16.msra.mxu0 0
  %2460 = vmatprep.subr.bf16.mxu0 0
  %2461 = vmatpush1.bf16.msra.mxu0 0
  %2462 = vmatprep.subr.bf16.mxu0 0
  %2463 = vmatpush1.bf16.msra.mxu0 %v2444
  %2464 = vmatprep.subr.bf16.mxu0 0
  %2465 = vmatpush1.bf16.msra.mxu0 %v2443
  %2466 = vmatprep.subr.bf16.mxu0 0
  %2467 = vmatpush2.bf16.msra.mxu0 0
  %2468 = vmatprep.subr.bf16.mxu0 0
  %2469 = vmatpush2.bf16.msra.mxu0 0
  %2470 = vmatprep.subr.bf16.mxu0 0
  %2471 = vmatpush2.bf16.msra.mxu0 0
  %2472 = vmatprep.subr.bf16.mxu0 0
  %2473 = vmatpush2.bf16.msra.mxu0 0
  %2474 = vmatprep.subr.bf16.mxu0 0
  %2475 = vmatpush2.bf16.msra.mxu0 0
  %2476 = vmatprep.subr.bf16.mxu0 0
  %2477 = vmatpush2.bf16.msra.mxu0 0
  %2478 = vmatprep.subr.bf16.mxu0 0
  %2479 = vmatpush2.bf16.msra.mxu0 0
  %2480 = vmatprep.subr.bf16.mxu0 0
  %2481 = vmatpush2.bf16.msra.mxu0 0
  %2482 = vmatprep.mubr.bf16.mxu0 0
  %2483 = vmatmul.mubr.bf16.gmra.mxu0 %v2448
  %v2484 = vpop.f32.mrf.mxu0
  %v2485 = vadd.f32 %v2433, %v2484
  %v2486 = vpop.f32.mrf.mxu0
  %v2487 = vpop.f32.mrf.mxu0
  %v2488 = vadd.f32 %v2433, %v2487
  %v2489 = vpop.f32.mrf.mxu0
  %2490 = vdwg.mxu0
  %v2491 = vsel %vm2078, 1, 0
  %v2492 = vsel %vm2079, 1, 0
  %v2493 = vcvt.s32.f32 %v2491
  %v2494 = vcvt.s32.f32 %v2492
  %vm2495 = vcmask 1041408
  %v2496 = vsel %vm2495, %v2493, 0.0
  %vm2497 = vcmask 779264
  %v2498 = vsel %vm2497, %v2494, 0.0
  %v2499 = vadd.f32 %v2496, %v2498
  %2500 = vadd.xlane.f32.xlu0 %v2499
  %v2501 = vpop.xlane.xlu0 %2500
  %v2502 = vmax.f32 %v2501, 1.0
  %v2503 = vpack.c.bf16 %v2493, %v2493
  %v2504 = vpack.c.bf16 %v2494, %v2494
  %v2506 = vsel %vm2080, %v2504, 0
  %2508 = vmatprep.subr.bf16.mxu0 0
  %2509 = vmatpush1.bf16.msra.mxu0 %v2100
  %2510 = vmatprep.subr.bf16.mxu0 0
  %2511 = vmatpush1.bf16.msra.mxu0 %v2099
  %2512 = vmatprep.subr.bf16.mxu0 0
  %2513 = vmatpush1.bf16.msra.mxu0 %v2098
  %2514 = vmatprep.subr.bf16.mxu0 0
  %2515 = vmatpush1.bf16.msra.mxu0 %v2097
  %2516 = vmatprep.subr.bf16.mxu0 0
  %2517 = vmatpush1.bf16.msra.mxu0 %v2096
  %2518 = vmatprep.subr.bf16.mxu0 0
  %2519 = vmatpush1.bf16.msra.mxu0 %v2095
  %2520 = vmatprep.subr.bf16.mxu0 0
  %2521 = vmatpush1.bf16.msra.mxu0 %v2094
  %2522 = vmatprep.subr.bf16.mxu0 0
  %2523 = vmatpush1.bf16.msra.mxu0 %v2093
  %2524 = vmatprep.subr.bf16.mxu0 0
  %2525 = vmatpush2.bf16.msra.mxu0 0
  %2526 = vmatprep.subr.bf16.mxu0 0
  %2527 = vmatpush2.bf16.msra.mxu0 0
  %2528 = vmatprep.subr.bf16.mxu0 0
  %2529 = vmatpush2.bf16.msra.mxu0 %v2106
  %2530 = vmatprep.subr.bf16.mxu0 0
  %2531 = vmatpush2.bf16.msra.mxu0 %v2105
  %2532 = vmatprep.subr.bf16.mxu0 0
  %2533 = vmatpush2.bf16.msra.mxu0 %v2104
  %2534 = vmatprep.subr.bf16.mxu0 0
  %2535 = vmatpush2.bf16.msra.mxu0 %v2103
  %2536 = vmatprep.subr.bf16.mxu0 0
  %2537 = vmatpush2.bf16.msra.mxu0 %v2102
  %2538 = vmatprep.subr.bf16.mxu0 0
  %2539 = vmatpush2.bf16.msra.mxu0 %v2101
  %2540 = vmatprep.mubr.bf16.mxu0 %v2506
  %2541 = vmatmul.mubr.bf16.gmra.mxu0 %v2503
  %v2542 = vpop.f32.mrf.mxu0
  %v2543 = vadd.f32 0.0, %v2542
  %v2544 = vpop.f32.mrf.mxu0
  %v2545 = vpop.f32.mrf.mxu0
  %v2546 = vpop.f32.mrf.mxu0
  %2547 = vdwg.mxu0
  %v2548 = vrcp.pop %v2502
  %v2549 = vmul.f32 %v2543, %v2548
  %v2550 = vsel %vm2068, 1, 0
  %v2551 = vcvt.s32.f32 %v2550
  %vm2552 = vcmask 123904
  %v2553 = vsel %vm2552, %v2551, 0.0
  %2554 = vadd.xlane.f32.xlu0 %v2553
  %v2555 = vpop.xlane.xlu0 %2554
  %v2556 = vmax.f32 %v2555, 1.0
  %v2557 = vpack.c.bf16 %v2551, %v2551
  %v2558 = vpack.c.bf16 %v2488, %v2485
  %vm2559 = vcmask 130048
  %v2561 = vsel %vm2559, %v2557, 0
  %2563 = vmatprep.subr.bf16.mxu0 0
  %2564 = vmatpush1.bf16.msra.mxu0 0
  %2565 = vmatprep.subr.bf16.mxu0 0
  %2566 = vmatpush1.bf16.msra.mxu0 0
  %2567 = vmatprep.subr.bf16.mxu0 0
  %2568 = vmatpush1.bf16.msra.mxu0 0
  %2569 = vmatprep.subr.bf16.mxu0 0
  %2570 = vmatpush1.bf16.msra.mxu0 0
  %2571 = vmatprep.subr.bf16.mxu0 0
  %2572 = vmatpush1.bf16.msra.mxu0 0
  %2573 = vmatprep.subr.bf16.mxu0 0
  %2574 = vmatpush1.bf16.msra.mxu0 0
  %2575 = vmatprep.subr.bf16.mxu0 0
  %2576 = vmatpush1.bf16.msra.mxu0 0
  %2577 = vmatprep.subr.bf16.mxu0 0
  %2578 = vmatpush1.bf16.msra.mxu0 %v2558
  %2579 = vmatprep.subr.bf16.mxu0 0
  %2580 = vmatpush2.bf16.msra.mxu0 0
  %2581 = vmatprep.subr.bf16.mxu0 0
  %2582 = vmatpush2.bf16.msra.mxu0 0
  %2583 = vmatprep.subr.bf16.mxu0 0
  %2584 = vmatpush2.bf16.msra.mxu0 0
  %2585 = vmatprep.subr.bf16.mxu0 0
  %2586 = vmatpush2.bf16.msra.mxu0 0
  %2587 = vmatprep.subr.bf16.mxu0 0
  %2588 = vmatpush2.bf16.msra.mxu0 0
  %2589 = vmatprep.subr.bf16.mxu0 0
  %2590 = vmatpush2.bf16.msra.mxu0 0
  %2591 = vmatprep.subr.bf16.mxu0 0
  %2592 = vmatpush2.bf16.msra.mxu0 0
  %2593 = vmatprep.subr.bf16.mxu0 0
  %2594 = vmatpush2.bf16.msra.mxu0 0
  %2595 = vmatprep.mubr.bf16.mxu0 0
  %2596 = vmatmul.mubr.bf16.gmra.mxu0 %v2561
  %v2597 = vpop.f32.mrf.mxu0
  %v2598 = vadd.f32 0.0, %v2597
  %v2599 = vpop.f32.mrf.mxu0
  %v2600 = vpop.f32.mrf.mxu0
  %v2601 = vpop.f32.mrf.mxu0
  %2602 = vdwg.mxu0
  %v2603 = vrcp.pop %v2556
  %v2604 = vmul.f32 %v2598, %v2603
  %v2605 = vld [vmem:[%s47] sm:$0xf]
  %v2606 = vld [vmem:[%s47 + $0x4] sm:$0xf]
  %v2607 = vld [vmem:[%s47 + $0x8] sm:$0xf]
  %v2608 = vld [vmem:[%s47 + $0xc] sm:$0xf]
  %v2609 = vld [vmem:[%s47 + $0x10] sm:$0xf]
  %v2610 = vld [vmem:[%s47 + $0x14] sm:$0xf]
  %v2611 = vld [vmem:[%s47 + $0x18] sm:$0xf]
  %v2612 = vld [vmem:[%s47 + $0x1c] sm:$0xf]
  %v2613 = vld [vmem:[%s47 + $0x20] sm:$0xf]
  %v2614 = vld [vmem:[%s47 + $0x24] sm:$0xf]
  %v2615 = vld [vmem:[%s47 + $0x28] sm:$0xf]
  %v2616 = vld [vmem:[%s47 + $0x2c] sm:$0xf]
  %v2617 = vpack.c.bf16 %v2549, %v2549
  %v2618 = vpack.c.bf16 %v2604, %v2604
  %v2623 = vunpack.c.l.b16 %v2609
  %v2624 = vunpack.c.l.b16 %v2610
  %v2625 = vunpack.c.l.b16 %v2611
  %v2626 = vunpack.c.l.b16 %v2612
  %v2627 = vpack.c.b16 %v2624, %v2623
  %v2628 = vpack.c.b16 %v2626, %v2625
  %v2632 = vsel %vm603, %v2618, 0
  %2634 = vmatprep.subr.bf16.mxu0 0
  %2635 = vmatpush1.bf16.msra.mxu0 0
  %2636 = vmatprep.subr.bf16.mxu0 0
  %2637 = vmatpush1.bf16.msra.mxu0 0
  %2638 = vmatprep.subr.bf16.mxu0 0
  %2639 = vmatpush1.bf16.msra.mxu0 0
  %2640 = vmatprep.subr.bf16.mxu0 0
  %2641 = vmatpush1.bf16.msra.mxu0 0
  %2642 = vmatprep.subr.bf16.mxu0 0
  %2643 = vmatpush1.bf16.msra.mxu0 0
  %2644 = vmatprep.subr.bf16.mxu0 0
  %2645 = vmatpush1.bf16.msra.mxu0 0
  %2646 = vmatprep.subr.bf16.mxu0 0
  %2647 = vmatpush1.bf16.msra.mxu0 %v2628
  %2648 = vmatprep.subr.bf16.mxu0 0
  %2649 = vmatpush1.bf16.msra.mxu0 %v2627
  %2650 = vmatprep.subr.bf16.mxu0 0
  %2651 = vmatpush2.bf16.msra.mxu0 0
  %2652 = vmatprep.subr.bf16.mxu0 0
  %2653 = vmatpush2.bf16.msra.mxu0 0
  %2654 = vmatprep.subr.bf16.mxu0 0
  %2655 = vmatpush2.bf16.msra.mxu0 0
  %2656 = vmatprep.subr.bf16.mxu0 0
  %2657 = vmatpush2.bf16.msra.mxu0 0
  %2658 = vmatprep.subr.bf16.mxu0 0
  %2659 = vmatpush2.bf16.msra.mxu0 0
  %2660 = vmatprep.subr.bf16.mxu0 0
  %2661 = vmatpush2.bf16.msra.mxu0 0
  %2662 = vmatprep.subr.bf16.mxu0 0
  %2663 = vmatpush2.bf16.msra.mxu0 0
  %2664 = vmatprep.subr.bf16.mxu0 0
  %2665 = vmatpush2.bf16.msra.mxu0 0
  %2666 = vmatprep.mubr.bf16.mxu0 0
  %2667 = vmatmul.mubr.bf16.gmra.mxu0 %v2632
  %v2668 = vpop.f32.mrf.mxu0
  %v2669 = vadd.f32 0.0, %v2668
  %v2670 = vpop.f32.mrf.mxu0
  %v2671 = vpop.f32.mrf.mxu0
  %v2672 = vpop.f32.mrf.mxu0
  %2673 = vdwg.mxu0
  %v2678 = vunpack.c.l.b16 %v2605
  %v2679 = vunpack.c.l.b16 %v2606
  %v2680 = vunpack.c.l.b16 %v2607
  %v2681 = vunpack.c.l.b16 %v2608
  %v2682 = vpack.c.b16 %v2679, %v2678
  %v2683 = vpack.c.b16 %v2681, %v2680
  %v2687 = vsel %vm603, %v2617, 0
  %2689 = vmatprep.subr.bf16.mxu0 0
  %2690 = vmatpush1.bf16.msra.mxu0 0
  %2691 = vmatprep.subr.bf16.mxu0 0
  %2692 = vmatpush1.bf16.msra.mxu0 0
  %2693 = vmatprep.subr.bf16.mxu0 0
  %2694 = vmatpush1.bf16.msra.mxu0 0
  %2695 = vmatprep.subr.bf16.mxu0 0
  %2696 = vmatpush1.bf16.msra.mxu0 0
  %2697 = vmatprep.subr.bf16.mxu0 0
  %2698 = vmatpush1.bf16.msra.mxu0 0
  %2699 = vmatprep.subr.bf16.mxu0 0
  %2700 = vmatpush1.bf16.msra.mxu0 0
  %2701 = vmatprep.subr.bf16.mxu0 0
  %2702 = vmatpush1.bf16.msra.mxu0 %v2683
  %2703 = vmatprep.subr.bf16.mxu0 0
  %2704 = vmatpush1.bf16.msra.mxu0 %v2682
  %2705 = vmatprep.subr.bf16.mxu0 0
  %2706 = vmatpush2.bf16.msra.mxu0 0
  %2707 = vmatprep.subr.bf16.mxu0 0
  %2708 = vmatpush2.bf16.msra.mxu0 0
  %2709 = vmatprep.subr.bf16.mxu0 0
  %2710 = vmatpush2.bf16.msra.mxu0 0
  %2711 = vmatprep.subr.bf16.mxu0 0
  %2712 = vmatpush2.bf16.msra.mxu0 0
  %2713 = vmatprep.subr.bf16.mxu0 0
  %2714 = vmatpush2.bf16.msra.mxu0 0
  %2715 = vmatprep.subr.bf16.mxu0 0
  %2716 = vmatpush2.bf16.msra.mxu0 0
  %2717 = vmatprep.subr.bf16.mxu0 0
  %2718 = vmatpush2.bf16.msra.mxu0 0
  %2719 = vmatprep.subr.bf16.mxu0 0
  %2720 = vmatpush2.bf16.msra.mxu0 0
  %2721 = vmatprep.mubr.bf16.mxu0 0
  %2722 = vmatmul.mubr.bf16.gmra.mxu0 %v2687
  %v2723 = vpop.f32.mrf.mxu0
  %v2724 = vadd.f32 %v2669, %v2723
  %v2725 = vpop.f32.mrf.mxu0
  %v2726 = vpop.f32.mrf.mxu0
  %v2727 = vpop.f32.mrf.mxu0
  %2728 = vdwg.mxu0
  %v2729 = vpack.c.bf16 %v175, %v175
  %v2734 = vunpack.c.l.b16 %v2613
  %v2735 = vunpack.c.l.b16 %v2614
  %v2736 = vunpack.c.l.b16 %v2615
  %v2737 = vunpack.c.l.b16 %v2616
  %v2738 = vpack.c.b16 %v2735, %v2734
  %v2739 = vpack.c.b16 %v2737, %v2736
  %v2743 = vsel %vm603, %v2729, 0
  %2745 = vmatprep.subr.bf16.mxu0 0
  %2746 = vmatpush1.bf16.msra.mxu0 0
  %2747 = vmatprep.subr.bf16.mxu0 0
  %2748 = vmatpush1.bf16.msra.mxu0 0
  %2749 = vmatprep.subr.bf16.mxu0 0
  %2750 = vmatpush1.bf16.msra.mxu0 0
  %2751 = vmatprep.subr.bf16.mxu0 0
  %2752 = vmatpush1.bf16.msra.mxu0 0
  %2753 = vmatprep.subr.bf16.mxu0 0
  %2754 = vmatpush1.bf16.msra.mxu0 0
  %2755 = vmatprep.subr.bf16.mxu0 0
  %2756 = vmatpush1.bf16.msra.mxu0 0
  %2757 = vmatprep.subr.bf16.mxu0 0
  %2758 = vmatpush1.bf16.msra.mxu0 %v2739
  %2759 = vmatprep.subr.bf16.mxu0 0
  %2760 = vmatpush1.bf16.msra.mxu0 %v2738
  %2761 = vmatprep.subr.bf16.mxu0 0
  %2762 = vmatpush2.bf16.msra.mxu0 0
  %2763 = vmatprep.subr.bf16.mxu0 0
  %2764 = vmatpush2.bf16.msra.mxu0 0
  %2765 = vmatprep.subr.bf16.mxu0 0
  %2766 = vmatpush2.bf16.msra.mxu0 0
  %2767 = vmatprep.subr.bf16.mxu0 0
  %2768 = vmatpush2.bf16.msra.mxu0 0
  %2769 = vmatprep.subr.bf16.mxu0 0
  %2770 = vmatpush2.bf16.msra.mxu0 0
  %2771 = vmatprep.subr.bf16.mxu0 0
  %2772 = vmatpush2.bf16.msra.mxu0 0
  %2773 = vmatprep.subr.bf16.mxu0 0
  %2774 = vmatpush2.bf16.msra.mxu0 0
  %2775 = vmatprep.subr.bf16.mxu0 0
  %2776 = vmatpush2.bf16.msra.mxu0 0
  %2777 = vmatprep.mubr.bf16.mxu0 0
  %2778 = vmatmul.mubr.bf16.gmra.mxu0 %v2743
  %v2779 = vpop.f32.mrf.mxu0
  %v2780 = vadd.f32 0.0, %v2779
  %v2781 = vpop.f32.mrf.mxu0
  %v2782 = vpop.f32.mrf.mxu0
  %v2783 = vpop.f32.mrf.mxu0
  %2784 = vdwg.mxu0
  %v2785 = vadd.f32 %v2724, %v2780
  %v2786 = vld [vmem:[%s49] sm:$0x1]
  %v2788 = vlaneseq
  %v2789 = vshrl.u32 %v2788, 7
  %v2790 = vsub.s32 0, %v2789
  %v2791 = vrot.slane %v2786, %v2790
  %v2793 = vadd.f32 %v2785, %v2791
  %v2794 = vld [vmem:[%s51] sm:$0xf]
  %v2795 = vld [vmem:[%s51 + $0x4] sm:$0xf]
  %v2796 = vld [vmem:[%s51 + $0x8] sm:$0xf]
  %v2797 = vld [vmem:[%s51 + $0xc] sm:$0xf]
  %v2798 = vld [vmem:[%s53] sm:$0x1]
  %v2799 = vld [vmem:[%s55] sm:$0xf]
  %v2800 = vld [vmem:[%s55 + $0x4] sm:$0xf]
  %v2801 = vld [vmem:[%s55 + $0x8] sm:$0xf]
  %v2802 = vld [vmem:[%s55 + $0xc] sm:$0xf]
  %v2803 = vld [vmem:[%s57] sm:$0x1]
  %v2804 = vmax.f32 %v2793, 0.0
  %v2805 = vpack.c.bf16 %v2804, %v2804
  %v2807 = vlaneseq
  %v2808 = vshrl.u32 %v2807, 7
  %v2809 = vsub.s32 0, %v2808
  %v2810 = vrot.slane %v2798, %v2809
  %v2816 = vunpack.c.l.b16 %v2794
  %v2817 = vunpack.c.l.b16 %v2795
  %v2818 = vunpack.c.l.b16 %v2796
  %v2819 = vunpack.c.l.b16 %v2797
  %v2820 = vpack.c.b16 %v2817, %v2816
  %v2821 = vpack.c.b16 %v2819, %v2818
  %v2825 = vsel %vm603, %v2805, 0
  %2827 = vmatprep.subr.bf16.mxu0 0
  %2828 = vmatpush1.bf16.msra.mxu0 0
  %2829 = vmatprep.subr.bf16.mxu0 0
  %2830 = vmatpush1.bf16.msra.mxu0 0
  %2831 = vmatprep.subr.bf16.mxu0 0
  %2832 = vmatpush1.bf16.msra.mxu0 0
  %2833 = vmatprep.subr.bf16.mxu0 0
  %2834 = vmatpush1.bf16.msra.mxu0 0
  %2835 = vmatprep.subr.bf16.mxu0 0
  %2836 = vmatpush1.bf16.msra.mxu0 0
  %2837 = vmatprep.subr.bf16.mxu0 0
  %2838 = vmatpush1.bf16.msra.mxu0 0
  %2839 = vmatprep.subr.bf16.mxu0 0
  %2840 = vmatpush1.bf16.msra.mxu0 %v2821
  %2841 = vmatprep.subr.bf16.mxu0 0
  %2842 = vmatpush1.bf16.msra.mxu0 %v2820
  %2843 = vmatprep.subr.bf16.mxu0 0
  %2844 = vmatpush2.bf16.msra.mxu0 0
  %2845 = vmatprep.subr.bf16.mxu0 0
  %2846 = vmatpush2.bf16.msra.mxu0 0
  %2847 = vmatprep.subr.bf16.mxu0 0
  %2848 = vmatpush2.bf16.msra.mxu0 0
  %2849 = vmatprep.subr.bf16.mxu0 0
  %2850 = vmatpush2.bf16.msra.mxu0 0
  %2851 = vmatprep.subr.bf16.mxu0 0
  %2852 = vmatpush2.bf16.msra.mxu0 0
  %2853 = vmatprep.subr.bf16.mxu0 0
  %2854 = vmatpush2.bf16.msra.mxu0 0
  %2855 = vmatprep.subr.bf16.mxu0 0
  %2856 = vmatpush2.bf16.msra.mxu0 0
  %2857 = vmatprep.subr.bf16.mxu0 0
  %2858 = vmatpush2.bf16.msra.mxu0 0
  %2859 = vmatprep.mubr.bf16.mxu0 0
  %2860 = vmatmul.mubr.bf16.gmra.mxu0 %v2825
  %v2861 = vpop.f32.mrf.mxu0
  %v2862 = vadd.f32 %v2810, %v2861
  %v2863 = vpop.f32.mrf.mxu0
  %v2864 = vpop.f32.mrf.mxu0
  %v2865 = vpop.f32.mrf.mxu0
  %2866 = vdwg.mxu0
  %v2867 = vmax.f32 %v2862, 0.0
  %v2868 = vpack.c.bf16 %v2867, %v2867
  %v2870 = vlaneseq
  %v2871 = vshrl.u32 %v2870, 7
  %v2872 = vsub.s32 0, %v2871
  %v2873 = vrot.slane %v2803, %v2872
  %v2879 = vunpack.c.l.b16 %v2799
  %v2880 = vunpack.c.l.b16 %v2800
  %v2881 = vunpack.c.l.b16 %v2801
  %v2882 = vunpack.c.l.b16 %v2802
  %v2883 = vpack.c.b16 %v2880, %v2879
  %v2884 = vpack.c.b16 %v2882, %v2881
  %v2888 = vsel %vm603, %v2868, 0
  %2890 = vmatprep.subr.bf16.mxu0 0
  %2891 = vmatpush1.bf16.msra.mxu0 0
  %2892 = vmatprep.subr.bf16.mxu0 0
  %2893 = vmatpush1.bf16.msra.mxu0 0
  %2894 = vmatprep.subr.bf16.mxu0 0
  %2895 = vmatpush1.bf16.msra.mxu0 0
  %2896 = vmatprep.subr.bf16.mxu0 0
  %2897 = vmatpush1.bf16.msra.mxu0 0
  %2898 = vmatprep.subr.bf16.mxu0 0
  %2899 = vmatpush1.bf16.msra.mxu0 0
  %2900 = vmatprep.subr.bf16.mxu0 0
  %2901 = vmatpush1.bf16.msra.mxu0 0
  %2902 = vmatprep.subr.bf16.mxu0 0
  %2903 = vmatpush1.bf16.msra.mxu0 %v2884
  %2904 = vmatprep.subr.bf16.mxu0 0
  %2905 = vmatpush1.bf16.msra.mxu0 %v2883
  %2906 = vmatprep.subr.bf16.mxu0 0
  %2907 = vmatpush2.bf16.msra.mxu0 0
  %2908 = vmatprep.subr.bf16.mxu0 0
  %2909 = vmatpush2.bf16.msra.mxu0 0
  %2910 = vmatprep.subr.bf16.mxu0 0
  %2911 = vmatpush2.bf16.msra.mxu0 0
  %2912 = vmatprep.subr.bf16.mxu0 0
  %2913 = vmatpush2.bf16.msra.mxu0 0
  %2914 = vmatprep.subr.bf16.mxu0 0
  %2915 = vmatpush2.bf16.msra.mxu0 0
  %2916 = vmatprep.subr.bf16.mxu0 0
  %2917 = vmatpush2.bf16.msra.mxu0 0
  %2918 = vmatprep.subr.bf16.mxu0 0
  %2919 = vmatpush2.bf16.msra.mxu0 0
  %2920 = vmatprep.subr.bf16.mxu0 0
  %2921 = vmatpush2.bf16.msra.mxu0 0
  %2922 = vmatprep.mubr.bf16.mxu0 0
  %2923 = vmatmul.mubr.bf16.gmra.mxu0 %v2888
  %v2924 = vpop.f32.mrf.mxu0
  %v2925 = vadd.f32 %v2873, %v2924
  %v2926 = vpop.f32.mrf.mxu0
  %v2927 = vpop.f32.mrf.mxu0
  %v2928 = vpop.f32.mrf.mxu0
  %2929 = vdwg.mxu0
  %v2930 = vadd.f32 %v2485, %v173
  %v2931 = vadd.f32 %v2488, %v174
  %v2932 = vadd.f32 %v1929, %v436
  %v2933 = vadd.f32 %v1932, %v438
  %v2934 = vadd.f32 %v1937, %v440
  %v2935 = vadd.f32 %v1940, %v442
  %v2936 = vadd.f32 %v1945, %v444
  %v2937 = vadd.f32 %v1948, %v446
  %v2938 = vadd.f32 %v1953, %v448
  %v2939 = vadd.f32 %v1956, %v450
  %v2940 = vadd.f32 %v1961, %v452
  %v2941 = vadd.f32 %v1964, %v454
  %v2942 = vadd.f32 %v1969, %v456
  %v2943 = vadd.f32 %v1972, %v458
  %v2944 = vadd.f32 %v1977, %v460
  %v2945 = vadd.f32 %v1980, %v462
  %v2946 = vadd.f32 %v2925, %v175
  %v2947 = vld [vmem:[%s59] sm:$0xf]
  %v2948 = vld [vmem:[%s59 + $0x4] sm:$0xf]
  %v2949 = vld [vmem:[%s59 + $0x8] sm:$0xf]
  %v2950 = vld [vmem:[%s59 + $0xc] sm:$0xf]
  %v2951 = vld [vmem:[%s59 + $0x10] sm:$0xf]
  %v2952 = vld [vmem:[%s59 + $0x14] sm:$0xf]
  %v2953 = vld [vmem:[%s59 + $0x18] sm:$0xf]
  %v2954 = vld [vmem:[%s59 + $0x1c] sm:$0xf]
  %v2955 = vld [vmem:[%s61] sm:$0xf]
  %v2956 = vld [vmem:[%s61 + $0x4] sm:$0xf]
  %v2957 = vld [vmem:[%s61 + $0x8] sm:$0xf]
  %v2958 = vld [vmem:[%s61 + $0xc] sm:$0xf]
  %v2959 = vld [vmem:[%s63] sm:$0x1]
  %v2964 = vunpack.c.l.b16 %v2951
  %v2965 = vunpack.c.l.b16 %v2952
  %v2966 = vunpack.c.l.b16 %v2953
  %v2967 = vunpack.c.l.b16 %v2954
  %v2968 = vpack.c.b16 %v2965, %v2964
  %v2969 = vpack.c.b16 %v2967, %v2966
  %v2973 = vsel %vm603, 0, 0
  %2975 = vmatprep.subr.bf16.mxu0 0
  %2976 = vmatpush1.bf16.msra.mxu0 0
  %2977 = vmatprep.subr.bf16.mxu0 0
  %2978 = vmatpush1.bf16.msra.mxu0 0
  %2979 = vmatprep.subr.bf16.mxu0 0
  %2980 = vmatpush1.bf16.msra.mxu0 0
  %2981 = vmatprep.subr.bf16.mxu0 0
  %2982 = vmatpush1.bf16.msra.mxu0 0
  %2983 = vmatprep.subr.bf16.mxu0 0
  %2984 = vmatpush1.bf16.msra.mxu0 0
  %2985 = vmatprep.subr.bf16.mxu0 0
  %2986 = vmatpush1.bf16.msra.mxu0 0
  %2987 = vmatprep.subr.bf16.mxu0 0
  %2988 = vmatpush1.bf16.msra.mxu0 %v2969
  %2989 = vmatprep.subr.bf16.mxu0 0
  %2990 = vmatpush1.bf16.msra.mxu0 %v2968
  %2991 = vmatprep.subr.bf16.mxu0 0
  %2992 = vmatpush2.bf16.msra.mxu0 0
  %2993 = vmatprep.subr.bf16.mxu0 0
  %2994 = vmatpush2.bf16.msra.mxu0 0
  %2995 = vmatprep.subr.bf16.mxu0 0
  %2996 = vmatpush2.bf16.msra.mxu0 0
  %2997 = vmatprep.subr.bf16.mxu0 0
  %2998 = vmatpush2.bf16.msra.mxu0 0
  %2999 = vmatprep.subr.bf16.mxu0 0
  %3000 = vmatpush2.bf16.msra.mxu0 0
  %3001 = vmatprep.subr.bf16.mxu0 0
  %3002 = vmatpush2.bf16.msra.mxu0 0
  %3003 = vmatprep.subr.bf16.mxu0 0
  %3004 = vmatpush2.bf16.msra.mxu0 0
  %3005 = vmatprep.subr.bf16.mxu0 0
  %3006 = vmatpush2.bf16.msra.mxu0 0
  %3007 = vmatprep.mubr.bf16.mxu0 0
  %3008 = vmatmul.mubr.bf16.gmra.mxu0 %v2973
  %v3009 = vpop.f32.mrf.mxu0
  %v3010 = vadd.f32 0.0, %v3009
  %v3011 = vpop.f32.mrf.mxu0
  %v3012 = vpop.f32.mrf.mxu0
  %v3013 = vpop.f32.mrf.mxu0
  %3014 = vdwg.mxu0
  %v3019 = vunpack.c.l.b16 %v2947
  %v3020 = vunpack.c.l.b16 %v2948
  %v3021 = vunpack.c.l.b16 %v2949
  %v3022 = vunpack.c.l.b16 %v2950
  %v3023 = vpack.c.b16 %v3020, %v3019
  %v3024 = vpack.c.b16 %v3022, %v3021
  %3027 = vmatprep.subr.bf16.mxu0 0
  %3028 = vmatpush1.bf16.msra.mxu0 0
  %3029 = vmatprep.subr.bf16.mxu0 0
  %3030 = vmatpush1.bf16.msra.mxu0 0
  %3031 = vmatprep.subr.bf16.mxu0 0
  %3032 = vmatpush1.bf16.msra.mxu0 0
  %3033 = vmatprep.subr.bf16.mxu0 0
  %3034 = vmatpush1.bf16.msra.mxu0 0
  %3035 = vmatprep.subr.bf16.mxu0 0
  %3036 = vmatpush1.bf16.msra.mxu0 0
  %3037 = vmatprep.subr.bf16.mxu0 0
  %3038 = vmatpush1.bf16.msra.mxu0 0
  %3039 = vmatprep.subr.bf16.mxu0 0
  %3040 = vmatpush1.bf16.msra.mxu0 %v3024
  %3041 = vmatprep.subr.bf16.mxu0 0
  %3042 = vmatpush1.bf16.msra.mxu0 %v3023
  %3043 = vmatprep.subr.bf16.mxu0 0
  %3044 = vmatpush2.bf16.msra.mxu0 0
  %3045 = vmatprep.subr.bf16.mxu0 0
  %3046 = vmatpush2.bf16.msra.mxu0 0
  %3047 = vmatprep.subr.bf16.mxu0 0
  %3048 = vmatpush2.bf16.msra.mxu0 0
  %3049 = vmatprep.subr.bf16.mxu0 0
  %3050 = vmatpush2.bf16.msra.mxu0 0
  %3051 = vmatprep.subr.bf16.mxu0 0
  %3052 = vmatpush2.bf16.msra.mxu0 0
  %3053 = vmatprep.subr.bf16.mxu0 0
  %3054 = vmatpush2.bf16.msra.mxu0 0
  %3055 = vmatprep.subr.bf16.mxu0 0
  %3056 = vmatpush2.bf16.msra.mxu0 0
  %3057 = vmatprep.subr.bf16.mxu0 0
  %3058 = vmatpush2.bf16.msra.mxu0 0
  %3059 = vmatprep.mubr.bf16.mxu0 0
  %3060 = vmatmul.mubr.bf16.gmra.mxu0 %v2973
  %v3061 = vpop.f32.mrf.mxu0
  %v3062 = vadd.f32 %v3010, %v3061
  %v3063 = vpop.f32.mrf.mxu0
  %v3064 = vpop.f32.mrf.mxu0
  %v3065 = vpop.f32.mrf.mxu0
  %3066 = vdwg.mxu0
  %v3071 = vunpack.c.l.b16 %v2955
  %v3072 = vunpack.c.l.b16 %v2956
  %v3073 = vunpack.c.l.b16 %v2957
  %v3074 = vunpack.c.l.b16 %v2958
  %v3075 = vpack.c.b16 %v3072, %v3071
  %v3076 = vpack.c.b16 %v3074, %v3073
  %3079 = vmatprep.subr.bf16.mxu0 0
  %3080 = vmatpush1.bf16.msra.mxu0 0
  %3081 = vmatprep.subr.bf16.mxu0 0
  %3082 = vmatpush1.bf16.msra.mxu0 0
  %3083 = vmatprep.subr.bf16.mxu0 0
  %3084 = vmatpush1.bf16.msra.mxu0 0
  %3085 = vmatprep.subr.bf16.mxu0 0
  %3086 = vmatpush1.bf16.msra.mxu0 0
  %3087 = vmatprep.subr.bf16.mxu0 0
  %3088 = vmatpush1.bf16.msra.mxu0 0
  %3089 = vmatprep.subr.bf16.mxu0 0
  %3090 = vmatpush1.bf16.msra.mxu0 0
  %3091 = vmatprep.subr.bf16.mxu0 0
  %3092 = vmatpush1.bf16.msra.mxu0 %v3076
  %3093 = vmatprep.subr.bf16.mxu0 0
  %3094 = vmatpush1.bf16.msra.mxu0 %v3075
  %3095 = vmatprep.subr.bf16.mxu0 0
  %3096 = vmatpush2.bf16.msra.mxu0 0
  %3097 = vmatprep.subr.bf16.mxu0 0
  %3098 = vmatpush2.bf16.msra.mxu0 0
  %3099 = vmatprep.subr.bf16.mxu0 0
  %3100 = vmatpush2.bf16.msra.mxu0 0
  %3101 = vmatprep.subr.bf16.mxu0 0
  %3102 = vmatpush2.bf16.msra.mxu0 0
  %3103 = vmatprep.subr.bf16.mxu0 0
  %3104 = vmatpush2.bf16.msra.mxu0 0
  %3105 = vmatprep.subr.bf16.mxu0 0
  %3106 = vmatpush2.bf16.msra.mxu0 0
  %3107 = vmatprep.subr.bf16.mxu0 0
  %3108 = vmatpush2.bf16.msra.mxu0 0
  %3109 = vmatprep.subr.bf16.mxu0 0
  %3110 = vmatpush2.bf16.msra.mxu0 0
  %3111 = vmatprep.mubr.bf16.mxu0 0
  %3112 = vmatmul.mubr.bf16.gmra.mxu0 %v2973
  %v3113 = vpop.f32.mrf.mxu0
  %v3114 = vadd.f32 0.0, %v3113
  %v3115 = vpop.f32.mrf.mxu0
  %v3116 = vpop.f32.mrf.mxu0
  %v3117 = vpop.f32.mrf.mxu0
  %3118 = vdwg.mxu0
  %v3119 = vadd.f32 %v3062, %v3114
  %v3121 = vlaneseq
  %v3122 = vshrl.u32 %v3121, 7
  %v3123 = vsub.s32 0, %v3122
  %v3124 = vrot.slane %v2959, %v3123
  %v3126 = vadd.f32 %v3119, %v3124
  %v3127 = vxor.u32 %v3126, 2147483648
  %v3128 = vmul.f32 %v3127, 1.442695
  %v3129 = vpow.pop %v3128
  %v3130 = vadd.f32 %v3129, 1.0
  %v3131 = vrcp.pop %v3130
  %v3132 = vmul.f32 1.0, %v3131
  %v3133 = vtanh.pop %v3126
  %v3134 = vmul.f32 %v3132, 0.0
  %3136 = vrot.lane.b32.xlu0 %v3133, 64
  %v3137 = vpop.permute.xlu0 %3136
  %v3139 = vmul.f32 %v3132, %v3137
  %3141 = vrot.lane.b32.xlu0 %v3139, 32
  %v3142 = vpop.permute.xlu0 %3141
  %v3144 = vadd.f32 %v3134, %v3142
  %v3145 = vtanh.pop %v3144
  %3147 = vrot.lane.b32.xlu0 %v3145, 64
  %v3148 = vpop.permute.xlu0 %3147
  %v3150 = vmul.f32 %v3132, %v3148
  %v3151 = vpack.c.bf16 %v3150, %v3150
  %v3152 = vpack.c.bf16 %v2931, %v2930
  %3154 = vrot.lane.b32.xlu0 %v3151, 32
  %v3155 = vpop.permute.xlu0 %3154
  %v3157 = vsel %vm603, %v3155, 0
  %v3160 = vsel %vm603, %v3152, 0
  %3162 = vmatprep.subr.bf16.mxu0 0
  %3163 = vmatpush1.bf16.xpose.msra.mxu0 0
  %3164 = vmatprep.subr.bf16.mxu0 0
  %3165 = vmatpush1.bf16.xpose.msra.mxu0 0
  %3166 = vmatprep.subr.bf16.mxu0 0
  %3167 = vmatpush1.bf16.xpose.msra.mxu0 0
  %3168 = vmatprep.subr.bf16.mxu0 0
  %3169 = vmatpush1.bf16.xpose.msra.mxu0 0
  %3170 = vmatprep.subr.bf16.mxu0 0
  %3171 = vmatpush1.bf16.xpose.msra.mxu0 0
  %3172 = vmatprep.subr.bf16.mxu0 0
  %3173 = vmatpush1.bf16.xpose.msra.mxu0 0
  %3174 = vmatprep.subr.bf16.mxu0 0
  %3175 = vmatpush1.bf16.xpose.msra.mxu0 0
  %3176 = vmatprep.subr.bf16.mxu0 0
  %3177 = vmatpush1.bf16.xpose.msra.mxu0 %v3160
  %3178 = vmatprep.subr.bf16.mxu0 0
  %3179 = vmatpush2.bf16.xpose.msra.mxu0 0
  %3180 = vmatprep.subr.bf16.mxu0 0
  %3181 = vmatpush2.bf16.xpose.msra.mxu0 0
  %3182 = vmatprep.subr.bf16.mxu0 0
  %3183 = vmatpush2.bf16.xpose.msra.mxu0 0
  %3184 = vmatprep.subr.bf16.mxu0 0
  %3185 = vmatpush2.bf16.xpose.msra.mxu0 0
  %3186 = vmatprep.subr.bf16.mxu0 0
  %3187 = vmatpush2.bf16.xpose.msra.mxu0 0
  %3188 = vmatprep.subr.bf16.mxu0 0
  %3189 = vmatpush2.bf16.xpose.msra.mxu0 0
  %3190 = vmatprep.subr.bf16.mxu0 0
  %3191 = vmatpush2.bf16.xpose.msra.mxu0 0
  %3192 = vmatprep.subr.bf16.mxu0 0
  %3193 = vmatpush2.bf16.xpose.msra.mxu0 0
  %3194 = vmatprep.mubr.bf16.mxu0 0
  %3195 = vmatmul.mubr.bf16.gmra.mxu0 %v3157
  %v3196 = vpop.f32.mrf.mxu0
  %v3197 = vadd.f32 0.0, %v3196
  %v3198 = vpop.f32.mrf.mxu0
  %v3199 = vpop.f32.mrf.mxu0
  %v3200 = vpop.f32.mrf.mxu0
  %3201 = vdwg.mxu0
  %v3202 = vsel %vm2068, %v3197, -1e+30
  %v3203 = vsel %vm2552, %v3202, -inf
  %3204 = vmax.xlane.f32.xlu0 %v3203
  %v3205 = vpop.xlane.xlu0 %3204
  %v3206 = vsub.f32 %v3202, %v3205
  %v3207 = vmul.f32 %v3206, 1.442695
  %v3208 = vpow.pop %v3207
  %v3209 = vsel %vm2068, %v3208, 0.0
  %v3210 = vsel %vm2552, %v3209, 0.0
  %3211 = vadd.xlane.f32.xlu0 %v3210
  %v3212 = vpop.xlane.xlu0 %3211
  %v3213 = vmax.f32 %v3212, 1e-20
  %v3214 = vrcp.pop %v3213
  %v3215 = vmul.f32 %v3209, %v3214
  %v3216 = vpack.c.bf16 %v3215, %v3215
  %v3218 = vsel %vm2559, %v3216, 0
  %3220 = vmatprep.subr.bf16.mxu0 0
  %3221 = vmatpush1.bf16.msra.mxu0 0
  %3222 = vmatprep.subr.bf16.mxu0 0
  %3223 = vmatpush1.bf16.msra.mxu0 0
  %3224 = vmatprep.subr.bf16.mxu0 0
  %3225 = vmatpush1.bf16.msra.mxu0 0
  %3226 = vmatprep.subr.bf16.mxu0 0
  %3227 = vmatpush1.bf16.msra.mxu0 0
  %3228 = vmatprep.subr.bf16.mxu0 0
  %3229 = vmatpush1.bf16.msra.mxu0 0
  %3230 = vmatprep.subr.bf16.mxu0 0
  %3231 = vmatpush1.bf16.msra.mxu0 0
  %3232 = vmatprep.subr.bf16.mxu0 0
  %3233 = vmatpush1.bf16.msra.mxu0 0
  %3234 = vmatprep.subr.bf16.mxu0 0
  %3235 = vmatpush1.bf16.msra.mxu0 %v3152
  %3236 = vmatprep.subr.bf16.mxu0 0
  %3237 = vmatpush2.bf16.msra.mxu0 0
  %3238 = vmatprep.subr.bf16.mxu0 0
  %3239 = vmatpush2.bf16.msra.mxu0 0
  %3240 = vmatprep.subr.bf16.mxu0 0
  %3241 = vmatpush2.bf16.msra.mxu0 0
  %3242 = vmatprep.subr.bf16.mxu0 0
  %3243 = vmatpush2.bf16.msra.mxu0 0
  %3244 = vmatprep.subr.bf16.mxu0 0
  %3245 = vmatpush2.bf16.msra.mxu0 0
  %3246 = vmatprep.subr.bf16.mxu0 0
  %3247 = vmatpush2.bf16.msra.mxu0 0
  %3248 = vmatprep.subr.bf16.mxu0 0
  %3249 = vmatpush2.bf16.msra.mxu0 0
  %3250 = vmatprep.subr.bf16.mxu0 0
  %3251 = vmatpush2.bf16.msra.mxu0 0
  %3252 = vmatprep.mubr.bf16.mxu0 0
  %3253 = vmatmul.mubr.bf16.gmra.mxu0 %v3218
  %v3254 = vpop.f32.mrf.mxu0
  %v3255 = vadd.f32 0.0, %v3254
  %v3256 = vpop.f32.mrf.mxu0
  %v3257 = vpop.f32.mrf.mxu0
  %v3258 = vpop.f32.mrf.mxu0
  %3259 = vdwg.mxu0
  %v3260 = vpack.c.bf16 %v3255, %v3255
  %v3262 = vsel %vm603, %v3260, 0
  %3264 = vmatprep.subr.bf16.mxu0 0
  %3265 = vmatpush1.bf16.msra.mxu0 0
  %3266 = vmatprep.subr.bf16.mxu0 0
  %3267 = vmatpush1.bf16.msra.mxu0 0
  %3268 = vmatprep.subr.bf16.mxu0 0
  %3269 = vmatpush1.bf16.msra.mxu0 0
  %3270 = vmatprep.subr.bf16.mxu0 0
  %3271 = vmatpush1.bf16.msra.mxu0 0
  %3272 = vmatprep.subr.bf16.mxu0 0
  %3273 = vmatpush1.bf16.msra.mxu0 0
  %3274 = vmatprep.subr.bf16.mxu0 0
  %3275 = vmatpush1.bf16.msra.mxu0 0
  %3276 = vmatprep.subr.bf16.mxu0 0
  %3277 = vmatpush1.bf16.msra.mxu0 %v2969
  %3278 = vmatprep.subr.bf16.mxu0 0
  %3279 = vmatpush1.bf16.msra.mxu0 %v2968
  %3280 = vmatprep.subr.bf16.mxu0 0
  %3281 = vmatpush2.bf16.msra.mxu0 0
  %3282 = vmatprep.subr.bf16.mxu0 0
  %3283 = vmatpush2.bf16.msra.mxu0 0
  %3284 = vmatprep.subr.bf16.mxu0 0
  %3285 = vmatpush2.bf16.msra.mxu0 0
  %3286 = vmatprep.subr.bf16.mxu0 0
  %3287 = vmatpush2.bf16.msra.mxu0 0
  %3288 = vmatprep.subr.bf16.mxu0 0
  %3289 = vmatpush2.bf16.msra.mxu0 0
  %3290 = vmatprep.subr.bf16.mxu0 0
  %3291 = vmatpush2.bf16.msra.mxu0 0
  %3292 = vmatprep.subr.bf16.mxu0 0
  %3293 = vmatpush2.bf16.msra.mxu0 0
  %3294 = vmatprep.subr.bf16.mxu0 0
  %3295 = vmatpush2.bf16.msra.mxu0 0
  %3296 = vmatprep.mubr.bf16.mxu0 0
  %3297 = vmatmul.mubr.bf16.gmra.mxu0 %v3262
  %v3298 = vpop.f32.mrf.mxu0
  %v3299 = vadd.f32 0.0, %v3298
  %v3300 = vpop.f32.mrf.mxu0
  %v3301 = vpop.f32.mrf.mxu0
  %v3302 = vpop.f32.mrf.mxu0
  %3303 = vdwg.mxu0
  %3304 = vmatprep.subr.bf16.mxu0 0
  %3305 = vmatpush1.bf16.msra.mxu0 0
  %3306 = vmatprep.subr.bf16.mxu0 0
  %3307 = vmatpush1.bf16.msra.mxu0 0
  %3308 = vmatprep.subr.bf16.mxu0 0
  %3309 = vmatpush1.bf16.msra.mxu0 0
  %3310 = vmatprep.subr.bf16.mxu0 0
  %3311 = vmatpush1.bf16.msra.mxu0 0
  %3312 = vmatprep.subr.bf16.mxu0 0
  %3313 = vmatpush1.bf16.msra.mxu0 0
  %3314 = vmatprep.subr.bf16.mxu0 0
  %3315 = vmatpush1.bf16.msra.mxu0 0
  %3316 = vmatprep.subr.bf16.mxu0 0
  %3317 = vmatpush1.bf16.msra.mxu0 %v3024
  %3318 = vmatprep.subr.bf16.mxu0 0
  %3319 = vmatpush1.bf16.msra.mxu0 %v3023
  %3320 = vmatprep.subr.bf16.mxu0 0
  %3321 = vmatpush2.bf16.msra.mxu0 0
  %3322 = vmatprep.subr.bf16.mxu0 0
  %3323 = vmatpush2.bf16.msra.mxu0 0
  %3324 = vmatprep.subr.bf16.mxu0 0
  %3325 = vmatpush2.bf16.msra.mxu0 0
  %3326 = vmatprep.subr.bf16.mxu0 0
  %3327 = vmatpush2.bf16.msra.mxu0 0
  %3328 = vmatprep.subr.bf16.mxu0 0
  %3329 = vmatpush2.bf16.msra.mxu0 0
  %3330 = vmatprep.subr.bf16.mxu0 0
  %3331 = vmatpush2.bf16.msra.mxu0 0
  %3332 = vmatprep.subr.bf16.mxu0 0
  %3333 = vmatpush2.bf16.msra.mxu0 0
  %3334 = vmatprep.subr.bf16.mxu0 0
  %3335 = vmatpush2.bf16.msra.mxu0 0
  %3336 = vmatprep.mubr.bf16.mxu0 0
  %3337 = vmatmul.mubr.bf16.gmra.mxu0 %v3157
  %v3338 = vpop.f32.mrf.mxu0
  %v3339 = vadd.f32 %v3299, %v3338
  %v3340 = vpop.f32.mrf.mxu0
  %v3341 = vpop.f32.mrf.mxu0
  %v3342 = vpop.f32.mrf.mxu0
  %3343 = vdwg.mxu0
  %3344 = vmatprep.subr.bf16.mxu0 0
  %3345 = vmatpush1.bf16.msra.mxu0 0
  %3346 = vmatprep.subr.bf16.mxu0 0
  %3347 = vmatpush1.bf16.msra.mxu0 0
  %3348 = vmatprep.subr.bf16.mxu0 0
  %3349 = vmatpush1.bf16.msra.mxu0 0
  %3350 = vmatprep.subr.bf16.mxu0 0
  %3351 = vmatpush1.bf16.msra.mxu0 0
  %3352 = vmatprep.subr.bf16.mxu0 0
  %3353 = vmatpush1.bf16.msra.mxu0 0
  %3354 = vmatprep.subr.bf16.mxu0 0
  %3355 = vmatpush1.bf16.msra.mxu0 0
  %3356 = vmatprep.subr.bf16.mxu0 0
  %3357 = vmatpush1.bf16.msra.mxu0 %v3076
  %3358 = vmatprep.subr.bf16.mxu0 0
  %3359 = vmatpush1.bf16.msra.mxu0 %v3075
  %3360 = vmatprep.subr.bf16.mxu0 0
  %3361 = vmatpush2.bf16.msra.mxu0 0
  %3362 = vmatprep.subr.bf16.mxu0 0
  %3363 = vmatpush2.bf16.msra.mxu0 0
  %3364 = vmatprep.subr.bf16.mxu0 0
  %3365 = vmatpush2.bf16.msra.mxu0 0
  %3366 = vmatprep.subr.bf16.mxu0 0
  %3367 = vmatpush2.bf16.msra.mxu0 0
  %3368 = vmatprep.subr.bf16.mxu0 0
  %3369 = vmatpush2.bf16.msra.mxu0 0
  %3370 = vmatprep.subr.bf16.mxu0 0
  %3371 = vmatpush2.bf16.msra.mxu0 0
  %3372 = vmatprep.subr.bf16.mxu0 0
  %3373 = vmatpush2.bf16.msra.mxu0 0
  %3374 = vmatprep.subr.bf16.mxu0 0
  %3375 = vmatpush2.bf16.msra.mxu0 0
  %3376 = vmatprep.mubr.bf16.mxu0 0
  %3377 = vmatmul.mubr.bf16.gmra.mxu0 %v3157
  %v3378 = vpop.f32.mrf.mxu0
  %v3379 = vadd.f32 0.0, %v3378
  %v3380 = vpop.f32.mrf.mxu0
  %v3381 = vpop.f32.mrf.mxu0
  %v3382 = vpop.f32.mrf.mxu0
  %3383 = vdwg.mxu0
  %v3384 = vadd.f32 %v3339, %v3379
  %v3385 = vadd.f32 %v3384, %v3124
  %v3386 = vxor.u32 %v3385, 2147483648
  %v3387 = vmul.f32 %v3386, 1.442695
  %v3388 = vpow.pop %v3387
  %v3389 = vadd.f32 %v3388, 1.0
  %v3390 = vrcp.pop %v3389
  %v3391 = vmul.f32 1.0, %v3390
  %v3392 = vtanh.pop %v3385
  %v3393 = vmul.f32 %v3391, %v3144
  %3395 = vrot.lane.b32.xlu0 %v3392, 64
  %v3396 = vpop.permute.xlu0 %3395
  %v3398 = vmul.f32 %v3391, %v3396
  %3400 = vrot.lane.b32.xlu0 %v3398, 32
  %v3401 = vpop.permute.xlu0 %3400
  %v3403 = vadd.f32 %v3393, %v3401
  %v3404 = vtanh.pop %v3403
  %3406 = vrot.lane.b32.xlu0 %v3404, 64
  %v3407 = vpop.permute.xlu0 %3406
  %v3409 = vmul.f32 %v3391, %v3407
  %v3410 = vpack.c.bf16 %v3409, %v3409
  %3412 = vrot.lane.b32.xlu0 %v3410, 32
  %v3413 = vpop.permute.xlu0 %3412
  %v3415 = vsel %vm603, %v3413, 0
  %3417 = vmatprep.subr.bf16.mxu0 0
  %3418 = vmatpush1.bf16.xpose.msra.mxu0 0
  %3419 = vmatprep.subr.bf16.mxu0 0
  %3420 = vmatpush1.bf16.xpose.msra.mxu0 0
  %3421 = vmatprep.subr.bf16.mxu0 0
  %3422 = vmatpush1.bf16.xpose.msra.mxu0 0
  %3423 = vmatprep.subr.bf16.mxu0 0
  %3424 = vmatpush1.bf16.xpose.msra.mxu0 0
  %3425 = vmatprep.subr.bf16.mxu0 0
  %3426 = vmatpush1.bf16.xpose.msra.mxu0 0
  %3427 = vmatprep.subr.bf16.mxu0 0
  %3428 = vmatpush1.bf16.xpose.msra.mxu0 0
  %3429 = vmatprep.subr.bf16.mxu0 0
  %3430 = vmatpush1.bf16.xpose.msra.mxu0 0
  %3431 = vmatprep.subr.bf16.mxu0 0
  %3432 = vmatpush1.bf16.xpose.msra.mxu0 %v3160
  %3433 = vmatprep.subr.bf16.mxu0 0
  %3434 = vmatpush2.bf16.xpose.msra.mxu0 0
  %3435 = vmatprep.subr.bf16.mxu0 0
  %3436 = vmatpush2.bf16.xpose.msra.mxu0 0
  %3437 = vmatprep.subr.bf16.mxu0 0
  %3438 = vmatpush2.bf16.xpose.msra.mxu0 0
  %3439 = vmatprep.subr.bf16.mxu0 0
  %3440 = vmatpush2.bf16.xpose.msra.mxu0 0
  %3441 = vmatprep.subr.bf16.mxu0 0
  %3442 = vmatpush2.bf16.xpose.msra.mxu0 0
  %3443 = vmatprep.subr.bf16.mxu0 0
  %3444 = vmatpush2.bf16.xpose.msra.mxu0 0
  %3445 = vmatprep.subr.bf16.mxu0 0
  %3446 = vmatpush2.bf16.xpose.msra.mxu0 0
  %3447 = vmatprep.subr.bf16.mxu0 0
  %3448 = vmatpush2.bf16.xpose.msra.mxu0 0
  %3449 = vmatprep.mubr.bf16.mxu0 0
  %3450 = vmatmul.mubr.bf16.gmra.mxu0 %v3415
  %v3451 = vpop.f32.mrf.mxu0
  %v3452 = vadd.f32 0.0, %v3451
  %v3453 = vpop.f32.mrf.mxu0
  %v3454 = vpop.f32.mrf.mxu0
  %v3455 = vpop.f32.mrf.mxu0
  %3456 = vdwg.mxu0
  %v3457 = vsel %vm2068, %v3452, -1e+30
  %v3458 = vsel %vm2552, %v3457, -inf
  %3459 = vmax.xlane.f32.xlu0 %v3458
  %v3460 = vpop.xlane.xlu0 %3459
  %v3461 = vsub.f32 %v3457, %v3460
  %v3462 = vmul.f32 %v3461, 1.442695
  %v3463 = vpow.pop %v3462
  %v3464 = vsel %vm2068, %v3463, 0.0
  %v3465 = vsel %vm2552, %v3464, 0.0
  %3466 = vadd.xlane.f32.xlu0 %v3465
  %v3467 = vpop.xlane.xlu0 %3466
  %v3468 = vmax.f32 %v3467, 1e-20
  %v3469 = vrcp.pop %v3468
  %v3470 = vmul.f32 %v3464, %v3469
  %v3471 = vpack.c.bf16 %v3470, %v3470
  %v3473 = vsel %vm2559, %v3471, 0
  %3475 = vmatprep.subr.bf16.mxu0 0
  %3476 = vmatpush1.bf16.msra.mxu0 0
  %3477 = vmatprep.subr.bf16.mxu0 0
  %3478 = vmatpush1.bf16.msra.mxu0 0
  %3479 = vmatprep.subr.bf16.mxu0 0
  %3480 = vmatpush1.bf16.msra.mxu0 0
  %3481 = vmatprep.subr.bf16.mxu0 0
  %3482 = vmatpush1.bf16.msra.mxu0 0
  %3483 = vmatprep.subr.bf16.mxu0 0
  %3484 = vmatpush1.bf16.msra.mxu0 0
  %3485 = vmatprep.subr.bf16.mxu0 0
  %3486 = vmatpush1.bf16.msra.mxu0 0
  %3487 = vmatprep.subr.bf16.mxu0 0
  %3488 = vmatpush1.bf16.msra.mxu0 0
  %3489 = vmatprep.subr.bf16.mxu0 0
  %3490 = vmatpush1.bf16.msra.mxu0 %v3152
  %3491 = vmatprep.subr.bf16.mxu0 0
  %3492 = vmatpush2.bf16.msra.mxu0 0
  %3493 = vmatprep.subr.bf16.mxu0 0
  %3494 = vmatpush2.bf16.msra.mxu0 0
  %3495 = vmatprep.subr.bf16.mxu0 0
  %3496 = vmatpush2.bf16.msra.mxu0 0
  %3497 = vmatprep.subr.bf16.mxu0 0
  %3498 = vmatpush2.bf16.msra.mxu0 0
  %3499 = vmatprep.subr.bf16.mxu0 0
  %3500 = vmatpush2.bf16.msra.mxu0 0
  %3501 = vmatprep.subr.bf16.mxu0 0
  %3502 = vmatpush2.bf16.msra.mxu0 0
  %3503 = vmatprep.subr.bf16.mxu0 0
  %3504 = vmatpush2.bf16.msra.mxu0 0
  %3505 = vmatprep.subr.bf16.mxu0 0
  %3506 = vmatpush2.bf16.msra.mxu0 0
  %3507 = vmatprep.mubr.bf16.mxu0 0
  %3508 = vmatmul.mubr.bf16.gmra.mxu0 %v3473
  %v3509 = vpop.f32.mrf.mxu0
  %v3510 = vadd.f32 0.0, %v3509
  %v3511 = vpop.f32.mrf.mxu0
  %v3512 = vpop.f32.mrf.mxu0
  %v3513 = vpop.f32.mrf.mxu0
  %3514 = vdwg.mxu0
  %v3515 = vpack.c.bf16 %v3510, %v3510
  %v3517 = vsel %vm603, %v3515, 0
  %3519 = vmatprep.subr.bf16.mxu0 0
  %3520 = vmatpush1.bf16.msra.mxu0 0
  %3521 = vmatprep.subr.bf16.mxu0 0
  %3522 = vmatpush1.bf16.msra.mxu0 0
  %3523 = vmatprep.subr.bf16.mxu0 0
  %3524 = vmatpush1.bf16.msra.mxu0 0
  %3525 = vmatprep.subr.bf16.mxu0 0
  %3526 = vmatpush1.bf16.msra.mxu0 0
  %3527 = vmatprep.subr.bf16.mxu0 0
  %3528 = vmatpush1.bf16.msra.mxu0 0
  %3529 = vmatprep.subr.bf16.mxu0 0
  %3530 = vmatpush1.bf16.msra.mxu0 0
  %3531 = vmatprep.subr.bf16.mxu0 0
  %3532 = vmatpush1.bf16.msra.mxu0 %v2969
  %3533 = vmatprep.subr.bf16.mxu0 0
  %3534 = vmatpush1.bf16.msra.mxu0 %v2968
  %3535 = vmatprep.subr.bf16.mxu0 0
  %3536 = vmatpush2.bf16.msra.mxu0 0
  %3537 = vmatprep.subr.bf16.mxu0 0
  %3538 = vmatpush2.bf16.msra.mxu0 0
  %3539 = vmatprep.subr.bf16.mxu0 0
  %3540 = vmatpush2.bf16.msra.mxu0 0
  %3541 = vmatprep.subr.bf16.mxu0 0
  %3542 = vmatpush2.bf16.msra.mxu0 0
  %3543 = vmatprep.subr.bf16.mxu0 0
  %3544 = vmatpush2.bf16.msra.mxu0 0
  %3545 = vmatprep.subr.bf16.mxu0 0
  %3546 = vmatpush2.bf16.msra.mxu0 0
  %3547 = vmatprep.subr.bf16.mxu0 0
  %3548 = vmatpush2.bf16.msra.mxu0 0
  %3549 = vmatprep.subr.bf16.mxu0 0
  %3550 = vmatpush2.bf16.msra.mxu0 0
  %3551 = vmatprep.mubr.bf16.mxu0 0
  %3552 = vmatmul.mubr.bf16.gmra.mxu0 %v3517
  %v3553 = vpop.f32.mrf.mxu0
  %v3554 = vadd.f32 0.0, %v3553
  %v3555 = vpop.f32.mrf.mxu0
  %v3556 = vpop.f32.mrf.mxu0
  %v3557 = vpop.f32.mrf.mxu0
  %3558 = vdwg.mxu0
  %3559 = vmatprep.subr.bf16.mxu0 0
  %3560 = vmatpush1.bf16.msra.mxu0 0
  %3561 = vmatprep.subr.bf16.mxu0 0
  %3562 = vmatpush1.bf16.msra.mxu0 0
  %3563 = vmatprep.subr.bf16.mxu0 0
  %3564 = vmatpush1.bf16.msra.mxu0 0
  %3565 = vmatprep.subr.bf16.mxu0 0
  %3566 = vmatpush1.bf16.msra.mxu0 0
  %3567 = vmatprep.subr.bf16.mxu0 0
  %3568 = vmatpush1.bf16.msra.mxu0 0
  %3569 = vmatprep.subr.bf16.mxu0 0
  %3570 = vmatpush1.bf16.msra.mxu0 0
  %3571 = vmatprep.subr.bf16.mxu0 0
  %3572 = vmatpush1.bf16.msra.mxu0 %v3024
  %3573 = vmatprep.subr.bf16.mxu0 0
  %3574 = vmatpush1.bf16.msra.mxu0 %v3023
  %3575 = vmatprep.subr.bf16.mxu0 0
  %3576 = vmatpush2.bf16.msra.mxu0 0
  %3577 = vmatprep.subr.bf16.mxu0 0
  %3578 = vmatpush2.bf16.msra.mxu0 0
  %3579 = vmatprep.subr.bf16.mxu0 0
  %3580 = vmatpush2.bf16.msra.mxu0 0
  %3581 = vmatprep.subr.bf16.mxu0 0
  %3582 = vmatpush2.bf16.msra.mxu0 0
  %3583 = vmatprep.subr.bf16.mxu0 0
  %3584 = vmatpush2.bf16.msra.mxu0 0
  %3585 = vmatprep.subr.bf16.mxu0 0
  %3586 = vmatpush2.bf16.msra.mxu0 0
  %3587 = vmatprep.subr.bf16.mxu0 0
  %3588 = vmatpush2.bf16.msra.mxu0 0
  %3589 = vmatprep.subr.bf16.mxu0 0
  %3590 = vmatpush2.bf16.msra.mxu0 0
  %3591 = vmatprep.mubr.bf16.mxu0 0
  %3592 = vmatmul.mubr.bf16.gmra.mxu0 %v3415
  %v3593 = vpop.f32.mrf.mxu0
  %v3594 = vadd.f32 %v3554, %v3593
  %v3595 = vpop.f32.mrf.mxu0
  %v3596 = vpop.f32.mrf.mxu0
  %v3597 = vpop.f32.mrf.mxu0
  %3598 = vdwg.mxu0
  %3599 = vmatprep.subr.bf16.mxu0 0
  %3600 = vmatpush1.bf16.msra.mxu0 0
  %3601 = vmatprep.subr.bf16.mxu0 0
  %3602 = vmatpush1.bf16.msra.mxu0 0
  %3603 = vmatprep.subr.bf16.mxu0 0
  %3604 = vmatpush1.bf16.msra.mxu0 0
  %3605 = vmatprep.subr.bf16.mxu0 0
  %3606 = vmatpush1.bf16.msra.mxu0 0
  %3607 = vmatprep.subr.bf16.mxu0 0
  %3608 = vmatpush1.bf16.msra.mxu0 0
  %3609 = vmatprep.subr.bf16.mxu0 0
  %3610 = vmatpush1.bf16.msra.mxu0 0
  %3611 = vmatprep.subr.bf16.mxu0 0
  %3612 = vmatpush1.bf16.msra.mxu0 %v3076
  %3613 = vmatprep.subr.bf16.mxu0 0
  %3614 = vmatpush1.bf16.msra.mxu0 %v3075
  %3615 = vmatprep.subr.bf16.mxu0 0
  %3616 = vmatpush2.bf16.msra.mxu0 0
  %3617 = vmatprep.subr.bf16.mxu0 0
  %3618 = vmatpush2.bf16.msra.mxu0 0
  %3619 = vmatprep.subr.bf16.mxu0 0
  %3620 = vmatpush2.bf16.msra.mxu0 0
  %3621 = vmatprep.subr.bf16.mxu0 0
  %3622 = vmatpush2.bf16.msra.mxu0 0
  %3623 = vmatprep.subr.bf16.mxu0 0
  %3624 = vmatpush2.bf16.msra.mxu0 0
  %3625 = vmatprep.subr.bf16.mxu0 0
  %3626 = vmatpush2.bf16.msra.mxu0 0
  %3627 = vmatprep.subr.bf16.mxu0 0
  %3628 = vmatpush2.bf16.msra.mxu0 0
  %3629 = vmatprep.subr.bf16.mxu0 0
  %3630 = vmatpush2.bf16.msra.mxu0 0
  %3631 = vmatprep.mubr.bf16.mxu0 0
  %3632 = vmatmul.mubr.bf16.gmra.mxu0 %v3415
  %v3633 = vpop.f32.mrf.mxu0
  %v3634 = vadd.f32 0.0, %v3633
  %v3635 = vpop.f32.mrf.mxu0
  %v3636 = vpop.f32.mrf.mxu0
  %v3637 = vpop.f32.mrf.mxu0
  %3638 = vdwg.mxu0
  %v3639 = vadd.f32 %v3594, %v3634
  %v3640 = vadd.f32 %v3639, %v3124
  %v3641 = vxor.u32 %v3640, 2147483648
  %v3642 = vmul.f32 %v3641, 1.442695
  %v3643 = vpow.pop %v3642
  %v3644 = vadd.f32 %v3643, 1.0
  %v3645 = vrcp.pop %v3644
  %v3646 = vmul.f32 1.0, %v3645
  %v3647 = vtanh.pop %v3640
  %v3648 = vmul.f32 %v3646, %v3403
  %3650 = vrot.lane.b32.xlu0 %v3647, 64
  %v3651 = vpop.permute.xlu0 %3650
  %v3653 = vmul.f32 %v3646, %v3651
  %3655 = vrot.lane.b32.xlu0 %v3653, 32
  %v3656 = vpop.permute.xlu0 %3655
  %v3658 = vadd.f32 %v3648, %v3656
  %v3659 = vtanh.pop %v3658
  %3661 = vrot.lane.b32.xlu0 %v3659, 64
  %v3662 = vpop.permute.xlu0 %3661
  %v3664 = vmul.f32 %v3646, %v3662
  %v3665 = vpack.c.bf16 %v3664, %v3664
  %3667 = vrot.lane.b32.xlu0 %v3665, 32
  %v3668 = vpop.permute.xlu0 %3667
  %v3670 = vsel %vm603, %v3668, 0
  %3672 = vmatprep.subr.bf16.mxu0 0
  %3673 = vmatpush1.bf16.xpose.msra.mxu0 0
  %3674 = vmatprep.subr.bf16.mxu0 0
  %3675 = vmatpush1.bf16.xpose.msra.mxu0 0
  %3676 = vmatprep.subr.bf16.mxu0 0
  %3677 = vmatpush1.bf16.xpose.msra.mxu0 0
  %3678 = vmatprep.subr.bf16.mxu0 0
  %3679 = vmatpush1.bf16.xpose.msra.mxu0 0
  %3680 = vmatprep.subr.bf16.mxu0 0
  %3681 = vmatpush1.bf16.xpose.msra.mxu0 0
  %3682 = vmatprep.subr.bf16.mxu0 0
  %3683 = vmatpush1.bf16.xpose.msra.mxu0 0
  %3684 = vmatprep.subr.bf16.mxu0 0
  %3685 = vmatpush1.bf16.xpose.msra.mxu0 0
  %3686 = vmatprep.subr.bf16.mxu0 0
  %3687 = vmatpush1.bf16.xpose.msra.mxu0 %v3160
  %3688 = vmatprep.subr.bf16.mxu0 0
  %3689 = vmatpush2.bf16.xpose.msra.mxu0 0
  %3690 = vmatprep.subr.bf16.mxu0 0
  %3691 = vmatpush2.bf16.xpose.msra.mxu0 0
  %3692 = vmatprep.subr.bf16.mxu0 0
  %3693 = vmatpush2.bf16.xpose.msra.mxu0 0
  %3694 = vmatprep.subr.bf16.mxu0 0
  %3695 = vmatpush2.bf16.xpose.msra.mxu0 0
  %3696 = vmatprep.subr.bf16.mxu0 0
  %3697 = vmatpush2.bf16.xpose.msra.mxu0 0
  %3698 = vmatprep.subr.bf16.mxu0 0
  %3699 = vmatpush2.bf16.xpose.msra.mxu0 0
  %3700 = vmatprep.subr.bf16.mxu0 0
  %3701 = vmatpush2.bf16.xpose.msra.mxu0 0
  %3702 = vmatprep.subr.bf16.mxu0 0
  %3703 = vmatpush2.bf16.xpose.msra.mxu0 0
  %3704 = vmatprep.mubr.bf16.mxu0 0
  %3705 = vmatmul.mubr.bf16.gmra.mxu0 %v3670
  %v3706 = vpop.f32.mrf.mxu0
  %v3707 = vadd.f32 0.0, %v3706
  %v3708 = vpop.f32.mrf.mxu0
  %v3709 = vpop.f32.mrf.mxu0
  %v3710 = vpop.f32.mrf.mxu0
  %3711 = vdwg.mxu0
  %v3712 = vsel %vm2068, %v3707, -1e+30
  %v3713 = vsel %vm2552, %v3712, -inf
  %3714 = vmax.xlane.f32.xlu0 %v3713
  %v3715 = vpop.xlane.xlu0 %3714
  %v3716 = vsub.f32 %v3712, %v3715
  %v3717 = vmul.f32 %v3716, 1.442695
  %v3718 = vpow.pop %v3717
  %v3719 = vsel %vm2068, %v3718, 0.0
  %v3720 = vsel %vm2552, %v3719, 0.0
  %3721 = vadd.xlane.f32.xlu0 %v3720
  %v3722 = vpop.xlane.xlu0 %3721
  %v3723 = vmax.f32 %v3722, 1e-20
  %v3724 = vrcp.pop %v3723
  %v3725 = vmul.f32 %v3719, %v3724
  %v3726 = vpack.c.bf16 %v3725, %v3725
  %v3728 = vsel %vm2559, %v3726, 0
  %3730 = vmatprep.subr.bf16.mxu0 0
  %3731 = vmatpush1.bf16.msra.mxu0 0
  %3732 = vmatprep.subr.bf16.mxu0 0
  %3733 = vmatpush1.bf16.msra.mxu0 0
  %3734 = vmatprep.subr.bf16.mxu0 0
  %3735 = vmatpush1.bf16.msra.mxu0 0
  %3736 = vmatprep.subr.bf16.mxu0 0
  %3737 = vmatpush1.bf16.msra.mxu0 0
  %3738 = vmatprep.subr.bf16.mxu0 0
  %3739 = vmatpush1.bf16.msra.mxu0 0
  %3740 = vmatprep.subr.bf16.mxu0 0
  %3741 = vmatpush1.bf16.msra.mxu0 0
  %3742 = vmatprep.subr.bf16.mxu0 0
  %3743 = vmatpush1.bf16.msra.mxu0 0
  %3744 = vmatprep.subr.bf16.mxu0 0
  %3745 = vmatpush1.bf16.msra.mxu0 %v3152
  %3746 = vmatprep.subr.bf16.mxu0 0
  %3747 = vmatpush2.bf16.msra.mxu0 0
  %3748 = vmatprep.subr.bf16.mxu0 0
  %3749 = vmatpush2.bf16.msra.mxu0 0
  %3750 = vmatprep.subr.bf16.mxu0 0
  %3751 = vmatpush2.bf16.msra.mxu0 0
  %3752 = vmatprep.subr.bf16.mxu0 0
  %3753 = vmatpush2.bf16.msra.mxu0 0
  %3754 = vmatprep.subr.bf16.mxu0 0
  %3755 = vmatpush2.bf16.msra.mxu0 0
  %3756 = vmatprep.subr.bf16.mxu0 0
  %3757 = vmatpush2.bf16.msra.mxu0 0
  %3758 = vmatprep.subr.bf16.mxu0 0
  %3759 = vmatpush2.bf16.msra.mxu0 0
  %3760 = vmatprep.subr.bf16.mxu0 0
  %3761 = vmatpush2.bf16.msra.mxu0 0
  %3762 = vmatprep.mubr.bf16.mxu0 0
  %3763 = vmatmul.mubr.bf16.gmra.mxu0 %v3728
  %v3764 = vpop.f32.mrf.mxu0
  %v3765 = vadd.f32 0.0, %v3764
  %v3766 = vpop.f32.mrf.mxu0
  %v3767 = vpop.f32.mrf.mxu0
  %v3768 = vpop.f32.mrf.mxu0
  %3769 = vdwg.mxu0
  %v3770 = vld [vmem:[%s65] sm:$0xf]
  %v3771 = vld [vmem:[%s65 + $0x4] sm:$0xf]
  %v3772 = vld [vmem:[%s65 + $0x8] sm:$0xf]
  %v3773 = vld [vmem:[%s65 + $0xc] sm:$0xf]
  %v3774 = vld [vmem:[%s65 + $0x10] sm:$0xf]
  %v3775 = vld [vmem:[%s65 + $0x14] sm:$0xf]
  %v3776 = vld [vmem:[%s65 + $0x18] sm:$0xf]
  %v3777 = vld [vmem:[%s65 + $0x1c] sm:$0xf]
  %v3778 = vld [vmem:[%s67] sm:$0xf]
  %v3779 = vld [vmem:[%s67 + $0x4] sm:$0xf]
  %v3780 = vld [vmem:[%s67 + $0x8] sm:$0xf]
  %v3781 = vld [vmem:[%s67 + $0xc] sm:$0xf]
  %v3782 = vld [vmem:[%s69] sm:$0x1]
  %v3787 = vunpack.c.l.b16 %v3774
  %v3788 = vunpack.c.l.b16 %v3775
  %v3789 = vunpack.c.l.b16 %v3776
  %v3790 = vunpack.c.l.b16 %v3777
  %v3791 = vpack.c.b16 %v3788, %v3787
  %v3792 = vpack.c.b16 %v3790, %v3789
  %3795 = vmatprep.subr.bf16.mxu0 0
  %3796 = vmatpush1.bf16.msra.mxu0 0
  %3797 = vmatprep.subr.bf16.mxu0 0
  %3798 = vmatpush1.bf16.msra.mxu0 0
  %3799 = vmatprep.subr.bf16.mxu0 0
  %3800 = vmatpush1.bf16.msra.mxu0 0
  %3801 = vmatprep.subr.bf16.mxu0 0
  %3802 = vmatpush1.bf16.msra.mxu0 0
  %3803 = vmatprep.subr.bf16.mxu0 0
  %3804 = vmatpush1.bf16.msra.mxu0 0
  %3805 = vmatprep.subr.bf16.mxu0 0
  %3806 = vmatpush1.bf16.msra.mxu0 0
  %3807 = vmatprep.subr.bf16.mxu0 0
  %3808 = vmatpush1.bf16.msra.mxu0 %v3792
  %3809 = vmatprep.subr.bf16.mxu0 0
  %3810 = vmatpush1.bf16.msra.mxu0 %v3791
  %3811 = vmatprep.subr.bf16.mxu0 0
  %3812 = vmatpush2.bf16.msra.mxu0 0
  %3813 = vmatprep.subr.bf16.mxu0 0
  %3814 = vmatpush2.bf16.msra.mxu0 0
  %3815 = vmatprep.subr.bf16.mxu0 0
  %3816 = vmatpush2.bf16.msra.mxu0 0
  %3817 = vmatprep.subr.bf16.mxu0 0
  %3818 = vmatpush2.bf16.msra.mxu0 0
  %3819 = vmatprep.subr.bf16.mxu0 0
  %3820 = vmatpush2.bf16.msra.mxu0 0
  %3821 = vmatprep.subr.bf16.mxu0 0
  %3822 = vmatpush2.bf16.msra.mxu0 0
  %3823 = vmatprep.subr.bf16.mxu0 0
  %3824 = vmatpush2.bf16.msra.mxu0 0
  %3825 = vmatprep.subr.bf16.mxu0 0
  %3826 = vmatpush2.bf16.msra.mxu0 0
  %3827 = vmatprep.mubr.bf16.mxu0 0
  %3828 = vmatmul.mubr.bf16.gmra.mxu0 %v2973
  %v3829 = vpop.f32.mrf.mxu0
  %v3830 = vadd.f32 0.0, %v3829
  %v3831 = vpop.f32.mrf.mxu0
  %v3832 = vpop.f32.mrf.mxu0
  %v3833 = vpop.f32.mrf.mxu0
  %3834 = vdwg.mxu0
  %v3839 = vunpack.c.l.b16 %v3770
  %v3840 = vunpack.c.l.b16 %v3771
  %v3841 = vunpack.c.l.b16 %v3772
  %v3842 = vunpack.c.l.b16 %v3773
  %v3843 = vpack.c.b16 %v3840, %v3839
  %v3844 = vpack.c.b16 %v3842, %v3841
  %3847 = vmatprep.subr.bf16.mxu0 0
  %3848 = vmatpush1.bf16.msra.mxu0 0
  %3849 = vmatprep.subr.bf16.mxu0 0
  %3850 = vmatpush1.bf16.msra.mxu0 0
  %3851 = vmatprep.subr.bf16.mxu0 0
  %3852 = vmatpush1.bf16.msra.mxu0 0
  %3853 = vmatprep.subr.bf16.mxu0 0
  %3854 = vmatpush1.bf16.msra.mxu0 0
  %3855 = vmatprep.subr.bf16.mxu0 0
  %3856 = vmatpush1.bf16.msra.mxu0 0
  %3857 = vmatprep.subr.bf16.mxu0 0
  %3858 = vmatpush1.bf16.msra.mxu0 0
  %3859 = vmatprep.subr.bf16.mxu0 0
  %3860 = vmatpush1.bf16.msra.mxu0 %v3844
  %3861 = vmatprep.subr.bf16.mxu0 0
  %3862 = vmatpush1.bf16.msra.mxu0 %v3843
  %3863 = vmatprep.subr.bf16.mxu0 0
  %3864 = vmatpush2.bf16.msra.mxu0 0
  %3865 = vmatprep.subr.bf16.mxu0 0
  %3866 = vmatpush2.bf16.msra.mxu0 0
  %3867 = vmatprep.subr.bf16.mxu0 0
  %3868 = vmatpush2.bf16.msra.mxu0 0
  %3869 = vmatprep.subr.bf16.mxu0 0
  %3870 = vmatpush2.bf16.msra.mxu0 0
  %3871 = vmatprep.subr.bf16.mxu0 0
  %3872 = vmatpush2.bf16.msra.mxu0 0
  %3873 = vmatprep.subr.bf16.mxu0 0
  %3874 = vmatpush2.bf16.msra.mxu0 0
  %3875 = vmatprep.subr.bf16.mxu0 0
  %3876 = vmatpush2.bf16.msra.mxu0 0
  %3877 = vmatprep.subr.bf16.mxu0 0
  %3878 = vmatpush2.bf16.msra.mxu0 0
  %3879 = vmatprep.mubr.bf16.mxu0 0
  %3880 = vmatmul.mubr.bf16.gmra.mxu0 %v2973
  %v3881 = vpop.f32.mrf.mxu0
  %v3882 = vadd.f32 %v3830, %v3881
  %v3883 = vpop.f32.mrf.mxu0
  %v3884 = vpop.f32.mrf.mxu0
  %v3885 = vpop.f32.mrf.mxu0
  %3886 = vdwg.mxu0
  %v3891 = vunpack.c.l.b16 %v3778
  %v3892 = vunpack.c.l.b16 %v3779
  %v3893 = vunpack.c.l.b16 %v3780
  %v3894 = vunpack.c.l.b16 %v3781
  %v3895 = vpack.c.b16 %v3892, %v3891
  %v3896 = vpack.c.b16 %v3894, %v3893
  %3899 = vmatprep.subr.bf16.mxu0 0
  %3900 = vmatpush1.bf16.msra.mxu0 0
  %3901 = vmatprep.subr.bf16.mxu0 0
  %3902 = vmatpush1.bf16.msra.mxu0 0
  %3903 = vmatprep.subr.bf16.mxu0 0
  %3904 = vmatpush1.bf16.msra.mxu0 0
  %3905 = vmatprep.subr.bf16.mxu0 0
  %3906 = vmatpush1.bf16.msra.mxu0 0
  %3907 = vmatprep.subr.bf16.mxu0 0
  %3908 = vmatpush1.bf16.msra.mxu0 0
  %3909 = vmatprep.subr.bf16.mxu0 0
  %3910 = vmatpush1.bf16.msra.mxu0 0
  %3911 = vmatprep.subr.bf16.mxu0 0
  %3912 = vmatpush1.bf16.msra.mxu0 %v3896
  %3913 = vmatprep.subr.bf16.mxu0 0
  %3914 = vmatpush1.bf16.msra.mxu0 %v3895
  %3915 = vmatprep.subr.bf16.mxu0 0
  %3916 = vmatpush2.bf16.msra.mxu0 0
  %3917 = vmatprep.subr.bf16.mxu0 0
  %3918 = vmatpush2.bf16.msra.mxu0 0
  %3919 = vmatprep.subr.bf16.mxu0 0
  %3920 = vmatpush2.bf16.msra.mxu0 0
  %3921 = vmatprep.subr.bf16.mxu0 0
  %3922 = vmatpush2.bf16.msra.mxu0 0
  %3923 = vmatprep.subr.bf16.mxu0 0
  %3924 = vmatpush2.bf16.msra.mxu0 0
  %3925 = vmatprep.subr.bf16.mxu0 0
  %3926 = vmatpush2.bf16.msra.mxu0 0
  %3927 = vmatprep.subr.bf16.mxu0 0
  %3928 = vmatpush2.bf16.msra.mxu0 0
  %3929 = vmatprep.subr.bf16.mxu0 0
  %3930 = vmatpush2.bf16.msra.mxu0 0
  %3931 = vmatprep.mubr.bf16.mxu0 0
  %3932 = vmatmul.mubr.bf16.gmra.mxu0 %v2973
  %v3933 = vpop.f32.mrf.mxu0
  %v3934 = vadd.f32 0.0, %v3933
  %v3935 = vpop.f32.mrf.mxu0
  %v3936 = vpop.f32.mrf.mxu0
  %v3937 = vpop.f32.mrf.mxu0
  %3938 = vdwg.mxu0
  %v3939 = vadd.f32 %v3882, %v3934
  %v3941 = vlaneseq
  %v3942 = vshrl.u32 %v3941, 7
  %v3943 = vsub.s32 0, %v3942
  %v3944 = vrot.slane %v3782, %v3943
  %v3946 = vadd.f32 %v3939, %v3944
  %v3947 = vxor.u32 %v3946, 2147483648
  %v3948 = vmul.f32 %v3947, 1.442695
  %v3949 = vpow.pop %v3948
  %v3950 = vadd.f32 %v3949, 1.0
  %v3951 = vrcp.pop %v3950
  %v3952 = vmul.f32 1.0, %v3951
  %v3953 = vtanh.pop %v3946
  %v3954 = vmul.f32 %v3952, 0.0
  %3956 = vrot.lane.b32.xlu0 %v3953, 64
  %v3957 = vpop.permute.xlu0 %3956
  %v3959 = vmul.f32 %v3952, %v3957
  %3961 = vrot.lane.b32.xlu0 %v3959, 32
  %v3962 = vpop.permute.xlu0 %3961
  %v3964 = vadd.f32 %v3954, %v3962
  %v3965 = vtanh.pop %v3964
  %3967 = vrot.lane.b32.xlu0 %v3965, 64
  %v3968 = vpop.permute.xlu0 %3967
  %v3970 = vmul.f32 %v3952, %v3968
  %v3971 = vpack.c.bf16 %v3970, %v3970
  %v3972 = vpack.c.bf16 %v2933, %v2932
  %v3973 = vpack.c.bf16 %v2935, %v2934
  %v3974 = vpack.c.bf16 %v2937, %v2936
  %v3975 = vpack.c.bf16 %v2939, %v2938
  %v3976 = vpack.c.bf16 %v2941, %v2940
  %v3977 = vpack.c.bf16 %v2943, %v2942
  %v3978 = vpack.c.bf16 %v2945, %v2944
  %3980 = vrot.lane.b32.xlu0 %v3971, 32
  %v3981 = vpop.permute.xlu0 %3980
  %v3983 = vsel %vm603, %v3981, 0
  %v3986 = vsel %vm603, %v3972, 0
  %v3989 = vsel %vm603, %v3973, 0
  %v3992 = vsel %vm603, %v3974, 0
  %v3995 = vsel %vm603, %v3975, 0
  %v3998 = vsel %vm603, %v3976, 0
  %v4001 = vsel %vm603, %v3977, 0
  %v4004 = vsel %vm603, %v3978, 0
  %4006 = vmatprep.subr.bf16.mxu0 0
  %4007 = vmatpush1.bf16.xpose.msra.mxu0 0
  %4008 = vmatprep.subr.bf16.mxu0 0
  %4009 = vmatpush1.bf16.xpose.msra.mxu0 %v4004
  %4010 = vmatprep.subr.bf16.mxu0 0
  %4011 = vmatpush1.bf16.xpose.msra.mxu0 %v4001
  %4012 = vmatprep.subr.bf16.mxu0 0
  %4013 = vmatpush1.bf16.xpose.msra.mxu0 %v3998
  %4014 = vmatprep.subr.bf16.mxu0 0
  %4015 = vmatpush1.bf16.xpose.msra.mxu0 %v3995
  %4016 = vmatprep.subr.bf16.mxu0 0
  %4017 = vmatpush1.bf16.xpose.msra.mxu0 %v3992
  %4018 = vmatprep.subr.bf16.mxu0 0
  %4019 = vmatpush1.bf16.xpose.msra.mxu0 %v3989
  %4020 = vmatprep.subr.bf16.mxu0 0
  %4021 = vmatpush1.bf16.xpose.msra.mxu0 %v3986
  %4022 = vmatprep.subr.bf16.mxu0 0
  %4023 = vmatpush2.bf16.xpose.msra.mxu0 0
  %4024 = vmatprep.subr.bf16.mxu0 0
  %4025 = vmatpush2.bf16.xpose.msra.mxu0 0
  %4026 = vmatprep.subr.bf16.mxu0 0
  %4027 = vmatpush2.bf16.xpose.msra.mxu0 0
  %4028 = vmatprep.subr.bf16.mxu0 0
  %4029 = vmatpush2.bf16.xpose.msra.mxu0 0
  %4030 = vmatprep.subr.bf16.mxu0 0
  %4031 = vmatpush2.bf16.xpose.msra.mxu0 0
  %4032 = vmatprep.subr.bf16.mxu0 0
  %4033 = vmatpush2.bf16.xpose.msra.mxu0 0
  %4034 = vmatprep.subr.bf16.mxu0 0
  %4035 = vmatpush2.bf16.xpose.msra.mxu0 0
  %4036 = vmatprep.subr.bf16.mxu0 0
  %4037 = vmatpush2.bf16.xpose.msra.mxu0 0
  %4038 = vmatprep.mubr.bf16.mxu0 0
  %4039 = vmatmul.mubr.bf16.gmra.mxu0 %v3983
  %v4040 = vpop.f32.mrf.mxu0
  %v4041 = vadd.f32 0.0, %v4040
  %v4042 = vpop.f32.mrf.mxu0
  %v4043 = vpop.f32.mrf.mxu0
  %v4044 = vpop.f32.mrf.mxu0
  %4045 = vdwg.mxu0
  %v4046 = vsel %vm2078, %v4041, -1e+30
  %vm4047 = vcmask 910336
  %v4048 = vsel %vm4047, %v4046, -inf
  %4049 = vmax.xlane.f32.xlu0 %v4048
  %v4050 = vpop.xlane.xlu0 %4049
  %v4051 = vsub.f32 %v4046, %v4050
  %v4052 = vmul.f32 %v4051, 1.442695
  %v4053 = vpow.pop %v4052
  %v4054 = vsel %vm2078, %v4053, 0.0
  %v4055 = vsel %vm4047, %v4054, 0.0
  %4056 = vadd.xlane.f32.xlu0 %v4055
  %v4057 = vpop.xlane.xlu0 %4056
  %v4058 = vmax.f32 %v4057, 1e-20
  %v4059 = vrcp.pop %v4058
  %v4060 = vmul.f32 %v4054, %v4059
  %v4061 = vpack.c.bf16 %v4060, %v4060
  %vm4062 = vcmask 916480
  %v4064 = vsel %vm4062, %v4061, 0
  %4066 = vmatprep.subr.bf16.mxu0 0
  %4067 = vmatpush1.bf16.msra.mxu0 0
  %4068 = vmatprep.subr.bf16.mxu0 0
  %4069 = vmatpush1.bf16.msra.mxu0 %v3978
  %4070 = vmatprep.subr.bf16.mxu0 0
  %4071 = vmatpush1.bf16.msra.mxu0 %v3977
  %4072 = vmatprep.subr.bf16.mxu0 0
  %4073 = vmatpush1.bf16.msra.mxu0 %v3976
  %4074 = vmatprep.subr.bf16.mxu0 0
  %4075 = vmatpush1.bf16.msra.mxu0 %v3975
  %4076 = vmatprep.subr.bf16.mxu0 0
  %4077 = vmatpush1.bf16.msra.mxu0 %v3974
  %4078 = vmatprep.subr.bf16.mxu0 0
  %4079 = vmatpush1.bf16.msra.mxu0 %v3973
  %4080 = vmatprep.subr.bf16.mxu0 0
  %4081 = vmatpush1.bf16.msra.mxu0 %v3972
  %4082 = vmatprep.subr.bf16.mxu0 0
  %4083 = vmatpush2.bf16.msra.mxu0 0
  %4084 = vmatprep.subr.bf16.mxu0 0
  %4085 = vmatpush2.bf16.msra.mxu0 0
  %4086 = vmatprep.subr.bf16.mxu0 0
  %4087 = vmatpush2.bf16.msra.mxu0 0
  %4088 = vmatprep.subr.bf16.mxu0 0
  %4089 = vmatpush2.bf16.msra.mxu0 0
  %4090 = vmatprep.subr.bf16.mxu0 0
  %4091 = vmatpush2.bf16.msra.mxu0 0
  %4092 = vmatprep.subr.bf16.mxu0 0
  %4093 = vmatpush2.bf16.msra.mxu0 0
  %4094 = vmatprep.subr.bf16.mxu0 0
  %4095 = vmatpush2.bf16.msra.mxu0 0
  %4096 = vmatprep.subr.bf16.mxu0 0
  %4097 = vmatpush2.bf16.msra.mxu0 0
  %4098 = vmatprep.mubr.bf16.mxu0 0
  %4099 = vmatmul.mubr.bf16.gmra.mxu0 %v4064
  %v4100 = vpop.f32.mrf.mxu0
  %v4101 = vadd.f32 0.0, %v4100
  %v4102 = vpop.f32.mrf.mxu0
  %v4103 = vpop.f32.mrf.mxu0
  %v4104 = vpop.f32.mrf.mxu0
  %4105 = vdwg.mxu0
  %v4106 = vpack.c.bf16 %v4101, %v4101
  %v4108 = vsel %vm603, %v4106, 0
  %4110 = vmatprep.subr.bf16.mxu0 0
  %4111 = vmatpush1.bf16.msra.mxu0 0
  %4112 = vmatprep.subr.bf16.mxu0 0
  %4113 = vmatpush1.bf16.msra.mxu0 0
  %4114 = vmatprep.subr.bf16.mxu0 0
  %4115 = vmatpush1.bf16.msra.mxu0 0
  %4116 = vmatprep.subr.bf16.mxu0 0
  %4117 = vmatpush1.bf16.msra.mxu0 0
  %4118 = vmatprep.subr.bf16.mxu0 0
  %4119 = vmatpush1.bf16.msra.mxu0 0
  %4120 = vmatprep.subr.bf16.mxu0 0
  %4121 = vmatpush1.bf16.msra.mxu0 0
  %4122 = vmatprep.subr.bf16.mxu0 0
  %4123 = vmatpush1.bf16.msra.mxu0 %v3792
  %4124 = vmatprep.subr.bf16.mxu0 0
  %4125 = vmatpush1.bf16.msra.mxu0 %v3791
  %4126 = vmatprep.subr.bf16.mxu0 0
  %4127 = vmatpush2.bf16.msra.mxu0 0
  %4128 = vmatprep.subr.bf16.mxu0 0
  %4129 = vmatpush2.bf16.msra.mxu0 0
  %4130 = vmatprep.subr.bf16.mxu0 0
  %4131 = vmatpush2.bf16.msra.mxu0 0
  %4132 = vmatprep.subr.bf16.mxu0 0
  %4133 = vmatpush2.bf16.msra.mxu0 0
  %4134 = vmatprep.subr.bf16.mxu0 0
  %4135 = vmatpush2.bf16.msra.mxu0 0
  %4136 = vmatprep.subr.bf16.mxu0 0
  %4137 = vmatpush2.bf16.msra.mxu0 0
  %4138 = vmatprep.subr.bf16.mxu0 0
  %4139 = vmatpush2.bf16.msra.mxu0 0
  %4140 = vmatprep.subr.bf16.mxu0 0
  %4141 = vmatpush2.bf16.msra.mxu0 0
  %4142 = vmatprep.mubr.bf16.mxu0 0
  %4143 = vmatmul.mubr.bf16.gmra.mxu0 %v4108
  %v4144 = vpop.f32.mrf.mxu0
  %v4145 = vadd.f32 0.0, %v4144
  %v4146 = vpop.f32.mrf.mxu0
  %v4147 = vpop.f32.mrf.mxu0
  %v4148 = vpop.f32.mrf.mxu0
  %4149 = vdwg.mxu0
  %4150 = vmatprep.subr.bf16.mxu0 0
  %4151 = vmatpush1.bf16.msra.mxu0 0
  %4152 = vmatprep.subr.bf16.mxu0 0
  %4153 = vmatpush1.bf16.msra.mxu0 0
  %4154 = vmatprep.subr.bf16.mxu0 0
  %4155 = vmatpush1.bf16.msra.mxu0 0
  %4156 = vmatprep.subr.bf16.mxu0 0
  %4157 = vmatpush1.bf16.msra.mxu0 0
  %4158 = vmatprep.subr.bf16.mxu0 0
  %4159 = vmatpush1.bf16.msra.mxu0 0
  %4160 = vmatprep.subr.bf16.mxu0 0
  %4161 = vmatpush1.bf16.msra.mxu0 0
  %4162 = vmatprep.subr.bf16.mxu0 0
  %4163 = vmatpush1.bf16.msra.mxu0 %v3844
  %4164 = vmatprep.subr.bf16.mxu0 0
  %4165 = vmatpush1.bf16.msra.mxu0 %v3843
  %4166 = vmatprep.subr.bf16.mxu0 0
  %4167 = vmatpush2.bf16.msra.mxu0 0
  %4168 = vmatprep.subr.bf16.mxu0 0
  %4169 = vmatpush2.bf16.msra.mxu0 0
  %4170 = vmatprep.subr.bf16.mxu0 0
  %4171 = vmatpush2.bf16.msra.mxu0 0
  %4172 = vmatprep.subr.bf16.mxu0 0
  %4173 = vmatpush2.bf16.msra.mxu0 0
  %4174 = vmatprep.subr.bf16.mxu0 0
  %4175 = vmatpush2.bf16.msra.mxu0 0
  %4176 = vmatprep.subr.bf16.mxu0 0
  %4177 = vmatpush2.bf16.msra.mxu0 0
  %4178 = vmatprep.subr.bf16.mxu0 0
  %4179 = vmatpush2.bf16.msra.mxu0 0
  %4180 = vmatprep.subr.bf16.mxu0 0
  %4181 = vmatpush2.bf16.msra.mxu0 0
  %4182 = vmatprep.mubr.bf16.mxu0 0
  %4183 = vmatmul.mubr.bf16.gmra.mxu0 %v3983
  %v4184 = vpop.f32.mrf.mxu0
  %v4185 = vadd.f32 %v4145, %v4184
  %v4186 = vpop.f32.mrf.mxu0
  %v4187 = vpop.f32.mrf.mxu0
  %v4188 = vpop.f32.mrf.mxu0
  %4189 = vdwg.mxu0
  %4190 = vmatprep.subr.bf16.mxu0 0
  %4191 = vmatpush1.bf16.msra.mxu0 0
  %4192 = vmatprep.subr.bf16.mxu0 0
  %4193 = vmatpush1.bf16.msra.mxu0 0
  %4194 = vmatprep.subr.bf16.mxu0 0
  %4195 = vmatpush1.bf16.msra.mxu0 0
  %4196 = vmatprep.subr.bf16.mxu0 0
  %4197 = vmatpush1.bf16.msra.mxu0 0
  %4198 = vmatprep.subr.bf16.mxu0 0
  %4199 = vmatpush1.bf16.msra.mxu0 0
  %4200 = vmatprep.subr.bf16.mxu0 0
  %4201 = vmatpush1.bf16.msra.mxu0 0
  %4202 = vmatprep.subr.bf16.mxu0 0
  %4203 = vmatpush1.bf16.msra.mxu0 %v3896
  %4204 = vmatprep.subr.bf16.mxu0 0
  %4205 = vmatpush1.bf16.msra.mxu0 %v3895
  %4206 = vmatprep.subr.bf16.mxu0 0
  %4207 = vmatpush2.bf16.msra.mxu0 0
  %4208 = vmatprep.subr.bf16.mxu0 0
  %4209 = vmatpush2.bf16.msra.mxu0 0
  %4210 = vmatprep.subr.bf16.mxu0 0
  %4211 = vmatpush2.bf16.msra.mxu0 0
  %4212 = vmatprep.subr.bf16.mxu0 0
  %4213 = vmatpush2.bf16.msra.mxu0 0
  %4214 = vmatprep.subr.bf16.mxu0 0
  %4215 = vmatpush2.bf16.msra.mxu0 0
  %4216 = vmatprep.subr.bf16.mxu0 0
  %4217 = vmatpush2.bf16.msra.mxu0 0
  %4218 = vmatprep.subr.bf16.mxu0 0
  %4219 = vmatpush2.bf16.msra.mxu0 0
  %4220 = vmatprep.subr.bf16.mxu0 0
  %4221 = vmatpush2.bf16.msra.mxu0 0
  %4222 = vmatprep.mubr.bf16.mxu0 0
  %4223 = vmatmul.mubr.bf16.gmra.mxu0 %v3983
  %v4224 = vpop.f32.mrf.mxu0
  %v4225 = vadd.f32 0.0, %v4224
  %v4226 = vpop.f32.mrf.mxu0
  %v4227 = vpop.f32.mrf.mxu0
  %v4228 = vpop.f32.mrf.mxu0
  %4229 = vdwg.mxu0
  %v4230 = vadd.f32 %v4185, %v4225
  %v4231 = vadd.f32 %v4230, %v3944
  %v4232 = vxor.u32 %v4231, 2147483648
  %v4233 = vmul.f32 %v4232, 1.442695
  %v4234 = vpow.pop %v4233
  %v4235 = vadd.f32 %v4234, 1.0
  %v4236 = vrcp.pop %v4235
  %v4237 = vmul.f32 1.0, %v4236
  %v4238 = vtanh.pop %v4231
  %v4239 = vmul.f32 %v4237, %v3964
  %4241 = vrot.lane.b32.xlu0 %v4238, 64
  %v4242 = vpop.permute.xlu0 %4241
  %v4244 = vmul.f32 %v4237, %v4242
  %4246 = vrot.lane.b32.xlu0 %v4244, 32
  %v4247 = vpop.permute.xlu0 %4246
  %v4249 = vadd.f32 %v4239, %v4247
  %v4250 = vtanh.pop %v4249
  %4252 = vrot.lane.b32.xlu0 %v4250, 64
  %v4253 = vpop.permute.xlu0 %4252
  %v4255 = vmul.f32 %v4237, %v4253
  %v4256 = vpack.c.bf16 %v4255, %v4255
  %4258 = vrot.lane.b32.xlu0 %v4256, 32
  %v4259 = vpop.permute.xlu0 %4258
  %v4261 = vsel %vm603, %v4259, 0
  %4263 = vmatprep.subr.bf16.mxu0 0
  %4264 = vmatpush1.bf16.xpose.msra.mxu0 0
  %4265 = vmatprep.subr.bf16.mxu0 0
  %4266 = vmatpush1.bf16.xpose.msra.mxu0 %v4004
  %4267 = vmatprep.subr.bf16.mxu0 0
  %4268 = vmatpush1.bf16.xpose.msra.mxu0 %v4001
  %4269 = vmatprep.subr.bf16.mxu0 0
  %4270 = vmatpush1.bf16.xpose.msra.mxu0 %v3998
  %4271 = vmatprep.subr.bf16.mxu0 0
  %4272 = vmatpush1.bf16.xpose.msra.mxu0 %v3995
  %4273 = vmatprep.subr.bf16.mxu0 0
  %4274 = vmatpush1.bf16.xpose.msra.mxu0 %v3992
  %4275 = vmatprep.subr.bf16.mxu0 0
  %4276 = vmatpush1.bf16.xpose.msra.mxu0 %v3989
  %4277 = vmatprep.subr.bf16.mxu0 0
  %4278 = vmatpush1.bf16.xpose.msra.mxu0 %v3986
  %4279 = vmatprep.subr.bf16.mxu0 0
  %4280 = vmatpush2.bf16.xpose.msra.mxu0 0
  %4281 = vmatprep.subr.bf16.mxu0 0
  %4282 = vmatpush2.bf16.xpose.msra.mxu0 0
  %4283 = vmatprep.subr.bf16.mxu0 0
  %4284 = vmatpush2.bf16.xpose.msra.mxu0 0
  %4285 = vmatprep.subr.bf16.mxu0 0
  %4286 = vmatpush2.bf16.xpose.msra.mxu0 0
  %4287 = vmatprep.subr.bf16.mxu0 0
  %4288 = vmatpush2.bf16.xpose.msra.mxu0 0
  %4289 = vmatprep.subr.bf16.mxu0 0
  %4290 = vmatpush2.bf16.xpose.msra.mxu0 0
  %4291 = vmatprep.subr.bf16.mxu0 0
  %4292 = vmatpush2.bf16.xpose.msra.mxu0 0
  %4293 = vmatprep.subr.bf16.mxu0 0
  %4294 = vmatpush2.bf16.xpose.msra.mxu0 0
  %4295 = vmatprep.mubr.bf16.mxu0 0
  %4296 = vmatmul.mubr.bf16.gmra.mxu0 %v4261
  %v4297 = vpop.f32.mrf.mxu0
  %v4298 = vadd.f32 0.0, %v4297
  %v4299 = vpop.f32.mrf.mxu0
  %v4300 = vpop.f32.mrf.mxu0
  %v4301 = vpop.f32.mrf.mxu0
  %4302 = vdwg.mxu0
  %v4303 = vsel %vm2078, %v4298, -1e+30
  %v4304 = vsel %vm4047, %v4303, -inf
  %4305 = vmax.xlane.f32.xlu0 %v4304
  %v4306 = vpop.xlane.xlu0 %4305
  %v4307 = vsub.f32 %v4303, %v4306
  %v4308 = vmul.f32 %v4307, 1.442695
  %v4309 = vpow.pop %v4308
  %v4310 = vsel %vm2078, %v4309, 0.0
  %v4311 = vsel %vm4047, %v4310, 0.0
  %4312 = vadd.xlane.f32.xlu0 %v4311
  %v4313 = vpop.xlane.xlu0 %4312
  %v4314 = vmax.f32 %v4313, 1e-20
  %v4315 = vrcp.pop %v4314
  %v4316 = vmul.f32 %v4310, %v4315
  %v4317 = vpack.c.bf16 %v4316, %v4316
  %v4319 = vsel %vm4062, %v4317, 0
  %4321 = vmatprep.subr.bf16.mxu0 0
  %4322 = vmatpush1.bf16.msra.mxu0 0
  %4323 = vmatprep.subr.bf16.mxu0 0
  %4324 = vmatpush1.bf16.msra.mxu0 %v3978
  %4325 = vmatprep.subr.bf16.mxu0 0
  %4326 = vmatpush1.bf16.msra.mxu0 %v3977
  %4327 = vmatprep.subr.bf16.mxu0 0
  %4328 = vmatpush1.bf16.msra.mxu0 %v3976
  %4329 = vmatprep.subr.bf16.mxu0 0
  %4330 = vmatpush1.bf16.msra.mxu0 %v3975
  %4331 = vmatprep.subr.bf16.mxu0 0
  %4332 = vmatpush1.bf16.msra.mxu0 %v3974
  %4333 = vmatprep.subr.bf16.mxu0 0
  %4334 = vmatpush1.bf16.msra.mxu0 %v3973
  %4335 = vmatprep.subr.bf16.mxu0 0
  %4336 = vmatpush1.bf16.msra.mxu0 %v3972
  %4337 = vmatprep.subr.bf16.mxu0 0
  %4338 = vmatpush2.bf16.msra.mxu0 0
  %4339 = vmatprep.subr.bf16.mxu0 0
  %4340 = vmatpush2.bf16.msra.mxu0 0
  %4341 = vmatprep.subr.bf16.mxu0 0
  %4342 = vmatpush2.bf16.msra.mxu0 0
  %4343 = vmatprep.subr.bf16.mxu0 0
  %4344 = vmatpush2.bf16.msra.mxu0 0
  %4345 = vmatprep.subr.bf16.mxu0 0
  %4346 = vmatpush2.bf16.msra.mxu0 0
  %4347 = vmatprep.subr.bf16.mxu0 0
  %4348 = vmatpush2.bf16.msra.mxu0 0
  %4349 = vmatprep.subr.bf16.mxu0 0
  %4350 = vmatpush2.bf16.msra.mxu0 0
  %4351 = vmatprep.subr.bf16.mxu0 0
  %4352 = vmatpush2.bf16.msra.mxu0 0
  %4353 = vmatprep.mubr.bf16.mxu0 0
  %4354 = vmatmul.mubr.bf16.gmra.mxu0 %v4319
  %v4355 = vpop.f32.mrf.mxu0
  %v4356 = vadd.f32 0.0, %v4355
  %v4357 = vpop.f32.mrf.mxu0
  %v4358 = vpop.f32.mrf.mxu0
  %v4359 = vpop.f32.mrf.mxu0
  %4360 = vdwg.mxu0
  %v4361 = vpack.c.bf16 %v4356, %v4356
  %v4363 = vsel %vm603, %v4361, 0
  %4365 = vmatprep.subr.bf16.mxu0 0
  %4366 = vmatpush1.bf16.msra.mxu0 0
  %4367 = vmatprep.subr.bf16.mxu0 0
  %4368 = vmatpush1.bf16.msra.mxu0 0
  %4369 = vmatprep.subr.bf16.mxu0 0
  %4370 = vmatpush1.bf16.msra.mxu0 0
  %4371 = vmatprep.subr.bf16.mxu0 0
  %4372 = vmatpush1.bf16.msra.mxu0 0
  %4373 = vmatprep.subr.bf16.mxu0 0
  %4374 = vmatpush1.bf16.msra.mxu0 0
  %4375 = vmatprep.subr.bf16.mxu0 0
  %4376 = vmatpush1.bf16.msra.mxu0 0
  %4377 = vmatprep.subr.bf16.mxu0 0
  %4378 = vmatpush1.bf16.msra.mxu0 %v3792
  %4379 = vmatprep.subr.bf16.mxu0 0
  %4380 = vmatpush1.bf16.msra.mxu0 %v3791
  %4381 = vmatprep.subr.bf16.mxu0 0
  %4382 = vmatpush2.bf16.msra.mxu0 0
  %4383 = vmatprep.subr.bf16.mxu0 0
  %4384 = vmatpush2.bf16.msra.mxu0 0
  %4385 = vmatprep.subr.bf16.mxu0 0
  %4386 = vmatpush2.bf16.msra.mxu0 0
  %4387 = vmatprep.subr.bf16.mxu0 0
  %4388 = vmatpush2.bf16.msra.mxu0 0
  %4389 = vmatprep.subr.bf16.mxu0 0
  %4390 = vmatpush2.bf16.msra.mxu0 0
  %4391 = vmatprep.subr.bf16.mxu0 0
  %4392 = vmatpush2.bf16.msra.mxu0 0
  %4393 = vmatprep.subr.bf16.mxu0 0
  %4394 = vmatpush2.bf16.msra.mxu0 0
  %4395 = vmatprep.subr.bf16.mxu0 0
  %4396 = vmatpush2.bf16.msra.mxu0 0
  %4397 = vmatprep.mubr.bf16.mxu0 0
  %4398 = vmatmul.mubr.bf16.gmra.mxu0 %v4363
  %v4399 = vpop.f32.mrf.mxu0
  %v4400 = vadd.f32 0.0, %v4399
  %v4401 = vpop.f32.mrf.mxu0
  %v4402 = vpop.f32.mrf.mxu0
  %v4403 = vpop.f32.mrf.mxu0
  %4404 = vdwg.mxu0
  %4405 = vmatprep.subr.bf16.mxu0 0
  %4406 = vmatpush1.bf16.msra.mxu0 0
  %4407 = vmatprep.subr.bf16.mxu0 0
  %4408 = vmatpush1.bf16.msra.mxu0 0
  %4409 = vmatprep.subr.bf16.mxu0 0
  %4410 = vmatpush1.bf16.msra.mxu0 0
  %4411 = vmatprep.subr.bf16.mxu0 0
  %4412 = vmatpush1.bf16.msra.mxu0 0
  %4413 = vmatprep.subr.bf16.mxu0 0
  %4414 = vmatpush1.bf16.msra.mxu0 0
  %4415 = vmatprep.subr.bf16.mxu0 0
  %4416 = vmatpush1.bf16.msra.mxu0 0
  %4417 = vmatprep.subr.bf16.mxu0 0
  %4418 = vmatpush1.bf16.msra.mxu0 %v3844
  %4419 = vmatprep.subr.bf16.mxu0 0
  %4420 = vmatpush1.bf16.msra.mxu0 %v3843
  %4421 = vmatprep.subr.bf16.mxu0 0
  %4422 = vmatpush2.bf16.msra.mxu0 0
  %4423 = vmatprep.subr.bf16.mxu0 0
  %4424 = vmatpush2.bf16.msra.mxu0 0
  %4425 = vmatprep.subr.bf16.mxu0 0
  %4426 = vmatpush2.bf16.msra.mxu0 0
  %4427 = vmatprep.subr.bf16.mxu0 0
  %4428 = vmatpush2.bf16.msra.mxu0 0
  %4429 = vmatprep.subr.bf16.mxu0 0
  %4430 = vmatpush2.bf16.msra.mxu0 0
  %4431 = vmatprep.subr.bf16.mxu0 0
  %4432 = vmatpush2.bf16.msra.mxu0 0
  %4433 = vmatprep.subr.bf16.mxu0 0
  %4434 = vmatpush2.bf16.msra.mxu0 0
  %4435 = vmatprep.subr.bf16.mxu0 0
  %4436 = vmatpush2.bf16.msra.mxu0 0
  %4437 = vmatprep.mubr.bf16.mxu0 0
  %4438 = vmatmul.mubr.bf16.gmra.mxu0 %v4261
  %v4439 = vpop.f32.mrf.mxu0
  %v4440 = vadd.f32 %v4400, %v4439
  %v4441 = vpop.f32.mrf.mxu0
  %v4442 = vpop.f32.mrf.mxu0
  %v4443 = vpop.f32.mrf.mxu0
  %4444 = vdwg.mxu0
  %4445 = vmatprep.subr.bf16.mxu0 0
  %4446 = vmatpush1.bf16.msra.mxu0 0
  %4447 = vmatprep.subr.bf16.mxu0 0
  %4448 = vmatpush1.bf16.msra.mxu0 0
  %4449 = vmatprep.subr.bf16.mxu0 0
  %4450 = vmatpush1.bf16.msra.mxu0 0
  %4451 = vmatprep.subr.bf16.mxu0 0
  %4452 = vmatpush1.bf16.msra.mxu0 0
  %4453 = vmatprep.subr.bf16.mxu0 0
  %4454 = vmatpush1.bf16.msra.mxu0 0
  %4455 = vmatprep.subr.bf16.mxu0 0
  %4456 = vmatpush1.bf16.msra.mxu0 0
  %4457 = vmatprep.subr.bf16.mxu0 0
  %4458 = vmatpush1.bf16.msra.mxu0 %v3896
  %4459 = vmatprep.subr.bf16.mxu0 0
  %4460 = vmatpush1.bf16.msra.mxu0 %v3895
  %4461 = vmatprep.subr.bf16.mxu0 0
  %4462 = vmatpush2.bf16.msra.mxu0 0
  %4463 = vmatprep.subr.bf16.mxu0 0
  %4464 = vmatpush2.bf16.msra.mxu0 0
  %4465 = vmatprep.subr.bf16.mxu0 0
  %4466 = vmatpush2.bf16.msra.mxu0 0
  %4467 = vmatprep.subr.bf16.mxu0 0
  %4468 = vmatpush2.bf16.msra.mxu0 0
  %4469 = vmatprep.subr.bf16.mxu0 0
  %4470 = vmatpush2.bf16.msra.mxu0 0
  %4471 = vmatprep.subr.bf16.mxu0 0
  %4472 = vmatpush2.bf16.msra.mxu0 0
  %4473 = vmatprep.subr.bf16.mxu0 0
  %4474 = vmatpush2.bf16.msra.mxu0 0
  %4475 = vmatprep.subr.bf16.mxu0 0
  %4476 = vmatpush2.bf16.msra.mxu0 0
  %4477 = vmatprep.mubr.bf16.mxu0 0
  %4478 = vmatmul.mubr.bf16.gmra.mxu0 %v4261
  %v4479 = vpop.f32.mrf.mxu0
  %v4480 = vadd.f32 0.0, %v4479
  %v4481 = vpop.f32.mrf.mxu0
  %v4482 = vpop.f32.mrf.mxu0
  %v4483 = vpop.f32.mrf.mxu0
  %4484 = vdwg.mxu0
  %v4485 = vadd.f32 %v4440, %v4480
  %v4486 = vadd.f32 %v4485, %v3944
  %v4487 = vxor.u32 %v4486, 2147483648
  %v4488 = vmul.f32 %v4487, 1.442695
  %v4489 = vpow.pop %v4488
  %v4490 = vadd.f32 %v4489, 1.0
  %v4491 = vrcp.pop %v4490
  %v4492 = vmul.f32 1.0, %v4491
  %v4493 = vtanh.pop %v4486
  %v4494 = vmul.f32 %v4492, %v4249
  %4496 = vrot.lane.b32.xlu0 %v4493, 64
  %v4497 = vpop.permute.xlu0 %4496
  %v4499 = vmul.f32 %v4492, %v4497
  %4501 = vrot.lane.b32.xlu0 %v4499, 32
  %v4502 = vpop.permute.xlu0 %4501
  %v4504 = vadd.f32 %v4494, %v4502
  %v4505 = vtanh.pop %v4504
  %4507 = vrot.lane.b32.xlu0 %v4505, 64
  %v4508 = vpop.permute.xlu0 %4507
  %v4510 = vmul.f32 %v4492, %v4508
  %v4511 = vpack.c.bf16 %v4510, %v4510
  %4513 = vrot.lane.b32.xlu0 %v4511, 32
  %v4514 = vpop.permute.xlu0 %4513
  %v4516 = vsel %vm603, %v4514, 0
  %4518 = vmatprep.subr.bf16.mxu0 0
  %4519 = vmatpush1.bf16.xpose.msra.mxu0 0
  %4520 = vmatprep.subr.bf16.mxu0 0
  %4521 = vmatpush1.bf16.xpose.msra.mxu0 %v4004
  %4522 = vmatprep.subr.bf16.mxu0 0
  %4523 = vmatpush1.bf16.xpose.msra.mxu0 %v4001
  %4524 = vmatprep.subr.bf16.mxu0 0
  %4525 = vmatpush1.bf16.xpose.msra.mxu0 %v3998
  %4526 = vmatprep.subr.bf16.mxu0 0
  %4527 = vmatpush1.bf16.xpose.msra.mxu0 %v3995
  %4528 = vmatprep.subr.bf16.mxu0 0
  %4529 = vmatpush1.bf16.xpose.msra.mxu0 %v3992
  %4530 = vmatprep.subr.bf16.mxu0 0
  %4531 = vmatpush1.bf16.xpose.msra.mxu0 %v3989
  %4532 = vmatprep.subr.bf16.mxu0 0
  %4533 = vmatpush1.bf16.xpose.msra.mxu0 %v3986
  %4534 = vmatprep.subr.bf16.mxu0 0
  %4535 = vmatpush2.bf16.xpose.msra.mxu0 0
  %4536 = vmatprep.subr.bf16.mxu0 0
  %4537 = vmatpush2.bf16.xpose.msra.mxu0 0
  %4538 = vmatprep.subr.bf16.mxu0 0
  %4539 = vmatpush2.bf16.xpose.msra.mxu0 0
  %4540 = vmatprep.subr.bf16.mxu0 0
  %4541 = vmatpush2.bf16.xpose.msra.mxu0 0
  %4542 = vmatprep.subr.bf16.mxu0 0
  %4543 = vmatpush2.bf16.xpose.msra.mxu0 0
  %4544 = vmatprep.subr.bf16.mxu0 0
  %4545 = vmatpush2.bf16.xpose.msra.mxu0 0
  %4546 = vmatprep.subr.bf16.mxu0 0
  %4547 = vmatpush2.bf16.xpose.msra.mxu0 0
  %4548 = vmatprep.subr.bf16.mxu0 0
  %4549 = vmatpush2.bf16.xpose.msra.mxu0 0
  %4550 = vmatprep.mubr.bf16.mxu0 0
  %4551 = vmatmul.mubr.bf16.gmra.mxu0 %v4516
  %v4552 = vpop.f32.mrf.mxu0
  %v4553 = vadd.f32 0.0, %v4552
  %v4554 = vpop.f32.mrf.mxu0
  %v4555 = vpop.f32.mrf.mxu0
  %v4556 = vpop.f32.mrf.mxu0
  %4557 = vdwg.mxu0
  %v4558 = vsel %vm2078, %v4553, -1e+30
  %v4559 = vsel %vm4047, %v4558, -inf
  %4560 = vmax.xlane.f32.xlu0 %v4559
  %v4561 = vpop.xlane.xlu0 %4560
  %v4562 = vsub.f32 %v4558, %v4561
  %v4563 = vmul.f32 %v4562, 1.442695
  %v4564 = vpow.pop %v4563
  %v4565 = vsel %vm2078, %v4564, 0.0
  %v4566 = vsel %vm4047, %v4565, 0.0
  %4567 = vadd.xlane.f32.xlu0 %v4566
  %v4568 = vpop.xlane.xlu0 %4567
  %v4569 = vmax.f32 %v4568, 1e-20
  %v4570 = vrcp.pop %v4569
  %v4571 = vmul.f32 %v4565, %v4570
  %v4572 = vpack.c.bf16 %v4571, %v4571
  %v4574 = vsel %vm4062, %v4572, 0
  %4576 = vmatprep.subr.bf16.mxu0 0
  %4577 = vmatpush1.bf16.msra.mxu0 0
  %4578 = vmatprep.subr.bf16.mxu0 0
  %4579 = vmatpush1.bf16.msra.mxu0 %v3978
  %4580 = vmatprep.subr.bf16.mxu0 0
  %4581 = vmatpush1.bf16.msra.mxu0 %v3977
  %4582 = vmatprep.subr.bf16.mxu0 0
  %4583 = vmatpush1.bf16.msra.mxu0 %v3976
  %4584 = vmatprep.subr.bf16.mxu0 0
  %4585 = vmatpush1.bf16.msra.mxu0 %v3975
  %4586 = vmatprep.subr.bf16.mxu0 0
  %4587 = vmatpush1.bf16.msra.mxu0 %v3974
  %4588 = vmatprep.subr.bf16.mxu0 0
  %4589 = vmatpush1.bf16.msra.mxu0 %v3973
  %4590 = vmatprep.subr.bf16.mxu0 0
  %4591 = vmatpush1.bf16.msra.mxu0 %v3972
  %4592 = vmatprep.subr.bf16.mxu0 0
  %4593 = vmatpush2.bf16.msra.mxu0 0
  %4594 = vmatprep.subr.bf16.mxu0 0
  %4595 = vmatpush2.bf16.msra.mxu0 0
  %4596 = vmatprep.subr.bf16.mxu0 0
  %4597 = vmatpush2.bf16.msra.mxu0 0
  %4598 = vmatprep.subr.bf16.mxu0 0
  %4599 = vmatpush2.bf16.msra.mxu0 0
  %4600 = vmatprep.subr.bf16.mxu0 0
  %4601 = vmatpush2.bf16.msra.mxu0 0
  %4602 = vmatprep.subr.bf16.mxu0 0
  %4603 = vmatpush2.bf16.msra.mxu0 0
  %4604 = vmatprep.subr.bf16.mxu0 0
  %4605 = vmatpush2.bf16.msra.mxu0 0
  %4606 = vmatprep.subr.bf16.mxu0 0
  %4607 = vmatpush2.bf16.msra.mxu0 0
  %4608 = vmatprep.mubr.bf16.mxu0 0
  %4609 = vmatmul.mubr.bf16.gmra.mxu0 %v4574
  %v4610 = vpop.f32.mrf.mxu0
  %v4611 = vadd.f32 0.0, %v4610
  %v4612 = vpop.f32.mrf.mxu0
  %v4613 = vpop.f32.mrf.mxu0
  %v4614 = vpop.f32.mrf.mxu0
  %4615 = vdwg.mxu0
  %v4616 = vld [vmem:[%s71] sm:$0xf]
  %v4617 = vld [vmem:[%s71 + $0x4] sm:$0xf]
  %v4618 = vld [vmem:[%s71 + $0x8] sm:$0xf]
  %v4619 = vld [vmem:[%s71 + $0xc] sm:$0xf]
  %v4620 = vld [vmem:[%s71 + $0x10] sm:$0xf]
  %v4621 = vld [vmem:[%s71 + $0x14] sm:$0xf]
  %v4622 = vld [vmem:[%s71 + $0x18] sm:$0xf]
  %v4623 = vld [vmem:[%s71 + $0x1c] sm:$0xf]
  %v4624 = vld [vmem:[%s71 + $0x20] sm:$0xf]
  %v4625 = vld [vmem:[%s71 + $0x24] sm:$0xf]
  %v4626 = vld [vmem:[%s71 + $0x28] sm:$0xf]
  %v4627 = vld [vmem:[%s71 + $0x2c] sm:$0xf]
  %v4628 = vld [vmem:[%s71 + $0x30] sm:$0xf]
  %v4629 = vld [vmem:[%s71 + $0x34] sm:$0xf]
  %v4630 = vld [vmem:[%s71 + $0x38] sm:$0xf]
  %v4631 = vld [vmem:[%s71 + $0x3c] sm:$0xf]
  %v4632 = vld [vmem:[%s71 + $0x40] sm:$0xf]
  %v4633 = vld [vmem:[%s71 + $0x44] sm:$0xf]
  %v4634 = vld [vmem:[%s71 + $0x48] sm:$0xf]
  %v4635 = vld [vmem:[%s71 + $0x4c] sm:$0xf]
  %v4636 = vpack.c.bf16 %v3765, %v3765
  %v4641 = vunpack.c.l.b16 %v4620
  %v4642 = vunpack.c.l.b16 %v4621
  %v4643 = vunpack.c.l.b16 %v4622
  %v4644 = vunpack.c.l.b16 %v4623
  %v4645 = vpack.c.b16 %v4642, %v4641
  %v4646 = vpack.c.b16 %v4644, %v4643
  %v4650 = vsel %vm603, %v4636, 0
  %4652 = vmatprep.subr.bf16.mxu0 0
  %4653 = vmatpush1.bf16.msra.mxu0 0
  %4654 = vmatprep.subr.bf16.mxu0 0
  %4655 = vmatpush1.bf16.msra.mxu0 0
  %4656 = vmatprep.subr.bf16.mxu0 0
  %4657 = vmatpush1.bf16.msra.mxu0 0
  %4658 = vmatprep.subr.bf16.mxu0 0
  %4659 = vmatpush1.bf16.msra.mxu0 0
  %4660 = vmatprep.subr.bf16.mxu0 0
  %4661 = vmatpush1.bf16.msra.mxu0 0
  %4662 = vmatprep.subr.bf16.mxu0 0
  %4663 = vmatpush1.bf16.msra.mxu0 0
  %4664 = vmatprep.subr.bf16.mxu0 0
  %4665 = vmatpush1.bf16.msra.mxu0 %v4646
  %4666 = vmatprep.subr.bf16.mxu0 0
  %4667 = vmatpush1.bf16.msra.mxu0 %v4645
  %4668 = vmatprep.subr.bf16.mxu0 0
  %4669 = vmatpush2.bf16.msra.mxu0 0
  %4670 = vmatprep.subr.bf16.mxu0 0
  %4671 = vmatpush2.bf16.msra.mxu0 0
  %4672 = vmatprep.subr.bf16.mxu0 0
  %4673 = vmatpush2.bf16.msra.mxu0 0
  %4674 = vmatprep.subr.bf16.mxu0 0
  %4675 = vmatpush2.bf16.msra.mxu0 0
  %4676 = vmatprep.subr.bf16.mxu0 0
  %4677 = vmatpush2.bf16.msra.mxu0 0
  %4678 = vmatprep.subr.bf16.mxu0 0
  %4679 = vmatpush2.bf16.msra.mxu0 0
  %4680 = vmatprep.subr.bf16.mxu0 0
  %4681 = vmatpush2.bf16.msra.mxu0 0
  %4682 = vmatprep.subr.bf16.mxu0 0
  %4683 = vmatpush2.bf16.msra.mxu0 0
  %4684 = vmatprep.mubr.bf16.mxu0 0
  %4685 = vmatmul.mubr.bf16.gmra.mxu0 %v4650
  %v4686 = vpop.f32.mrf.mxu0
  %v4687 = vadd.f32 0.0, %v4686
  %v4688 = vpop.f32.mrf.mxu0
  %v4689 = vpop.f32.mrf.mxu0
  %v4690 = vpop.f32.mrf.mxu0
  %4691 = vdwg.mxu0
  %v4696 = vunpack.c.l.b16 %v4616
  %v4697 = vunpack.c.l.b16 %v4617
  %v4698 = vunpack.c.l.b16 %v4618
  %v4699 = vunpack.c.l.b16 %v4619
  %v4700 = vpack.c.b16 %v4697, %v4696
  %v4701 = vpack.c.b16 %v4699, %v4698
  %4704 = vmatprep.subr.bf16.mxu0 0
  %4705 = vmatpush1.bf16.msra.mxu0 0
  %4706 = vmatprep.subr.bf16.mxu0 0
  %4707 = vmatpush1.bf16.msra.mxu0 0
  %4708 = vmatprep.subr.bf16.mxu0 0
  %4709 = vmatpush1.bf16.msra.mxu0 0
  %4710 = vmatprep.subr.bf16.mxu0 0
  %4711 = vmatpush1.bf16.msra.mxu0 0
  %4712 = vmatprep.subr.bf16.mxu0 0
  %4713 = vmatpush1.bf16.msra.mxu0 0
  %4714 = vmatprep.subr.bf16.mxu0 0
  %4715 = vmatpush1.bf16.msra.mxu0 0
  %4716 = vmatprep.subr.bf16.mxu0 0
  %4717 = vmatpush1.bf16.msra.mxu0 %v4701
  %4718 = vmatprep.subr.bf16.mxu0 0
  %4719 = vmatpush1.bf16.msra.mxu0 %v4700
  %4720 = vmatprep.subr.bf16.mxu0 0
  %4721 = vmatpush2.bf16.msra.mxu0 0
  %4722 = vmatprep.subr.bf16.mxu0 0
  %4723 = vmatpush2.bf16.msra.mxu0 0
  %4724 = vmatprep.subr.bf16.mxu0 0
  %4725 = vmatpush2.bf16.msra.mxu0 0
  %4726 = vmatprep.subr.bf16.mxu0 0
  %4727 = vmatpush2.bf16.msra.mxu0 0
  %4728 = vmatprep.subr.bf16.mxu0 0
  %4729 = vmatpush2.bf16.msra.mxu0 0
  %4730 = vmatprep.subr.bf16.mxu0 0
  %4731 = vmatpush2.bf16.msra.mxu0 0
  %4732 = vmatprep.subr.bf16.mxu0 0
  %4733 = vmatpush2.bf16.msra.mxu0 0
  %4734 = vmatprep.subr.bf16.mxu0 0
  %4735 = vmatpush2.bf16.msra.mxu0 0
  %4736 = vmatprep.mubr.bf16.mxu0 0
  %4737 = vmatmul.mubr.bf16.gmra.mxu0 %v3670
  %v4738 = vpop.f32.mrf.mxu0
  %v4739 = vadd.f32 %v4687, %v4738
  %v4740 = vpop.f32.mrf.mxu0
  %v4741 = vpop.f32.mrf.mxu0
  %v4742 = vpop.f32.mrf.mxu0
  %4743 = vdwg.mxu0
  %v4748 = vunpack.c.l.b16 %v4624
  %v4749 = vunpack.c.l.b16 %v4625
  %v4750 = vunpack.c.l.b16 %v4626
  %v4751 = vunpack.c.l.b16 %v4627
  %v4752 = vpack.c.b16 %v4749, %v4748
  %v4753 = vpack.c.b16 %v4751, %v4750
  %4756 = vmatprep.subr.bf16.mxu0 0
  %4757 = vmatpush1.bf16.msra.mxu0 0
  %4758 = vmatprep.subr.bf16.mxu0 0
  %4759 = vmatpush1.bf16.msra.mxu0 0
  %4760 = vmatprep.subr.bf16.mxu0 0
  %4761 = vmatpush1.bf16.msra.mxu0 0
  %4762 = vmatprep.subr.bf16.mxu0 0
  %4763 = vmatpush1.bf16.msra.mxu0 0
  %4764 = vmatprep.subr.bf16.mxu0 0
  %4765 = vmatpush1.bf16.msra.mxu0 0
  %4766 = vmatprep.subr.bf16.mxu0 0
  %4767 = vmatpush1.bf16.msra.mxu0 0
  %4768 = vmatprep.subr.bf16.mxu0 0
  %4769 = vmatpush1.bf16.msra.mxu0 %v4753
  %4770 = vmatprep.subr.bf16.mxu0 0
  %4771 = vmatpush1.bf16.msra.mxu0 %v4752
  %4772 = vmatprep.subr.bf16.mxu0 0
  %4773 = vmatpush2.bf16.msra.mxu0 0
  %4774 = vmatprep.subr.bf16.mxu0 0
  %4775 = vmatpush2.bf16.msra.mxu0 0
  %4776 = vmatprep.subr.bf16.mxu0 0
  %4777 = vmatpush2.bf16.msra.mxu0 0
  %4778 = vmatprep.subr.bf16.mxu0 0
  %4779 = vmatpush2.bf16.msra.mxu0 0
  %4780 = vmatprep.subr.bf16.mxu0 0
  %4781 = vmatpush2.bf16.msra.mxu0 0
  %4782 = vmatprep.subr.bf16.mxu0 0
  %4783 = vmatpush2.bf16.msra.mxu0 0
  %4784 = vmatprep.subr.bf16.mxu0 0
  %4785 = vmatpush2.bf16.msra.mxu0 0
  %4786 = vmatprep.subr.bf16.mxu0 0
  %4787 = vmatpush2.bf16.msra.mxu0 0
  %4788 = vmatprep.mubr.bf16.mxu0 0
  %4789 = vmatmul.mubr.bf16.gmra.mxu0 %v4516
  %v4790 = vpop.f32.mrf.mxu0
  %v4791 = vadd.f32 0.0, %v4790
  %v4792 = vpop.f32.mrf.mxu0
  %v4793 = vpop.f32.mrf.mxu0
  %v4794 = vpop.f32.mrf.mxu0
  %4795 = vdwg.mxu0
  %v4796 = vadd.f32 %v4739, %v4791
  %v4797 = vpack.c.bf16 %v4611, %v4611
  %v4802 = vunpack.c.l.b16 %v4628
  %v4803 = vunpack.c.l.b16 %v4629
  %v4804 = vunpack.c.l.b16 %v4630
  %v4805 = vunpack.c.l.b16 %v4631
  %v4806 = vpack.c.b16 %v4803, %v4802
  %v4807 = vpack.c.b16 %v4805, %v4804
  %v4811 = vsel %vm603, %v4797, 0
  %4813 = vmatprep.subr.bf16.mxu0 0
  %4814 = vmatpush1.bf16.msra.mxu0 0
  %4815 = vmatprep.subr.bf16.mxu0 0
  %4816 = vmatpush1.bf16.msra.mxu0 0
  %4817 = vmatprep.subr.bf16.mxu0 0
  %4818 = vmatpush1.bf16.msra.mxu0 0
  %4819 = vmatprep.subr.bf16.mxu0 0
  %4820 = vmatpush1.bf16.msra.mxu0 0
  %4821 = vmatprep.subr.bf16.mxu0 0
  %4822 = vmatpush1.bf16.msra.mxu0 0
  %4823 = vmatprep.subr.bf16.mxu0 0
  %4824 = vmatpush1.bf16.msra.mxu0 0
  %4825 = vmatprep.subr.bf16.mxu0 0
  %4826 = vmatpush1.bf16.msra.mxu0 %v4807
  %4827 = vmatprep.subr.bf16.mxu0 0
  %4828 = vmatpush1.bf16.msra.mxu0 %v4806
  %4829 = vmatprep.subr.bf16.mxu0 0
  %4830 = vmatpush2.bf16.msra.mxu0 0
  %4831 = vmatprep.subr.bf16.mxu0 0
  %4832 = vmatpush2.bf16.msra.mxu0 0
  %4833 = vmatprep.subr.bf16.mxu0 0
  %4834 = vmatpush2.bf16.msra.mxu0 0
  %4835 = vmatprep.subr.bf16.mxu0 0
  %4836 = vmatpush2.bf16.msra.mxu0 0
  %4837 = vmatprep.subr.bf16.mxu0 0
  %4838 = vmatpush2.bf16.msra.mxu0 0
  %4839 = vmatprep.subr.bf16.mxu0 0
  %4840 = vmatpush2.bf16.msra.mxu0 0
  %4841 = vmatprep.subr.bf16.mxu0 0
  %4842 = vmatpush2.bf16.msra.mxu0 0
  %4843 = vmatprep.subr.bf16.mxu0 0
  %4844 = vmatpush2.bf16.msra.mxu0 0
  %4845 = vmatprep.mubr.bf16.mxu0 0
  %4846 = vmatmul.mubr.bf16.gmra.mxu0 %v4811
  %v4847 = vpop.f32.mrf.mxu0
  %v4848 = vadd.f32 0.0, %v4847
  %v4849 = vpop.f32.mrf.mxu0
  %v4850 = vpop.f32.mrf.mxu0
  %v4851 = vpop.f32.mrf.mxu0
  %4852 = vdwg.mxu0
  %v4853 = vadd.f32 %v4796, %v4848
  %v4854 = vpack.c.bf16 %v2946, %v2946
  %v4859 = vunpack.c.l.b16 %v4632
  %v4860 = vunpack.c.l.b16 %v4633
  %v4861 = vunpack.c.l.b16 %v4634
  %v4862 = vunpack.c.l.b16 %v4635
  %v4863 = vpack.c.b16 %v4860, %v4859
  %v4864 = vpack.c.b16 %v4862, %v4861
  %v4868 = vsel %vm603, %v4854, 0
  %4870 = vmatprep.subr.bf16.mxu0 0
  %4871 = vmatpush1.bf16.msra.mxu0 0
  %4872 = vmatprep.subr.bf16.mxu0 0
  %4873 = vmatpush1.bf16.msra.mxu0 0
  %4874 = vmatprep.subr.bf16.mxu0 0
  %4875 = vmatpush1.bf16.msra.mxu0 0
  %4876 = vmatprep.subr.bf16.mxu0 0
  %4877 = vmatpush1.bf16.msra.mxu0 0
  %4878 = vmatprep.subr.bf16.mxu0 0
  %4879 = vmatpush1.bf16.msra.mxu0 0
  %4880 = vmatprep.subr.bf16.mxu0 0
  %4881 = vmatpush1.bf16.msra.mxu0 0
  %4882 = vmatprep.subr.bf16.mxu0 0
  %4883 = vmatpush1.bf16.msra.mxu0 %v4864
  %4884 = vmatprep.subr.bf16.mxu0 0
  %4885 = vmatpush1.bf16.msra.mxu0 %v4863
  %4886 = vmatprep.subr.bf16.mxu0 0
  %4887 = vmatpush2.bf16.msra.mxu0 0
  %4888 = vmatprep.subr.bf16.mxu0 0
  %4889 = vmatpush2.bf16.msra.mxu0 0
  %4890 = vmatprep.subr.bf16.mxu0 0
  %4891 = vmatpush2.bf16.msra.mxu0 0
  %4892 = vmatprep.subr.bf16.mxu0 0
  %4893 = vmatpush2.bf16.msra.mxu0 0
  %4894 = vmatprep.subr.bf16.mxu0 0
  %4895 = vmatpush2.bf16.msra.mxu0 0
  %4896 = vmatprep.subr.bf16.mxu0 0
  %4897 = vmatpush2.bf16.msra.mxu0 0
  %4898 = vmatprep.subr.bf16.mxu0 0
  %4899 = vmatpush2.bf16.msra.mxu0 0
  %4900 = vmatprep.subr.bf16.mxu0 0
  %4901 = vmatpush2.bf16.msra.mxu0 0
  %4902 = vmatprep.mubr.bf16.mxu0 0
  %4903 = vmatmul.mubr.bf16.gmra.mxu0 %v4868
  %v4904 = vpop.f32.mrf.mxu0
  %v4905 = vadd.f32 0.0, %v4904
  %v4906 = vpop.f32.mrf.mxu0
  %v4907 = vpop.f32.mrf.mxu0
  %v4908 = vpop.f32.mrf.mxu0
  %4909 = vdwg.mxu0
  %v4910 = vadd.f32 %v4853, %v4905
  %v4911 = vld [vmem:[%s73] sm:$0x1]
  %v4913 = vlaneseq
  %v4914 = vshrl.u32 %v4913, 7
  %v4915 = vsub.s32 0, %v4914
  %v4916 = vrot.slane %v4911, %v4915
  %v4918 = vadd.f32 %v4910, %v4916
  %v4919 = vld [vmem:[%s75] sm:$0xf]
  %v4920 = vld [vmem:[%s75 + $0x4] sm:$0xf]
  %v4921 = vld [vmem:[%s75 + $0x8] sm:$0xf]
  %v4922 = vld [vmem:[%s75 + $0xc] sm:$0xf]
  %v4923 = vpack.c.bf16 %v4918, %v4918
  %v4924 = vld [vmem:[%s77] sm:$0x1]
  %v4926 = vlaneseq
  %v4927 = vshrl.u32 %v4926, 7
  %v4928 = vsub.s32 0, %v4927
  %v4929 = vrot.slane %v4924, %v4928
  %v4935 = vunpack.c.l.b16 %v4919
  %v4936 = vunpack.c.l.b16 %v4920
  %v4937 = vunpack.c.l.b16 %v4921
  %v4938 = vunpack.c.l.b16 %v4922
  %v4939 = vpack.c.b16 %v4936, %v4935
  %v4940 = vpack.c.b16 %v4938, %v4937
  %v4944 = vsel %vm603, %v4923, 0
  %4946 = vmatprep.subr.bf16.mxu0 0
  %4947 = vmatpush1.bf16.msra.mxu0 0
  %4948 = vmatprep.subr.bf16.mxu0 0
  %4949 = vmatpush1.bf16.msra.mxu0 0
  %4950 = vmatprep.subr.bf16.mxu0 0
  %4951 = vmatpush1.bf16.msra.mxu0 0
  %4952 = vmatprep.subr.bf16.mxu0 0
  %4953 = vmatpush1.bf16.msra.mxu0 0
  %4954 = vmatprep.subr.bf16.mxu0 0
  %4955 = vmatpush1.bf16.msra.mxu0 0
  %4956 = vmatprep.subr.bf16.mxu0 0
  %4957 = vmatpush1.bf16.msra.mxu0 0
  %4958 = vmatprep.subr.bf16.mxu0 0
  %4959 = vmatpush1.bf16.msra.mxu0 %v4940
  %4960 = vmatprep.subr.bf16.mxu0 0
  %4961 = vmatpush1.bf16.msra.mxu0 %v4939
  %4962 = vmatprep.subr.bf16.mxu0 0
  %4963 = vmatpush2.bf16.msra.mxu0 0
  %4964 = vmatprep.subr.bf16.mxu0 0
  %4965 = vmatpush2.bf16.msra.mxu0 0
  %4966 = vmatprep.subr.bf16.mxu0 0
  %4967 = vmatpush2.bf16.msra.mxu0 0
  %4968 = vmatprep.subr.bf16.mxu0 0
  %4969 = vmatpush2.bf16.msra.mxu0 0
  %4970 = vmatprep.subr.bf16.mxu0 0
  %4971 = vmatpush2.bf16.msra.mxu0 0
  %4972 = vmatprep.subr.bf16.mxu0 0
  %4973 = vmatpush2.bf16.msra.mxu0 0
  %4974 = vmatprep.subr.bf16.mxu0 0
  %4975 = vmatpush2.bf16.msra.mxu0 0
  %4976 = vmatprep.subr.bf16.mxu0 0
  %4977 = vmatpush2.bf16.msra.mxu0 0
  %4978 = vmatprep.mubr.bf16.mxu0 0
  %4979 = vmatmul.mubr.bf16.gmra.mxu0 %v4944
  %v4980 = vpop.f32.mrf.mxu0
  %v4981 = vadd.f32 %v4929, %v4980
  %v4982 = vpop.f32.mrf.mxu0
  %v4983 = vpop.f32.mrf.mxu0
  %v4984 = vpop.f32.mrf.mxu0
  %4985 = vdwg.mxu0
  %v4986 = vld [vmem:[%s79] sm:$0xf]
  %v4987 = vld [vmem:[%s79 + $0x4] sm:$0xf]
  %v4988 = vpack.c.bf16 %v4981, %v4981
  %v4989 = vld [vmem:[#allocation2] sm:$0x1]
  %v4991 = vlaneseq
  %v4992 = vshrl.u32 %v4991, 7
  %v4993 = vsub.s32 0, %v4992
  %v4994 = vrot.slane %v4989, %v4993
  %v4998 = vunpack.c.l.b16 %v4986
  %v4999 = vunpack.c.l.b16 %v4987
  %v5000 = vpack.c.b16 %v4999, %v4998
  %v5003 = vsel %vm2559, %v4988, 0
  %5005 = vmatprep.subr.bf16.mxu0 0
  %5006 = vmatpush1.bf16.msra.mxu0 0
  %5007 = vmatprep.subr.bf16.mxu0 0
  %5008 = vmatpush1.bf16.msra.mxu0 0
  %5009 = vmatprep.subr.bf16.mxu0 0
  %5010 = vmatpush1.bf16.msra.mxu0 0
  %5011 = vmatprep.subr.bf16.mxu0 0
  %5012 = vmatpush1.bf16.msra.mxu0 0
  %5013 = vmatprep.subr.bf16.mxu0 0
  %5014 = vmatpush1.bf16.msra.mxu0 0
  %5015 = vmatprep.subr.bf16.mxu0 0
  %5016 = vmatpush1.bf16.msra.mxu0 0
  %5017 = vmatprep.subr.bf16.mxu0 0
  %5018 = vmatpush1.bf16.msra.mxu0 0
  %5019 = vmatprep.subr.bf16.mxu0 0
  %5020 = vmatpush1.bf16.msra.mxu0 %v5000
  %5021 = vmatprep.subr.bf16.mxu0 0
  %5022 = vmatpush2.bf16.msra.mxu0 0
  %5023 = vmatprep.subr.bf16.mxu0 0
  %5024 = vmatpush2.bf16.msra.mxu0 0
  %5025 = vmatprep.subr.bf16.mxu0 0
  %5026 = vmatpush2.bf16.msra.mxu0 0
  %5027 = vmatprep.subr.bf16.mxu0 0
  %5028 = vmatpush2.bf16.msra.mxu0 0
  %5029 = vmatprep.subr.bf16.mxu0 0
  %5030 = vmatpush2.bf16.msra.mxu0 0
  %5031 = vmatprep.subr.bf16.mxu0 0
  %5032 = vmatpush2.bf16.msra.mxu0 0
  %5033 = vmatprep.subr.bf16.mxu0 0
  %5034 = vmatpush2.bf16.msra.mxu0 0
  %5035 = vmatprep.subr.bf16.mxu0 0
  %5036 = vmatpush2.bf16.msra.mxu0 0
  %5037 = vmatprep.mubr.bf16.mxu0 0
  %5038 = vmatmul.mubr.bf16.gmra.mxu0 %v5003
  %v5039 = vpop.f32.mrf.mxu0
  %v5040 = vadd.f32 %v4994, %v5039
  %v5041 = vpop.f32.mrf.mxu0
  %v5042 = vpop.f32.mrf.mxu0
  %v5043 = vpop.f32.mrf.mxu0
  %5044 = vdwg.mxu0
  %vm5045 = vcmask 1024
  %5046 = vst.msk [vmem:[%s83] sm:$0x3] %vm5045, %v5040
  // Predicated region
  $region166: #{megnet_forward.1} parent=0 // pred_check
    _
  $region167: #{megnet_forward.1} parent=0 // pred_check_branch
    %5048 = sbr.rel (0) target = $region169
  $region168: #{megnet_forward.1} parent=0 // pred_region
    _
  $region169: #{megnet_forward.1} parent=0 // pred_fallthru
    _
  // Predicated region
  $region170: #{megnet_forward.1} parent=0 // pred_check
    _
  $region171: #{megnet_forward.1} parent=0 // pred_check_branch
    %5050 = sbr.rel (0) target = $region173
  $region172: #{megnet_forward.1} parent=0 // pred_region
    _
  $region173: #{megnet_forward.1} parent=0 // pred_fallthru
    _

</llo_original>
